<compile_context>
chip_gen: v7x
topology: tpu7x:2x2x1
jax: 0.10.0
libtpu: 0.0.40
codegen_flags: <defaults>
</compile_context>

<pallas_src>
import functools

import jax
import jax.numpy as jnp
from jax.experimental import pallas as pl
from jax.experimental.pallas import tpu as pltpu


# ----------------------------------------------------------------------------
# Pallas kernels
# ----------------------------------------------------------------------------
def _gemm_kernel(x_ref, w_ref, s_ref, o_ref, *, relu):
    # y = relu(x @ w + shift)   (bias & BN already folded into w / shift)
    y = jnp.dot(x_ref[...], w_ref[...], preferred_element_type=jnp.float32)
    y = y + s_ref[...]
    if relu:
        y = jnp.maximum(y, 0.0)
    o_ref[...] = y.astype(o_ref.dtype)


def _pick_block_m(m):
    """M-tile size: single block for small M, otherwise an even 128..512 tile."""
    if m <= 512:
        return m
    for bm in (512, 384, 256, 128):
        if m % bm == 0:
            return bm
    return 512  # ragged last block; Pallas masks OOB rows


def fused_gemm(x, w, shift, *, relu, out_dtype=jnp.float32):
    """relu((x @ w) + shift), bf16 operands, f32 accumulate, gridded over M."""
    M, K = x.shape
    K2, N = w.shape
    assert K == K2
    bm = _pick_block_m(M)
    grid = (pl.cdiv(M, bm),)
    cost = pl.CostEstimate(
        flops=2 * M * N * K,
        transcendentals=0,
        bytes_accessed=int(x.size * x.dtype.itemsize + w.size * w.dtype.itemsize
                           + shift.size * 4 + M * N * jnp.dtype(out_dtype).itemsize),
    )
    return pl.pallas_call(
        functools.partial(_gemm_kernel, relu=relu),
        out_shape=jax.ShapeDtypeStruct((M, N), out_dtype),
        grid=grid,
        in_specs=[
            pl.BlockSpec((bm, K), lambda i: (i, 0)),
            pl.BlockSpec((K, N), lambda i: (0, 0)),
            pl.BlockSpec((1, N), lambda i: (0, 0)),
        ],
        out_specs=pl.BlockSpec((bm, N), lambda i: (i, 0)),
        compiler_params=pltpu.CompilerParams(
            dimension_semantics=("parallel",)),
        cost_estimate=cost,
    )(x, w, shift)


def _max4_kernel(a_ref, b_ref, c_ref, d_ref, o_ref):
    o_ref[...] = jnp.maximum(jnp.maximum(a_ref[...], b_ref[...]),
                             jnp.maximum(c_ref[...], d_ref[...]))


def _pool_views(x):
    """NHWC (B,H,W,C) -> four lane-dense (B, Hp*Wp*C) shifted views (2x2/s2)."""
    B, H, W, C = x.shape
    Hp, Wp = H // 2, W // 2
    return [x[:, i::2, j::2, :].reshape(B, Hp * Wp * C)
            for i in range(2) for j in range(2)], Hp, Wp


def maxpool2x2_nhwc(x):
    """2x2/stride-2 max pool on NHWC; kernel I/O is lane-dense (B, Hp*Wp*C)."""
    B, H, W, C = x.shape
    views, Hp, Wp = _pool_views(x)
    out = pl.pallas_call(
        _max4_kernel,
        out_shape=jax.ShapeDtypeStruct((B, Hp * Wp * C), x.dtype),
        in_specs=[pl.BlockSpec(memory_space=pltpu.MemorySpace.VMEM)] * 4,
        out_specs=pl.BlockSpec(memory_space=pltpu.MemorySpace.VMEM),
    )(*views)
    return out.reshape(B, Hp, Wp, C)


def _pool_head_kernel(a_ref, b_ref, c_ref, d_ref,
                      w1_ref, s1_ref, w2_ref, s2_ref, w3_ref, b3_ref,
                      wd2_ref, bd2_ref, cls_ref, dom_ref):
    """pool2 + both classifier heads fused; intermediates never leave VMEM.

    a..d are the four 2x2-shifted views of the conv2_2 output, already
    flattened to (B, 1024) in NHWC (h, w, c) order.
    w1 packs c_fc1 (cols 0:128, 100 real) and d_fc1 (cols 128:256, 100 real);
    w2/w3/wd2 are zero-padded to (128, 128) so padded activations contribute 0.
    """
    f = jnp.maximum(jnp.maximum(a_ref[...], b_ref[...]),
                    jnp.maximum(c_ref[...], d_ref[...]))        # (B, 1024) bf16
    y1 = jnp.dot(f, w1_ref[...], preferred_element_type=jnp.float32)
    y1 = jnp.maximum(y1 + s1_ref[...], 0.0)                     # (B, 256)
    hc = y1[:, :128].astype(jnp.bfloat16)                       # class branch
    hd = y1[:, 128:].astype(jnp.bfloat16)                       # domain branch
    h2 = jnp.dot(hc, w2_ref[...], preferred_element_type=jnp.float32)
    h2 = jnp.maximum(h2 + s2_ref[...], 0.0).astype(jnp.bfloat16)
    cls = jnp.dot(h2, w3_ref[...], preferred_element_type=jnp.float32) + b3_ref[...]
    dom = jnp.dot(hd, wd2_ref[...], preferred_element_type=jnp.float32) + bd2_ref[...]
    cls_ref[...] = cls.astype(cls_ref.dtype)
    dom_ref[...] = dom.astype(dom_ref.dtype)


def fused_pool_heads(x, p):
    """Single pallas_call: pool2 + class + domain classifiers.

    x: NHWC (B, 8, 8, 64) bf16.  Returns (B, 10), (B, 2) float32 logits.
    """
    B = x.shape[0]
    views, _, _ = _pool_views(x)                                # 4x (B, 1024)
    cost = pl.CostEstimate(
        flops=2 * B * (1024 * 256 + 3 * 128 * 128) + 3 * B * 1024,
        transcendentals=0,
        bytes_accessed=int(4 * B * 1024 * 2
                           + (1024 * 256 + 3 * 128 * 128) * 2
                           + (256 + 3 * 128) * 4 + 2 * B * 128 * 4),
    )
    cls_pad, dom_pad = pl.pallas_call(
        _pool_head_kernel,
        out_shape=(jax.ShapeDtypeStruct((B, 128), jnp.float32),
                   jax.ShapeDtypeStruct((B, 128), jnp.float32)),
        in_specs=[pl.BlockSpec(memory_space=pltpu.MemorySpace.VMEM)] * 12,
        out_specs=(pl.BlockSpec(memory_space=pltpu.MemorySpace.VMEM),
                   pl.BlockSpec(memory_space=pltpu.MemorySpace.VMEM)),
        cost_estimate=cost,
    )(*views, p['w1'], p['s1'], p['w2'], p['s2'],
      p['w3'], p['b3'], p['wd2'], p['bd2'])
    return cls_pad[:, :10], dom_pad[:, :2]


# ----------------------------------------------------------------------------
# Glue: NHWC im2col, conv wrapper
# ----------------------------------------------------------------------------
def im2col_nhwc(x, kh, kw):
    """x:(B,H,W,C) -> patches:(B*Ho*Wo, kh*kw*C) in (kh, kw, Cin) column order."""
    B, H, W, C = x.shape
    Ho, Wo = H - kh + 1, W - kw + 1
    cols = [x[:, i:i + Ho, j:j + Wo, :] for i in range(kh) for j in range(kw)]
    p = jnp.concatenate(cols, axis=-1)                 # (B, Ho, Wo, kh*kw*C)
    return p.reshape(B * Ho * Wo, kh * kw * C), Ho, Wo


def conv_bn_relu(x, wmat, shift, kh, kw):
    """Conv2d(valid, stride 1) + folded BN + ReLU via NHWC im2col + Pallas GEMM."""
    B = x.shape[0]
    patches, Ho, Wo = im2col_nhwc(x, kh, kw)
    K = wmat.shape[0]
    if patches.shape[1] < K:                           # conv1: K padded 25 -> 32
        patches = jnp.pad(patches, ((0, 0), (0, K - patches.shape[1])))
    y = fused_gemm(patches.astype(jnp.bfloat16), wmat, shift,
                   relu=True, out_dtype=jnp.bfloat16)
    return y.reshape(B, Ho, Wo, wmat.shape[1])         # NHWC, no transpose


# ----------------------------------------------------------------------------
# Parameters: raw (PyTorch layout) -> kernel-ready (folded / permuted / padded)
# ----------------------------------------------------------------------------
def bn_fold(gamma, beta, mean, var, eps=1e-5):
    scale = gamma * jax.lax.rsqrt(var + eps)
    shift = beta - mean * scale
    return scale, shift


def prep_conv(w_oihw, b, scale, shift, k_pad=None):
    """Torch (Cout,Cin,kh,kw) -> (kh*kw*Cin, Cout) bf16, BN/bias folded."""
    Cout, Cin, kh, kw = w_oihw.shape
    wmat = w_oihw.transpose(2, 3, 1, 0).reshape(kh * kw * Cin, Cout)
    wmat = wmat * scale[None, :]
    sh = b * scale + shift
    if k_pad is not None and k_pad > wmat.shape[0]:
        wmat = jnp.pad(wmat, ((0, k_pad - wmat.shape[0]), (0, 0)))
    return wmat.astype(jnp.bfloat16), sh.reshape(1, Cout).astype(jnp.float32)


def prep_fc(w_oi, b, scale=None, shift=None, *, n_pad=128, k_pad=None,
            nhwc_perm=None):
    """Torch (out,in) -> (in[,k_pad], n_pad) bf16, BN/bias folded, zero-padded.

    nhwc_perm=(C,H,W) reorders the 1024-d input columns from the torch NCHW
    flatten (c,h,w) to our NHWC flatten (h,w,c).
    """
    out_f, in_f = w_oi.shape
    if nhwc_perm is not None:
        C, H, W = nhwc_perm
        w_oi = w_oi.reshape(out_f, C, H, W).transpose(0, 2, 3, 1).reshape(out_f, in_f)
    wmat = w_oi.T
    if scale is not None:
        wmat = wmat * scale[None, :]
        sh = b * scale + shift
    else:
        sh = b
    wmat = jnp.pad(wmat, ((0, 0), (0, n_pad - out_f)))
    sh = jnp.pad(sh, (0, n_pad - out_f))
    if k_pad is not None and k_pad > wmat.shape[0]:
        wmat = jnp.pad(wmat, ((0, k_pad - wmat.shape[0]), (0, 0)))
    return wmat.astype(jnp.bfloat16), sh.reshape(1, n_pad).astype(jnp.float32)


def init_raw_params(key):
    ks = iter(jax.random.split(key, 48))

    def w(shape, s=0.1):
        return jax.random.normal(next(ks), shape, jnp.float32) * s

    def bn(c):
        gamma = jax.random.uniform(next(ks), (c,), jnp.float32, 0.5, 1.5)
        beta = w((c,))
        mean = w((c,))
        var = jax.random.uniform(next(ks), (c,), jnp.float32, 0.5, 1.5)
        return gamma, beta, mean, var

    r = {}
    r['conv1_1_w'] = w((32, 1, 5, 5)); r['conv1_1_b'] = w((32,)); r['bn1'] = bn(32)
    r['conv2_1_w'] = w((64, 32, 3, 3)); r['conv2_1_b'] = w((64,)); r['bn2_1'] = bn(64)
    r['conv2_2_w'] = w((64, 64, 3, 3)); r['conv2_2_b'] = w((64,)); r['bn2_2'] = bn(64)
    r['c_fc1_w'] = w((100, 1024)); r['c_fc1_b'] = w((100,)); r['c_bn1'] = bn(100)
    r['c_fc2_w'] = w((100, 100));  r['c_fc2_b'] = w((100,)); r['c_bn2'] = bn(100)
    r['c_fc3_w'] = w((10, 100));   r['c_fc3_b'] = w((10,))
    r['d_fc1_w'] = w((100, 1024)); r['d_fc1_b'] = w((100,)); r['d_bn1'] = bn(100)
    r['d_fc2_w'] = w((2, 100));    r['d_fc2_b'] = w((2,))
    return r


def prepare_params(raw):
    p = {}
    s, sh = bn_fold(*raw['bn1'])
    p['conv1_w'], p['conv1_s'] = prep_conv(raw['conv1_1_w'], raw['conv1_1_b'], s, sh, k_pad=32)
    s, sh = bn_fold(*raw['bn2_1'])
    p['conv2_1_w'], p['conv2_1_s'] = prep_conv(raw['conv2_1_w'], raw['conv2_1_b'], s, sh)
    s, sh = bn_fold(*raw['bn2_2'])
    p['conv2_2_w'], p['conv2_2_s'] = prep_conv(raw['conv2_2_w'], raw['conv2_2_b'], s, sh)

    # both fc1 layers packed into one lane-dense (1024, 256) weight
    s, sh = bn_fold(*raw['c_bn1'])
    wc1, sc1 = prep_fc(raw['c_fc1_w'], raw['c_fc1_b'], s, sh, nhwc_perm=(64, 4, 4))
    s, sh = bn_fold(*raw['d_bn1'])
    wd1, sd1 = prep_fc(raw['d_fc1_w'], raw['d_fc1_b'], s, sh, nhwc_perm=(64, 4, 4))
    p['w1'] = jnp.concatenate([wc1, wd1], axis=1)      # (1024, 256) bf16
    p['s1'] = jnp.concatenate([sc1, sd1], axis=1)      # (1, 256)    f32

    s, sh = bn_fold(*raw['c_bn2'])
    p['w2'], p['s2'] = prep_fc(raw['c_fc2_w'], raw['c_fc2_b'], s, sh, k_pad=128)
    p['w3'], p['b3'] = prep_fc(raw['c_fc3_w'], raw['c_fc3_b'], k_pad=128)
    p['wd2'], p['bd2'] = prep_fc(raw['d_fc2_w'], raw['d_fc2_b'], k_pad=128)
    return p


# ----------------------------------------------------------------------------
# Model forward
# ----------------------------------------------------------------------------
def dann_forward(params, input_data, alpha):
    del alpha  # ReverseLayerF forward is identity; alpha only affects backward.
    p = params
    # single NCHW -> NHWC transpose + bf16 cast at the input
    x = jnp.transpose(input_data, (0, 2, 3, 1)).astype(jnp.bfloat16)
    x = conv_bn_relu(x, p['conv1_w'], p['conv1_s'], 5, 5)      # (B, 24, 24, 32)
    x = maxpool2x2_nhwc(x)                                     # (B, 12, 12, 32)
    x = conv_bn_relu(x, p['conv2_1_w'], p['conv2_1_s'], 3, 3)  # (B, 10, 10, 64)
    x = conv_bn_relu(x, p['conv2_2_w'], p['conv2_2_s'], 3, 3)  # (B,  8,  8, 64)
    # drop1 / c_drop1: identity (inference mode).
    # TODO(synk): ReverseLayerF only changes the backward pass; forward is identity.
    return fused_pool_heads(x, p)                              # (B, 10), (B, 2)


if __name__ == "__main__":
    key = jax.random.PRNGKey(0)
    pk, xk = jax.random.split(key)
    params = prepare_params(init_raw_params(pk))

    # Architecture requires 28x28 single-channel input so x.view(-1, 1024) holds.
    batch = 2
    input_data = jax.random.normal(xk, (batch, 1, 28, 28), jnp.float32)
    alpha = jnp.float32(0.5)

    fwd = jax.jit(dann_forward)
    class_out, domain_out = fwd(params, input_data, alpha)
    jax.block_until_ready((class_out, domain_out))

    assert class_out.shape == (batch, 10)
    assert domain_out.shape == (batch, 2)
    assert class_out.dtype == jnp.float32 and domain_out.dtype == jnp.float32
    print("KERNEL_OK")
</pallas_src>

<mosaic_0001>
module attributes {stable_mosaic.version = 11 : i64} {
  func.func @_gemm_kernel(%arg0: i32, %arg1: memref<384x32xbf16, #tpu.memory_space<vmem>>, %arg2: memref<32x32xbf16, #tpu.memory_space<vmem>>, %arg3: memref<1x32xf32, #tpu.memory_space<vmem>>, %arg4: memref<384x32xbf16, #tpu.memory_space<vmem>>) attributes {dimension_semantics = [#tpu.dimension_semantics<parallel>], iteration_bounds = array<i64: 3>, scalar_prefetch = 0 : i64, scratch_operands = 0 : i64, tpu.core_type = #tpu.core_type<tc>, window_params = [{transform_indices = @transform_0, window_bounds = array<i64: 384, 32>}, {pipeline_mode = #tpu.pipeline_mode<synchronous>, transform_indices = @transform_1, window_bounds = array<i64: 32, 32>}, {pipeline_mode = #tpu.pipeline_mode<synchronous>, transform_indices = @transform_2, window_bounds = array<i64: 1, 32>}, {transform_indices = @transform_3, window_bounds = array<i64: 384, 32>}]} {
    %c0 = arith.constant 0 : index
    %c0_0 = arith.constant 0 : index
    %0 = vector.load %arg1[%c0, %c0_0] : memref<384x32xbf16, #tpu.memory_space<vmem>>, vector<384x32xbf16>
    %c0_1 = arith.constant 0 : index
    %c0_2 = arith.constant 0 : index
    %1 = vector.load %arg2[%c0_1, %c0_2] : memref<32x32xbf16, #tpu.memory_space<vmem>>, vector<32x32xbf16>
    %cst = arith.constant dense<0.000000e+00> : vector<384x32xf32>
    %2 = tpu.matmul %0, %1, %cst {dimension_numbers = #tpu.dot_dimension_numbers<[1], [0], [0], [1], [0, 0, 1, 1], [], []>} : vector<384x32xbf16>, vector<32x32xbf16>, vector<384x32xf32> -> vector<384x32xf32>
    %c0_3 = arith.constant 0 : index
    %c0_4 = arith.constant 0 : index
    %3 = vector.load %arg3[%c0_3, %c0_4] : memref<1x32xf32, #tpu.memory_space<vmem>>, vector<1x32xf32>
    %4 = vector.broadcast %3 : vector<1x32xf32> to vector<384x32xf32>
    %5 = arith.addf %2, %4 : vector<384x32xf32>
    %cst_5 = arith.constant 0.000000e+00 : f32
    %6 = vector.broadcast %cst_5 : f32 to vector<384x32xf32>
    %7 = arith.maximumf %5, %6 : vector<384x32xf32>
    %8 = arith.truncf %7 : vector<384x32xf32> to vector<384x32xbf16>
    %c0_6 = arith.constant 0 : index
    %c0_7 = arith.constant 0 : index
    %9 = vector.load %arg4[%c0_6, %c0_7] : memref<384x32xbf16, #tpu.memory_space<vmem>>, vector<384x32xbf16>
    tpu.vector_store %arg4[%c0_6, %c0_7], %8 {strides = array<i32>} : memref<384x32xbf16, #tpu.memory_space<vmem>>, vector<384x32xbf16>,
    return
  }
  func.func @transform_0(%arg0: i32) -> (i32, i32) {
    %c0_i32 = arith.constant 0 : i32
    %c0_i32_0 = arith.constant 0 : i32
    return %arg0, %c0_i32 : i32, i32
  }
  func.func @transform_1(%arg0: i32) -> (i32, i32) {
    %c0_i32 = arith.constant 0 : i32
    %c0_i32_0 = arith.constant 0 : i32
    %c0_i32_1 = arith.constant 0 : i32
    return %c0_i32, %c0_i32_0 : i32, i32
  }
  func.func @transform_2(%arg0: i32) -> (i32, i32) {
    %c0_i32 = arith.constant 0 : i32
    %c0_i32_0 = arith.constant 0 : i32
    %c0_i32_1 = arith.constant 0 : i32
    return %c0_i32, %c0_i32_0 : i32, i32
  }
  func.func @transform_3(%arg0: i32) -> (i32, i32) {
    %c0_i32 = arith.constant 0 : i32
    %c0_i32_0 = arith.constant 0 : i32
    return %arg0, %c0_i32 : i32, i32
  }
}

module attributes {stable_mosaic.version = 11 : i64} {
  func.func @_max4_kernel(%arg0: memref<2x4608xbf16, #tpu.memory_space<vmem>>, %arg1: memref<2x4608xbf16, #tpu.memory_space<vmem>>, %arg2: memref<2x4608xbf16, #tpu.memory_space<vmem>>, %arg3: memref<2x4608xbf16, #tpu.memory_space<vmem>>, %arg4: memref<2x4608xbf16, #tpu.memory_space<vmem>>) attributes {dimension_semantics = [], scalar_prefetch = 0 : i64, scratch_operands = 0 : i64, tpu.core_type = #tpu.core_type<tc>} {
    %c0 = arith.constant 0 : index
    %c0_0 = arith.constant 0 : index
    %0 = vector.load %arg0[%c0, %c0_0] : memref<2x4608xbf16, #tpu.memory_space<vmem>>, vector<2x4608xbf16>
    %c0_1 = arith.constant 0 : index
    %c0_2 = arith.constant 0 : index
    %1 = vector.load %arg1[%c0_1, %c0_2] : memref<2x4608xbf16, #tpu.memory_space<vmem>>, vector<2x4608xbf16>
    %2 = arith.maximumf %0, %1 : vector<2x4608xbf16>
    %c0_3 = arith.constant 0 : index
    %c0_4 = arith.constant 0 : index
    %3 = vector.load %arg2[%c0_3, %c0_4] : memref<2x4608xbf16, #tpu.memory_space<vmem>>, vector<2x4608xbf16>
    %c0_5 = arith.constant 0 : index
    %c0_6 = arith.constant 0 : index
    %4 = vector.load %arg3[%c0_5, %c0_6] : memref<2x4608xbf16, #tpu.memory_space<vmem>>, vector<2x4608xbf16>
    %5 = arith.maximumf %3, %4 : vector<2x4608xbf16>
    %6 = arith.maximumf %2, %5 : vector<2x4608xbf16>
    %c0_7 = arith.constant 0 : index
    %c0_8 = arith.constant 0 : index
    %7 = vector.load %arg4[%c0_7, %c0_8] : memref<2x4608xbf16, #tpu.memory_space<vmem>>, vector<2x4608xbf16>
    tpu.vector_store %arg4[%c0_7, %c0_8], %6 {strides = array<i32>} : memref<2x4608xbf16, #tpu.memory_space<vmem>>, vector<2x4608xbf16>,
    return
  }
}

module attributes {stable_mosaic.version = 11 : i64} {
  func.func @_gemm_kernel(%arg0: i32, %arg1: memref<200x288xbf16, #tpu.memory_space<vmem>>, %arg2: memref<288x64xbf16, #tpu.memory_space<vmem>>, %arg3: memref<1x64xf32, #tpu.memory_space<vmem>>, %arg4: memref<200x64xbf16, #tpu.memory_space<vmem>>) attributes {dimension_semantics = [#tpu.dimension_semantics<parallel>], iteration_bounds = array<i64: 1>, scalar_prefetch = 0 : i64, scratch_operands = 0 : i64, tpu.core_type = #tpu.core_type<tc>, window_params = [{transform_indices = @transform_0, window_bounds = array<i64: 200, 288>}, {pipeline_mode = #tpu.pipeline_mode<synchronous>, transform_indices = @transform_1, window_bounds = array<i64: 288, 64>}, {pipeline_mode = #tpu.pipeline_mode<synchronous>, transform_indices = @transform_2, window_bounds = array<i64: 1, 64>}, {transform_indices = @transform_3, window_bounds = array<i64: 200, 64>}]} {
    %c0 = arith.constant 0 : index
    %c0_0 = arith.constant 0 : index
    %0 = vector.load %arg1[%c0, %c0_0] : memref<200x288xbf16, #tpu.memory_space<vmem>>, vector<200x288xbf16>
    %c0_1 = arith.constant 0 : index
    %c0_2 = arith.constant 0 : index
    %1 = vector.load %arg2[%c0_1, %c0_2] : memref<288x64xbf16, #tpu.memory_space<vmem>>, vector<288x64xbf16>
    %cst = arith.constant dense<0.000000e+00> : vector<200x64xf32>
    %2 = tpu.matmul %0, %1, %cst {dimension_numbers = #tpu.dot_dimension_numbers<[1], [0], [0], [1], [0, 0, 1, 1], [], []>} : vector<200x288xbf16>, vector<288x64xbf16>, vector<200x64xf32> -> vector<200x64xf32>
    %c0_3 = arith.constant 0 : index
    %c0_4 = arith.constant 0 : index
    %3 = vector.load %arg3[%c0_3, %c0_4] : memref<1x64xf32, #tpu.memory_space<vmem>>, vector<1x64xf32>
    %4 = vector.broadcast %3 : vector<1x64xf32> to vector<200x64xf32>
    %5 = arith.addf %2, %4 : vector<200x64xf32>
    %cst_5 = arith.constant 0.000000e+00 : f32
    %6 = vector.broadcast %cst_5 : f32 to vector<200x64xf32>
    %7 = arith.maximumf %5, %6 : vector<200x64xf32>
    %8 = arith.truncf %7 : vector<200x64xf32> to vector<200x64xbf16>
    %c0_6 = arith.constant 0 : index
    %c0_7 = arith.constant 0 : index
    %9 = vector.load %arg4[%c0_6, %c0_7] : memref<200x64xbf16, #tpu.memory_space<vmem>>, vector<200x64xbf16>
    tpu.vector_store %arg4[%c0_6, %c0_7], %8 {strides = array<i32>} : memref<200x64xbf16, #tpu.memory_space<vmem>>, vector<200x64xbf16>,
    return
  }
  func.func @transform_0(%arg0: i32) -> (i32, i32) {
    %c0_i32 = arith.constant 0 : i32
    %c0_i32_0 = arith.constant 0 : i32
    return %arg0, %c0_i32 : i32, i32
  }
  func.func @transform_1(%arg0: i32) -> (i32, i32) {
    %c0_i32 = arith.constant 0 : i32
    %c0_i32_0 = arith.constant 0 : i32
    %c0_i32_1 = arith.constant 0 : i32
    return %c0_i32, %c0_i32_0 : i32, i32
  }
  func.func @transform_2(%arg0: i32) -> (i32, i32) {
    %c0_i32 = arith.constant 0 : i32
    %c0_i32_0 = arith.constant 0 : i32
    %c0_i32_1 = arith.constant 0 : i32
    return %c0_i32, %c0_i32_0 : i32, i32
  }
  func.func @transform_3(%arg0: i32) -> (i32, i32) {
    %c0_i32 = arith.constant 0 : i32
    %c0_i32_0 = arith.constant 0 : i32
    return %arg0, %c0_i32 : i32, i32
  }
}

module attributes {stable_mosaic.version = 11 : i64} {
  func.func @_gemm_kernel(%arg0: i32, %arg1: memref<128x576xbf16, #tpu.memory_space<vmem>>, %arg2: memref<576x64xbf16, #tpu.memory_space<vmem>>, %arg3: memref<1x64xf32, #tpu.memory_space<vmem>>, %arg4: memref<128x64xbf16, #tpu.memory_space<vmem>>) attributes {dimension_semantics = [#tpu.dimension_semantics<parallel>], iteration_bounds = array<i64: 1>, scalar_prefetch = 0 : i64, scratch_operands = 0 : i64, tpu.core_type = #tpu.core_type<tc>, window_params = [{transform_indices = @transform_0, window_bounds = array<i64: 128, 576>}, {pipeline_mode = #tpu.pipeline_mode<synchronous>, transform_indices = @transform_1, window_bounds = array<i64: 576, 64>}, {pipeline_mode = #tpu.pipeline_mode<synchronous>, transform_indices = @transform_2, window_bounds = array<i64: 1, 64>}, {transform_indices = @transform_3, window_bounds = array<i64: 128, 64>}]} {
    %c0 = arith.constant 0 : index
    %c0_0 = arith.constant 0 : index
    %0 = vector.load %arg1[%c0, %c0_0] : memref<128x576xbf16, #tpu.memory_space<vmem>>, vector<128x576xbf16>
    %c0_1 = arith.constant 0 : index
    %c0_2 = arith.constant 0 : index
    %1 = vector.load %arg2[%c0_1, %c0_2] : memref<576x64xbf16, #tpu.memory_space<vmem>>, vector<576x64xbf16>
    %cst = arith.constant dense<0.000000e+00> : vector<128x64xf32>
    %2 = tpu.matmul %0, %1, %cst {dimension_numbers = #tpu.dot_dimension_numbers<[1], [0], [0], [1], [0, 0, 1, 1], [], []>} : vector<128x576xbf16>, vector<576x64xbf16>, vector<128x64xf32> -> vector<128x64xf32>
    %c0_3 = arith.constant 0 : index
    %c0_4 = arith.constant 0 : index
    %3 = vector.load %arg3[%c0_3, %c0_4] : memref<1x64xf32, #tpu.memory_space<vmem>>, vector<1x64xf32>
    %4 = vector.broadcast %3 : vector<1x64xf32> to vector<128x64xf32>
    %5 = arith.addf %2, %4 : vector<128x64xf32>
    %cst_5 = arith.constant 0.000000e+00 : f32
    %6 = vector.broadcast %cst_5 : f32 to vector<128x64xf32>
    %7 = arith.maximumf %5, %6 : vector<128x64xf32>
    %8 = arith.truncf %7 : vector<128x64xf32> to vector<128x64xbf16>
    %c0_6 = arith.constant 0 : index
    %c0_7 = arith.constant 0 : index
    %9 = vector.load %arg4[%c0_6, %c0_7] : memref<128x64xbf16, #tpu.memory_space<vmem>>, vector<128x64xbf16>
    tpu.vector_store %arg4[%c0_6, %c0_7], %8 {strides = array<i32>} : memref<128x64xbf16, #tpu.memory_space<vmem>>, vector<128x64xbf16>,
    return
  }
  func.func @transform_0(%arg0: i32) -> (i32, i32) {
    %c0_i32 = arith.constant 0 : i32
    %c0_i32_0 = arith.constant 0 : i32
    return %arg0, %c0_i32 : i32, i32
  }
  func.func @transform_1(%arg0: i32) -> (i32, i32) {
    %c0_i32 = arith.constant 0 : i32
    %c0_i32_0 = arith.constant 0 : i32
    %c0_i32_1 = arith.constant 0 : i32
    return %c0_i32, %c0_i32_0 : i32, i32
  }
  func.func @transform_2(%arg0: i32) -> (i32, i32) {
    %c0_i32 = arith.constant 0 : i32
    %c0_i32_0 = arith.constant 0 : i32
    %c0_i32_1 = arith.constant 0 : i32
    return %c0_i32, %c0_i32_0 : i32, i32
  }
  func.func @transform_3(%arg0: i32) -> (i32, i32) {
    %c0_i32 = arith.constant 0 : i32
    %c0_i32_0 = arith.constant 0 : i32
    return %arg0, %c0_i32 : i32, i32
  }
}

module attributes {stable_mosaic.version = 11 : i64} {
  func.func @_pool_head_kernel(%arg0: memref<2x1024xbf16, #tpu.memory_space<vmem>>, %arg1: memref<2x1024xbf16, #tpu.memory_space<vmem>>, %arg2: memref<2x1024xbf16, #tpu.memory_space<vmem>>, %arg3: memref<2x1024xbf16, #tpu.memory_space<vmem>>, %arg4: memref<1024x256xbf16, #tpu.memory_space<vmem>>, %arg5: memref<1x256xf32, #tpu.memory_space<vmem>>, %arg6: memref<128x128xbf16, #tpu.memory_space<vmem>>, %arg7: memref<1x128xf32, #tpu.memory_space<vmem>>, %arg8: memref<128x128xbf16, #tpu.memory_space<vmem>>, %arg9: memref<1x128xf32, #tpu.memory_space<vmem>>, %arg10: memref<128x128xbf16, #tpu.memory_space<vmem>>, %arg11: memref<1x128xf32, #tpu.memory_space<vmem>>, %arg12: memref<2x128xf32, #tpu.memory_space<vmem>>, %arg13: memref<2x128xf32, #tpu.memory_space<vmem>>) attributes {dimension_semantics = [], scalar_prefetch = 0 : i64, scratch_operands = 0 : i64, tpu.core_type = #tpu.core_type<tc>} {
    %c0 = arith.constant 0 : index
    %c0_0 = arith.constant 0 : index
    %0 = vector.load %arg0[%c0, %c0_0] : memref<2x1024xbf16, #tpu.memory_space<vmem>>, vector<2x1024xbf16>
    %c0_1 = arith.constant 0 : index
    %c0_2 = arith.constant 0 : index
    %1 = vector.load %arg1[%c0_1, %c0_2] : memref<2x1024xbf16, #tpu.memory_space<vmem>>, vector<2x1024xbf16>
    %2 = arith.maximumf %0, %1 : vector<2x1024xbf16>
    %c0_3 = arith.constant 0 : index
    %c0_4 = arith.constant 0 : index
    %3 = vector.load %arg2[%c0_3, %c0_4] : memref<2x1024xbf16, #tpu.memory_space<vmem>>, vector<2x1024xbf16>
    %c0_5 = arith.constant 0 : index
    %c0_6 = arith.constant 0 : index
    %4 = vector.load %arg3[%c0_5, %c0_6] : memref<2x1024xbf16, #tpu.memory_space<vmem>>, vector<2x1024xbf16>
    %5 = arith.maximumf %3, %4 : vector<2x1024xbf16>
    %6 = arith.maximumf %2, %5 : vector<2x1024xbf16>
    %c0_7 = arith.constant 0 : index
    %c0_8 = arith.constant 0 : index
    %7 = vector.load %arg4[%c0_7, %c0_8] : memref<1024x256xbf16, #tpu.memory_space<vmem>>, vector<1024x256xbf16>
    %cst = arith.constant dense<0.000000e+00> : vector<2x256xf32>
    %8 = tpu.matmul %6, %7, %cst {dimension_numbers = #tpu.dot_dimension_numbers<[1], [0], [0], [1], [0, 0, 1, 1], [], []>} : vector<2x1024xbf16>, vector<1024x256xbf16>, vector<2x256xf32> -> vector<2x256xf32>
    %c0_9 = arith.constant 0 : index
    %c0_10 = arith.constant 0 : index
    %9 = vector.load %arg5[%c0_9, %c0_10] : memref<1x256xf32, #tpu.memory_space<vmem>>, vector<1x256xf32>
    %10 = vector.broadcast %9 : vector<1x256xf32> to vector<2x256xf32>
    %11 = arith.addf %8, %10 : vector<2x256xf32>
    %cst_11 = arith.constant 0.000000e+00 : f32
    %12 = vector.broadcast %cst_11 : f32 to vector<2x256xf32>
    %13 = arith.maximumf %11, %12 : vector<2x256xf32>
    %14 = vector.extract_strided_slice %13 {offsets = [0, 0], sizes = [2, 128], strides = [1, 1]} : vector<2x256xf32> to vector<2x128xf32>
    %15 = arith.truncf %14 : vector<2x128xf32> to vector<2x128xbf16>
    %16 = vector.extract_strided_slice %13 {offsets = [0, 128], sizes = [2, 128], strides = [1, 1]} : vector<2x256xf32> to vector<2x128xf32>
    %17 = arith.truncf %16 : vector<2x128xf32> to vector<2x128xbf16>
    %c0_12 = arith.constant 0 : index
    %c0_13 = arith.constant 0 : index
    %18 = vector.load %arg6[%c0_12, %c0_13] : memref<128x128xbf16, #tpu.memory_space<vmem>>, vector<128x128xbf16>
    %cst_14 = arith.constant dense<0.000000e+00> : vector<2x128xf32>
    %19 = tpu.matmul %15, %18, %cst_14 {dimension_numbers = #tpu.dot_dimension_numbers<[1], [0], [0], [1], [0, 0, 1, 1], [], []>} : vector<2x128xbf16>, vector<128x128xbf16>, vector<2x128xf32> -> vector<2x128xf32>
    %c0_15 = arith.constant 0 : index
    %c0_16 = arith.constant 0 : index
    %20 = vector.load %arg7[%c0_15, %c0_16] : memref<1x128xf32, #tpu.memory_space<vmem>>, vector<1x128xf32>
    %21 = vector.broadcast %20 : vector<1x128xf32> to vector<2x128xf32>
    %22 = arith.addf %19, %21 : vector<2x128xf32>
    %cst_17 = arith.constant 0.000000e+00 : f32
    %23 = vector.broadcast %cst_17 : f32 to vector<2x128xf32>
    %24 = arith.maximumf %22, %23 : vector<2x128xf32>
    %25 = arith.truncf %24 : vector<2x128xf32> to vector<2x128xbf16>
    %c0_18 = arith.constant 0 : index
    %c0_19 = arith.constant 0 : index
    %26 = vector.load %arg8[%c0_18, %c0_19] : memref<128x128xbf16, #tpu.memory_space<vmem>>, vector<128x128xbf16>
    %cst_20 = arith.constant dense<0.000000e+00> : vector<2x128xf32>
    %27 = tpu.matmul %25, %26, %cst_20 {dimension_numbers = #tpu.dot_dimension_numbers<[1], [0], [0], [1], [0, 0, 1, 1], [], []>} : vector<2x128xbf16>, vector<128x128xbf16>, vector<2x128xf32> -> vector<2x128xf32>
    %c0_21 = arith.constant 0 : index
    %c0_22 = arith.constant 0 : index
    %28 = vector.load %arg9[%c0_21, %c0_22] : memref<1x128xf32, #tpu.memory_space<vmem>>, vector<1x128xf32>
    %29 = vector.broadcast %28 : vector<1x128xf32> to vector<2x128xf32>
    %30 = arith.addf %27, %29 : vector<2x128xf32>
    %c0_23 = arith.constant 0 : index
    %c0_24 = arith.constant 0 : index
    %31 = vector.load %arg10[%c0_23, %c0_24] : memref<128x128xbf16, #tpu.memory_space<vmem>>, vector<128x128xbf16>
    %cst_25 = arith.constant dense<0.000000e+00> : vector<2x128xf32>
    %32 = tpu.matmul %17, %31, %cst_25 {dimension_numbers = #tpu.dot_dimension_numbers<[1], [0], [0], [1], [0, 0, 1, 1], [], []>} : vector<2x128xbf16>, vector<128x128xbf16>, vector<2x128xf32> -> vector<2x128xf32>
    %c0_26 = arith.constant 0 : index
    %c0_27 = arith.constant 0 : index
    %33 = vector.load %arg11[%c0_26, %c0_27] : memref<1x128xf32, #tpu.memory_space<vmem>>, vector<1x128xf32>
    %34 = vector.broadcast %33 : vector<1x128xf32> to vector<2x128xf32>
    %35 = arith.addf %32, %34 : vector<2x128xf32>
    %c0_28 = arith.constant 0 : index
    %c0_29 = arith.constant 0 : index
    %36 = vector.load %arg12[%c0_28, %c0_29] : memref<2x128xf32, #tpu.memory_space<vmem>>, vector<2x128xf32>
    tpu.vector_store %arg12[%c0_28, %c0_29], %30 {strides = array<i32>} : memref<2x128xf32, #tpu.memory_space<vmem>>, vector<2x128xf32>,
    %c0_30 = arith.constant 0 : index
    %c0_31 = arith.constant 0 : index
    %37 = vector.load %arg13[%c0_30, %c0_31] : memref<2x128xf32, #tpu.memory_space<vmem>>, vector<2x128xf32>
    tpu.vector_store %arg13[%c0_30, %c0_31], %35 {strides = array<i32>} : memref<2x128xf32, #tpu.memory_space<vmem>>, vector<2x128xf32>,
    return
  }
}

</mosaic_0001>

<llo_original>
// kernel: dann_forward.6
$region0: #{dann_forward.6}
  #allocation0 [shape = 'u32[]', space=smem, size = 0x4, offset = 0x4, fixed_abs, tag = 'smem constant byte address 0x4 - core index']
  #allocation1 [shape = 'u32[144,128]{1,0:T(1,128)}', space=vmem, size = 0x12000, scoped, tag = 'internal scratch']
  %s0 = inlined_call_operand.vmem [shape: bf16[2,4608], index: 0, kind: input, shape index: {}]
  %s1 = inlined_call_operand.vmem [shape: bf16[2,4608], index: 1, kind: input, shape index: {}]
  %s2 = inlined_call_operand.vmem [shape: bf16[2,4608], index: 2, kind: input, shape index: {}]
  %s3 = inlined_call_operand.vmem [shape: bf16[2,4608], index: 3, kind: input, shape index: {}]
  %s4 = inlined_call_operand.vmem [shape: bf16[2,4608], index: 4, kind: output, shape index: {}]
  %s5 = sld [smem:[#allocation0]]
  $region26: #{dann_forward.6} parent=0
    _
  %s7 = ssub.s32 1, %s5
  %s8 = scalar_select 0, %s7, %s5
  // Predicated region
  $region2: #{dann_forward.6} parent=0 // pred_check
    _
  $region3: #{dann_forward.6} parent=0 // pred_check_branch
    %10 = sbr.rel (0) target = $region5
  $region4: #{dann_forward.6} parent=0 // pred_region
    _
  $region5: #{dann_forward.6} parent=0 // pred_fallthru
    _
  // Predicated region
  $region6: #{dann_forward.6} parent=0 // pred_check
    _
  $region7: #{dann_forward.6} parent=0 // pred_check_branch
    %12 = sbr.rel (0) target = $region9
  $region8: #{dann_forward.6} parent=0 // pred_region
    _
  $region9: #{dann_forward.6} parent=0 // pred_fallthru
    _
  // Predicated region
  $region10: #{dann_forward.6} parent=0 // pred_check
    _
  $region11: #{dann_forward.6} parent=0 // pred_check_branch
    %14 = sbr.rel (0) target = $region13
  $region12: #{dann_forward.6} parent=0 // pred_region
    _
  $region13: #{dann_forward.6} parent=0 // pred_fallthru
    _
  // Predicated region
  $region14: #{dann_forward.6} parent=0 // pred_check
    _
  $region15: #{dann_forward.6} parent=0 // pred_check_branch
    %16 = sbr.rel (0) target = $region17
  $region16: #{dann_forward.6} parent=0 // pred_region
    _
  $region17: #{dann_forward.6} parent=0 // pred_fallthru
    _
  %v17 = vld [vmem:[%s0] sm:$0xff]
  %v18 = vld [vmem:[%s0 + $0x8] sm:$0xff]
  %v19 = vld [vmem:[%s0 + $0x10] sm:$0xff]
  %v20 = vld [vmem:[%s0 + $0x18] sm:$0xff]
  %v21 = vld [vmem:[%s0 + $0x20] sm:$0xf]
  %v22 = vld [vmem:[%s1] sm:$0xff]
  %v23 = vld [vmem:[%s1 + $0x8] sm:$0xff]
  %v24 = vld [vmem:[%s1 + $0x10] sm:$0xff]
  %v25 = vld [vmem:[%s1 + $0x18] sm:$0xff]
  %v26 = vld [vmem:[%s1 + $0x20] sm:$0xf]
  %v27 = vmax.bf16 %v17, %v22
  %v28 = vmax.bf16 %v18, %v23
  %v29 = vmax.bf16 %v19, %v24
  %v30 = vmax.bf16 %v20, %v25
  %v31 = vmax.bf16 %v21, %v26
  %v32 = vld [vmem:[%s2] sm:$0xff]
  %v33 = vld [vmem:[%s2 + $0x8] sm:$0xff]
  %v34 = vld [vmem:[%s2 + $0x10] sm:$0xff]
  %v35 = vld [vmem:[%s2 + $0x18] sm:$0xff]
  %v36 = vld [vmem:[%s2 + $0x20] sm:$0xf]
  %v37 = vld [vmem:[%s3] sm:$0xff]
  %v38 = vld [vmem:[%s3 + $0x8] sm:$0xff]
  %v39 = vld [vmem:[%s3 + $0x10] sm:$0xff]
  %v40 = vld [vmem:[%s3 + $0x18] sm:$0xff]
  %v41 = vld [vmem:[%s3 + $0x20] sm:$0xf]
  %v42 = vmax.bf16 %v32, %v37
  %v43 = vmax.bf16 %v33, %v38
  %v44 = vmax.bf16 %v34, %v39
  %v45 = vmax.bf16 %v35, %v40
  %v46 = vmax.bf16 %v36, %v41
  %v47 = vmax.bf16 %v27, %v42
  %v48 = vmax.bf16 %v28, %v43
  %v49 = vmax.bf16 %v29, %v44
  %v50 = vmax.bf16 %v30, %v45
  %v51 = vmax.bf16 %v31, %v46
  %52 = vst [vmem:[%s4] sm:$0xff] %v47
  %53 = vst [vmem:[%s4 + $0x8] sm:$0xff] %v48
  %54 = vst [vmem:[%s4 + $0x10] sm:$0xff] %v49
  %55 = vst [vmem:[%s4 + $0x18] sm:$0xff] %v50
  %56 = vst [vmem:[%s4 + $0x20] sm:$0xf] %v51
  // Predicated region
  $region18: #{dann_forward.6} parent=0 // pred_check
    _
  $region19: #{dann_forward.6} parent=0 // pred_check_branch
    %58 = sbr.rel (0) target = $region21
  $region20: #{dann_forward.6} parent=0 // pred_region
    _
  $region21: #{dann_forward.6} parent=0 // pred_fallthru
    _
  // Predicated region
  $region22: #{dann_forward.6} parent=0 // pred_check
    _
  $region23: #{dann_forward.6} parent=0 // pred_check_branch
    %60 = sbr.rel (0) target = $region25
  $region24: #{dann_forward.6} parent=0 // pred_region
    _
  $region25: #{dann_forward.6} parent=0 // pred_fallthru
    _

// kernel: dann_forward.5
$region0: #{dann_forward.5}
  #allocation0 [shape = 'u32[]', space=smem, size = 0x4, offset = 0x4, fixed_abs, tag = 'smem constant byte address 0x4 - core index']
  #allocation1 [shape = 'u32[144,128]{1,0:T(1,128)}', space=vmem, size = 0x12000, scoped, tag = 'internal scratch']
  %s0 = inlined_call_operand.vmem [shape: bf16[1152,32], index: 0, kind: input, shape index: {}]
  %s1 = inlined_call_operand.vmem [shape: bf16[32,32], index: 1, kind: input, shape index: {}]
  %s2 = inlined_call_operand.vmem [shape: f32[1,32], index: 2, kind: input, shape index: {}]
  %s3 = inlined_call_operand.vmem [shape: bf16[1152,32], index: 3, kind: output, shape index: {}]
  %s4 = sld [smem:[#allocation0]]
  $region45: #{dann_forward.5} parent=0
    _
  %s6 = ssub.s32 1, %s4
  %s7 = scalar_select 0, %s6, %s4
  loop: start=0, step=1, limit=5
  $region2: #{dann_forward.5} parent=0 // loop_pre_header
    _
  $region3: #{dann_forward.5} parent=0 // loop_header
    %s9 = sphi 0, %s13
    %p10 = scmp.ge.s32.totalorder %s9, 5
    %s19 = sphi 0, %s21
    %s22 = sphi 0, %s19
    %s23 = sphi 0, %s22
    %s39 = sphi 0, %s23
    %s43 = sphi 0, %s43
    %s45 = sphi 0, %s43
    %s46 = sphi 0, %s45
    %s60 = sphi 0, %s46
    %s64 = sphi 0, %s64
    %s66 = sphi 0, %s64
    %s67 = sphi 0, %s66
    %s81 = sphi 0, %s67
    %s87 = sphi 0, %s89
    %s90 = sphi 0, %s87
    %s91 = sphi 0, %s90
    %s107 = sphi 0, %s91
  $region4: #{dann_forward.5} parent=0 // loop_header_branch
    %12 = sbr.rel (%p10) target = $region8
  $region5: #{dann_forward.5} parent=0 // loop_body
    %s14 = ssub.s32 %s9, 1
    %s15 = ssub.s32 %s9, 2
    %s16 = sadd.s32 %s9, 1
    %s17 = ssub.s32 %s9, %s16
    %p18 = scmp.eq.s32.totalorder %s17, 0
    %s20 = sadd.s32 %s19, 1
    %s21 = scalar_select %p18, %s19, %s20
    %p24 = pneg %p18
    %p25 = scmp.eq.s32.totalorder %s9, 2
    %p26 = por %p24, %p25
    %p27 = scmp.ne.s32.totalorder %s19, %s22
    %p28 = scmp.eq.s32.totalorder %s9, 0
    %p29 = por %p27, %p28
    %p30 = scmp.ne.s32.totalorder %s19, %s22
    %p31 = scmp.eq.s32.totalorder %s14, 2
    %p32 = por %p30, %p31
    %p33 = scmp.ne.s32.totalorder %s22, %s23
    %p34 = scmp.eq.s32.totalorder %s14, 0
    %p35 = por %p33, %p34
    %p36 = scmp.ne.s32.totalorder %s22, %s23
    %p37 = scmp.eq.s32.totalorder %s15, 2
    %p38 = por %p36, %p37
    %p40 = scmp.ne.s32.totalorder %s23, %s39
    %p41 = scmp.eq.s32.totalorder %s15, 0
    %p42 = por %p40, %p41
    %s44 = sadd.s32 %s43, 1
    %p47 = scmp.eq.s32.totalorder %s9, 2
    %p48 = scmp.ne.s32.totalorder %s43, %s45
    %p49 = scmp.eq.s32.totalorder %s9, 0
    %p50 = por %p48, %p49
    %p51 = scmp.ne.s32.totalorder %s43, %s45
    %p52 = scmp.eq.s32.totalorder %s14, 2
    %p53 = por %p51, %p52
    %p54 = scmp.ne.s32.totalorder %s45, %s46
    %p55 = scmp.eq.s32.totalorder %s14, 0
    %p56 = por %p54, %p55
    %p57 = scmp.ne.s32.totalorder %s45, %s46
    %p58 = scmp.eq.s32.totalorder %s15, 2
    %p59 = por %p57, %p58
    %p61 = scmp.ne.s32.totalorder %s46, %s60
    %p62 = scmp.eq.s32.totalorder %s15, 0
    %p63 = por %p61, %p62
    %s65 = sadd.s32 %s64, 1
    %p68 = scmp.eq.s32.totalorder %s9, 2
    %p69 = scmp.ne.s32.totalorder %s64, %s66
    %p70 = scmp.eq.s32.totalorder %s9, 0
    %p71 = por %p69, %p70
    %p72 = scmp.ne.s32.totalorder %s64, %s66
    %p73 = scmp.eq.s32.totalorder %s14, 2
    %p74 = por %p72, %p73
    %p75 = scmp.ne.s32.totalorder %s66, %s67
    %p76 = scmp.eq.s32.totalorder %s14, 0
    %p77 = por %p75, %p76
    %p78 = scmp.ne.s32.totalorder %s66, %s67
    %p79 = scmp.eq.s32.totalorder %s15, 2
    %p80 = por %p78, %p79
    %p82 = scmp.ne.s32.totalorder %s67, %s81
    %p83 = scmp.eq.s32.totalorder %s15, 0
    %p84 = por %p82, %p83
    %s85 = ssub.s32 %s9, %s16
    %p86 = scmp.eq.s32.totalorder %s85, 0
    %s88 = sadd.s32 %s87, 1
    %s89 = scalar_select %p86, %s87, %s88
    %p92 = pneg %p86
    %p93 = scmp.eq.s32.totalorder %s9, 2
    %p94 = por %p92, %p93
    %p95 = scmp.ne.s32.totalorder %s87, %s90
    %p96 = scmp.eq.s32.totalorder %s9, 0
    %p97 = por %p95, %p96
    %p98 = scmp.ne.s32.totalorder %s87, %s90
    %p99 = scmp.eq.s32.totalorder %s14, 2
    %p100 = por %p98, %p99
    %p101 = scmp.ne.s32.totalorder %s90, %s91
    %p102 = scmp.eq.s32.totalorder %s14, 0
    %p103 = por %p101, %p102
    %p104 = scmp.ne.s32.totalorder %s90, %s91
    %p105 = scmp.eq.s32.totalorder %s15, 2
    %p106 = por %p104, %p105
    %p108 = scmp.ne.s32.totalorder %s91, %s107
    %p109 = scmp.eq.s32.totalorder %s15, 0
    %p110 = por %p108, %p109
    %p111 = scmp.le.s32.totalorder 1, %s9
    %p112 = scmp.lt.s32.totalorder %s9, 4
    %p113 = pnand %p111, %p112
    %p114 = pneg %p113
    // Predicated region
    $region9: #{dann_forward.5} parent=5 // pred_check
      _
    $region10: #{dann_forward.5} parent=5 // pred_check_branch
      %116 = sbr.rel (%p113) target = $region12
    $region11: #{dann_forward.5} parent=5 // pred_region
      %s117 = ssub.s32 %s9, 1
      // Predicated region
      $region13: #{dann_forward.5} parent=11 // pred_check
        %p118 = pneg %p56
      $region14: #{dann_forward.5} parent=11 // pred_check_branch
        %120 = sbr.rel (%p118) target = $region16
      $region15: #{dann_forward.5} parent=11 // pred_region
        _
      $region16: #{dann_forward.5} parent=11 // pred_fallthru
        _
      // Predicated region
      $region17: #{dann_forward.5} parent=11 // pred_check
        %p121 = pneg %p77
      $region18: #{dann_forward.5} parent=11 // pred_check_branch
        %123 = sbr.rel (%p121) target = $region20
      $region19: #{dann_forward.5} parent=11 // pred_region
        _
      $region20: #{dann_forward.5} parent=11 // pred_fallthru
        _
    $region12: #{dann_forward.5} parent=5 // pred_fallthru
      _
    %p124 = scmp.lt.s32.totalorder %s9, 3
    // Predicated region
    $region21: #{dann_forward.5} parent=5 // pred_check
      %p125 = pneg %p124
    $region22: #{dann_forward.5} parent=5 // pred_check_branch
      %127 = sbr.rel (%p125) target = $region24
    $region23: #{dann_forward.5} parent=5 // pred_region
      // Predicated region
      $region25: #{dann_forward.5} parent=23 // pred_check
        %p128 = pneg %p29
      $region26: #{dann_forward.5} parent=23 // pred_check_branch
        %130 = sbr.rel (%p128) target = $region28
      $region27: #{dann_forward.5} parent=23 // pred_region
        %s131 = smul.u32 48, %s9
        %p132 = scmp.lt.s32.totalorder %s131, 143
        %s133 = scalar_select %p132, %s131, 143
        %s134 = smul.addr %s133, 4
        %s135 = scalar_lea.vmem %s0, %s134
        %s136 = smul.u32 48, %s9
      $region28: #{dann_forward.5} parent=23 // pred_fallthru
        _
    $region24: #{dann_forward.5} parent=5 // pred_fallthru
      _
    %p137 = scmp.le.s32.totalorder 1, %s9
    %p138 = scmp.lt.s32.totalorder %s9, 4
    %p139 = pnand %p137, %p138
    %p140 = pneg %p139
    // Predicated region
    $region29: #{dann_forward.5} parent=5 // pred_check
      _
    $region30: #{dann_forward.5} parent=5 // pred_check_branch
      %142 = sbr.rel (%p139) target = $region32
    $region31: #{dann_forward.5} parent=5 // pred_region
      %s143 = ssub.s32 %s9, 1
      %s144 = smul.u32 48, %s14
      %p145 = scmp.lt.s32.totalorder %s144, 143
      %s146 = scalar_select %p145, %s144, 143
      %s147 = smul.addr %s146, 4
      %s148 = scalar_lea.vmem %s0, %s147
      %p149 = pneg %p35
      %p150 = pneg %p32
      %p151 = pneg %p56
      %p152 = pneg %p53
      %p153 = pneg %p77
      %p154 = pneg %p74
      %p155 = pneg %p103
      %p156 = pneg %p100
      %s157 = smul.u32 48, %s14
      %p158 = scmp.lt.s32.totalorder %s157, 143
      %s159 = scalar_select %p158, %s157, 143
      %s160 = smul.addr %s159, 4
      %s161 = scalar_lea.vmem %s3, %s160
      %s162 = smul.u32 48, %s14
      %p163 = scmp.lt.s32.totalorder %s162, 143
      %s164 = scalar_select %p163, %s162, 143
      %s165 = smul.addr %s164, 4
      %s166 = scalar_lea.vmem %s0, %s165
      %s167 = smul.u32 48, %s14
      %s168 = smul.u32 48, %s14
      %p169 = scmp.lt.s32.totalorder %s168, 143
      %s170 = scalar_select %p169, %s168, 143
      %s171 = smul.addr %s170, 4
      %s172 = scalar_lea.vmem %s3, %s171
      %s173 = smul.u32 48, %s14
      %v175 = vld [vmem:[%s166] sm:$0xf]
      %v176 = vld [vmem:[%s166 + $0x4] sm:$0xf]
      %v177 = vld [vmem:[%s166 + $0x8] sm:$0xf]
      %v178 = vld [vmem:[%s166 + $0xc] sm:$0xf]
      %v179 = vld [vmem:[%s166 + $0x10] sm:$0xf]
      %v180 = vld [vmem:[%s166 + $0x14] sm:$0xf]
      %v181 = vld [vmem:[%s166 + $0x18] sm:$0xf]
      %v182 = vld [vmem:[%s166 + $0x1c] sm:$0xf]
      %v183 = vld [vmem:[%s166 + $0x20] sm:$0xf]
      %v184 = vld [vmem:[%s166 + $0x24] sm:$0xf]
      %v185 = vld [vmem:[%s166 + $0x28] sm:$0xf]
      %v186 = vld [vmem:[%s166 + $0x2c] sm:$0xf]
      %v187 = vld [vmem:[%s166 + $0x30] sm:$0xf]
      %v188 = vld [vmem:[%s166 + $0x34] sm:$0xf]
      %v189 = vld [vmem:[%s166 + $0x38] sm:$0xf]
      %v190 = vld [vmem:[%s166 + $0x3c] sm:$0xf]
      %v191 = vld [vmem:[%s166 + $0x40] sm:$0xf]
      %v192 = vld [vmem:[%s166 + $0x44] sm:$0xf]
      %v193 = vld [vmem:[%s166 + $0x48] sm:$0xf]
      %v194 = vld [vmem:[%s166 + $0x4c] sm:$0xf]
      %v195 = vld [vmem:[%s166 + $0x50] sm:$0xf]
      %v196 = vld [vmem:[%s166 + $0x54] sm:$0xf]
      %v197 = vld [vmem:[%s166 + $0x58] sm:$0xf]
      %v198 = vld [vmem:[%s166 + $0x5c] sm:$0xf]
      %v199 = vld [vmem:[%s166 + $0x60] sm:$0xf]
      %v200 = vld [vmem:[%s166 + $0x64] sm:$0xf]
      %v201 = vld [vmem:[%s166 + $0x68] sm:$0xf]
      %v202 = vld [vmem:[%s166 + $0x6c] sm:$0xf]
      %v203 = vld [vmem:[%s166 + $0x70] sm:$0xf]
      %v204 = vld [vmem:[%s166 + $0x74] sm:$0xf]
      %v205 = vld [vmem:[%s166 + $0x78] sm:$0xf]
      %v206 = vld [vmem:[%s166 + $0x7c] sm:$0xf]
      %v207 = vld [vmem:[%s166 + $0x80] sm:$0xf]
      %v208 = vld [vmem:[%s166 + $0x84] sm:$0xf]
      %v209 = vld [vmem:[%s166 + $0x88] sm:$0xf]
      %v210 = vld [vmem:[%s166 + $0x8c] sm:$0xf]
      %v211 = vld [vmem:[%s166 + $0x90] sm:$0xf]
      %v212 = vld [vmem:[%s166 + $0x94] sm:$0xf]
      %v213 = vld [vmem:[%s166 + $0x98] sm:$0xf]
      %v214 = vld [vmem:[%s166 + $0x9c] sm:$0xf]
      %v215 = vld [vmem:[%s166 + $0xa0] sm:$0xf]
      %v216 = vld [vmem:[%s166 + $0xa4] sm:$0xf]
      %v217 = vld [vmem:[%s166 + $0xa8] sm:$0xf]
      %v218 = vld [vmem:[%s166 + $0xac] sm:$0xf]
      %v219 = vld [vmem:[%s166 + $0xb0] sm:$0xf]
      %v220 = vld [vmem:[%s166 + $0xb4] sm:$0xf]
      %v221 = vld [vmem:[%s166 + $0xb8] sm:$0xf]
      %v222 = vld [vmem:[%s166 + $0xbc] sm:$0xf]
      %v223 = vld [vmem:[%s1] sm:$0xf]
      %v224 = vld [vmem:[%s1 + $0x4] sm:$0xf]
      %v225 = vld [vmem:[%s1 + $0x8] sm:$0xf]
      %v226 = vld [vmem:[%s1 + $0xc] sm:$0xf]
      %v227 = vld [vmem:[%s2] sm:$0x1]
      %v229 = vlaneseq
      %v230 = vshrl.u32 %v229, 7
      %v231 = vsub.s32 0, %v230
      %v232 = vrot.slane %v227, %v231
      %v282 = vunpack.c.l.b16 %v175
      %v283 = vunpack.c.l.b16 %v176
      %v284 = vunpack.c.l.b16 %v177
      %v285 = vunpack.c.l.b16 %v178
      %v286 = vunpack.c.l.b16 %v179
      %v287 = vunpack.c.l.b16 %v180
      %v288 = vunpack.c.l.b16 %v181
      %v289 = vunpack.c.l.b16 %v182
      %v290 = vunpack.c.l.b16 %v183
      %v291 = vunpack.c.l.b16 %v184
      %v292 = vunpack.c.l.b16 %v185
      %v293 = vunpack.c.l.b16 %v186
      %v294 = vunpack.c.l.b16 %v187
      %v295 = vunpack.c.l.b16 %v188
      %v296 = vunpack.c.l.b16 %v189
      %v297 = vunpack.c.l.b16 %v190
      %v298 = vunpack.c.l.b16 %v191
      %v299 = vunpack.c.l.b16 %v192
      %v300 = vunpack.c.l.b16 %v193
      %v301 = vunpack.c.l.b16 %v194
      %v302 = vunpack.c.l.b16 %v195
      %v303 = vunpack.c.l.b16 %v196
      %v304 = vunpack.c.l.b16 %v197
      %v305 = vunpack.c.l.b16 %v198
      %v306 = vunpack.c.l.b16 %v199
      %v307 = vunpack.c.l.b16 %v200
      %v308 = vunpack.c.l.b16 %v201
      %v309 = vunpack.c.l.b16 %v202
      %v310 = vunpack.c.l.b16 %v203
      %v311 = vunpack.c.l.b16 %v204
      %v312 = vunpack.c.l.b16 %v205
      %v313 = vunpack.c.l.b16 %v206
      %v314 = vunpack.c.l.b16 %v207
      %v315 = vunpack.c.l.b16 %v208
      %v316 = vunpack.c.l.b16 %v209
      %v317 = vunpack.c.l.b16 %v210
      %v318 = vunpack.c.l.b16 %v211
      %v319 = vunpack.c.l.b16 %v212
      %v320 = vunpack.c.l.b16 %v213
      %v321 = vunpack.c.l.b16 %v214
      %v322 = vunpack.c.l.b16 %v215
      %v323 = vunpack.c.l.b16 %v216
      %v324 = vunpack.c.l.b16 %v217
      %v325 = vunpack.c.l.b16 %v218
      %v326 = vunpack.c.l.b16 %v219
      %v327 = vunpack.c.l.b16 %v220
      %v328 = vunpack.c.l.b16 %v221
      %v329 = vunpack.c.l.b16 %v222
      %v330 = vpack.c.b16 %v283, %v282
      %v331 = vpack.c.b16 %v285, %v284
      %v332 = vpack.c.b16 %v287, %v286
      %v333 = vpack.c.b16 %v289, %v288
      %v334 = vpack.c.b16 %v291, %v290
      %v335 = vpack.c.b16 %v293, %v292
      %v336 = vpack.c.b16 %v295, %v294
      %v337 = vpack.c.b16 %v297, %v296
      %v338 = vpack.c.b16 %v299, %v298
      %v339 = vpack.c.b16 %v301, %v300
      %v340 = vpack.c.b16 %v303, %v302
      %v341 = vpack.c.b16 %v305, %v304
      %v342 = vpack.c.b16 %v307, %v306
      %v343 = vpack.c.b16 %v309, %v308
      %v344 = vpack.c.b16 %v311, %v310
      %v345 = vpack.c.b16 %v313, %v312
      %v346 = vpack.c.b16 %v315, %v314
      %v347 = vpack.c.b16 %v317, %v316
      %v348 = vpack.c.b16 %v319, %v318
      %v349 = vpack.c.b16 %v321, %v320
      %v350 = vpack.c.b16 %v323, %v322
      %v351 = vpack.c.b16 %v325, %v324
      %v352 = vpack.c.b16 %v327, %v326
      %v353 = vpack.c.b16 %v329, %v328
      %v358 = vunpack.c.l.b16 %v223
      %v359 = vunpack.c.l.b16 %v224
      %v360 = vunpack.c.l.b16 %v225
      %v361 = vunpack.c.l.b16 %v226
      %v362 = vpack.c.b16 %v359, %v358
      %v363 = vpack.c.b16 %v361, %v360
      %vm366 = vcmask 261120
      %v368 = vsel %vm366, %v330, 0
      %v371 = vsel %vm366, %v331, 0
      %v374 = vsel %vm366, %v332, 0
      %v377 = vsel %vm366, %v333, 0
      %v380 = vsel %vm366, %v334, 0
      %v383 = vsel %vm366, %v335, 0
      %v386 = vsel %vm366, %v336, 0
      %v389 = vsel %vm366, %v337, 0
      %v392 = vsel %vm366, %v338, 0
      %v395 = vsel %vm366, %v339, 0
      %v398 = vsel %vm366, %v340, 0
      %v401 = vsel %vm366, %v341, 0
      %v404 = vsel %vm366, %v342, 0
      %v407 = vsel %vm366, %v343, 0
      %v410 = vsel %vm366, %v344, 0
      %v413 = vsel %vm366, %v345, 0
      %v416 = vsel %vm366, %v346, 0
      %v419 = vsel %vm366, %v347, 0
      %v422 = vsel %vm366, %v348, 0
      %v425 = vsel %vm366, %v349, 0
      %v428 = vsel %vm366, %v350, 0
      %v431 = vsel %vm366, %v351, 0
      %v434 = vsel %vm366, %v352, 0
      %v437 = vsel %vm366, %v353, 0
      %439 = vmatprep.subr.bf16.mxu0 0
      %440 = vmatpush1.bf16.msra.mxu0 %v362
      %441 = vmatprep.subr.bf16.mxu0 0
      %442 = vmatpush1.bf16.msra.mxu0 %v363
      %443 = vmatprep.subr.bf16.mxu0 0
      %444 = vmatpush1.bf16.msra.mxu0 0
      %445 = vmatprep.subr.bf16.mxu0 0
      %446 = vmatpush1.bf16.msra.mxu0 0
      %447 = vmatprep.subr.bf16.mxu0 0
      %448 = vmatpush1.bf16.msra.mxu0 0
      %449 = vmatprep.subr.bf16.mxu0 0
      %450 = vmatpush1.bf16.msra.mxu0 0
      %451 = vmatprep.subr.bf16.mxu0 0
      %452 = vmatpush1.bf16.msra.mxu0 0
      %453 = vmatprep.subr.bf16.mxu0 0
      %454 = vmatpush1.bf16.msra.mxu0 0
      %455 = vmatprep.subr.bf16.mxu0 0
      %456 = vmatpush1.bf16.msra.mxu0 0
      %457 = vmatprep.subr.bf16.mxu0 0
      %458 = vmatpush1.bf16.msra.mxu0 0
      %459 = vmatprep.subr.bf16.mxu0 0
      %460 = vmatpush1.bf16.msra.mxu0 0
      %461 = vmatprep.subr.bf16.mxu0 0
      %462 = vmatpush1.bf16.msra.mxu0 0
      %463 = vmatprep.subr.bf16.mxu0 0
      %464 = vmatpush1.bf16.msra.mxu0 0
      %465 = vmatprep.subr.bf16.mxu0 0
      %466 = vmatpush1.bf16.msra.mxu0 0
      %467 = vmatprep.subr.bf16.mxu0 0
      %468 = vmatpush1.bf16.msra.mxu0 0
      %469 = vmatprep.subr.bf16.mxu0 0
      %470 = vmatpush1.bf16.msra.mxu0 0
      %471 = vmatprep.mubr.bf16.mxu0 0
      %472 = vmatmul.mubr.bf16.gmra.mrb[0].mxu0 %v368
      %v473 = vpop.f32.mrb[0].mxu0
      %v474 = vadd.f32 %v232, %v473
      %v475 = vpop.f32.mrb[0].mxu0
      %v476 = vpop.f32.mrb[0].mxu0
      %v477 = vadd.f32 %v232, %v476
      %v478 = vpop.f32.mrb[0].mxu0
      %479 = vmatprep.mubr.bf16.mxu0 0
      %480 = vmatmul.mubr.bf16.gmra.mrb[0].mxu0 %v371
      %v481 = vpop.f32.mrb[0].mxu0
      %v482 = vadd.f32 %v232, %v481
      %v483 = vpop.f32.mrb[0].mxu0
      %v484 = vpop.f32.mrb[0].mxu0
      %v485 = vadd.f32 %v232, %v484
      %v486 = vpop.f32.mrb[0].mxu0
      %487 = vmatprep.mubr.bf16.mxu0 0
      %488 = vmatmul.mubr.bf16.gmra.mrb[0].mxu0 %v374
      %v489 = vpop.f32.mrb[0].mxu0
      %v490 = vadd.f32 %v232, %v489
      %v491 = vpop.f32.mrb[0].mxu0
      %v492 = vpop.f32.mrb[0].mxu0
      %v493 = vadd.f32 %v232, %v492
      %v494 = vpop.f32.mrb[0].mxu0
      %495 = vmatprep.mubr.bf16.mxu0 0
      %496 = vmatmul.mubr.bf16.gmra.mrb[0].mxu0 %v377
      %v497 = vpop.f32.mrb[0].mxu0
      %v498 = vadd.f32 %v232, %v497
      %v499 = vpop.f32.mrb[0].mxu0
      %v500 = vpop.f32.mrb[0].mxu0
      %v501 = vadd.f32 %v232, %v500
      %v502 = vpop.f32.mrb[0].mxu0
      %503 = vmatprep.mubr.bf16.mxu0 0
      %504 = vmatmul.mubr.bf16.gmra.mrb[0].mxu0 %v380
      %v505 = vpop.f32.mrb[0].mxu0
      %v506 = vadd.f32 %v232, %v505
      %v507 = vpop.f32.mrb[0].mxu0
      %v508 = vpop.f32.mrb[0].mxu0
      %v509 = vadd.f32 %v232, %v508
      %v510 = vpop.f32.mrb[0].mxu0
      %511 = vmatprep.mubr.bf16.mxu0 0
      %512 = vmatmul.mubr.bf16.gmra.mrb[0].mxu0 %v383
      %v513 = vpop.f32.mrb[0].mxu0
      %v514 = vadd.f32 %v232, %v513
      %v515 = vpop.f32.mrb[0].mxu0
      %v516 = vpop.f32.mrb[0].mxu0
      %v517 = vadd.f32 %v232, %v516
      %v518 = vpop.f32.mrb[0].mxu0
      %519 = vmatprep.mubr.bf16.mxu0 0
      %520 = vmatmul.mubr.bf16.gmra.mrb[0].mxu0 %v386
      %v521 = vpop.f32.mrb[0].mxu0
      %v522 = vadd.f32 %v232, %v521
      %v523 = vpop.f32.mrb[0].mxu0
      %v524 = vpop.f32.mrb[0].mxu0
      %v525 = vadd.f32 %v232, %v524
      %v526 = vpop.f32.mrb[0].mxu0
      %527 = vmatprep.mubr.bf16.mxu0 0
      %528 = vmatmul.mubr.bf16.gmra.mrb[0].mxu0 %v389
      %v529 = vpop.f32.mrb[0].mxu0
      %v530 = vadd.f32 %v232, %v529
      %v531 = vpop.f32.mrb[0].mxu0
      %v532 = vpop.f32.mrb[0].mxu0
      %v533 = vadd.f32 %v232, %v532
      %v534 = vpop.f32.mrb[0].mxu0
      %535 = vmatprep.mubr.bf16.mxu0 0
      %536 = vmatmul.mubr.bf16.gmra.mrb[0].mxu0 %v392
      %v537 = vpop.f32.mrb[0].mxu0
      %v538 = vadd.f32 %v232, %v537
      %v539 = vpop.f32.mrb[0].mxu0
      %v540 = vpop.f32.mrb[0].mxu0
      %v541 = vadd.f32 %v232, %v540
      %v542 = vpop.f32.mrb[0].mxu0
      %543 = vmatprep.mubr.bf16.mxu0 0
      %544 = vmatmul.mubr.bf16.gmra.mrb[0].mxu0 %v395
      %v545 = vpop.f32.mrb[0].mxu0
      %v546 = vadd.f32 %v232, %v545
      %v547 = vpop.f32.mrb[0].mxu0
      %v548 = vpop.f32.mrb[0].mxu0
      %v549 = vadd.f32 %v232, %v548
      %v550 = vpop.f32.mrb[0].mxu0
      %551 = vmatprep.mubr.bf16.mxu0 0
      %552 = vmatmul.mubr.bf16.gmra.mrb[0].mxu0 %v398
      %v553 = vpop.f32.mrb[0].mxu0
      %v554 = vadd.f32 %v232, %v553
      %v555 = vpop.f32.mrb[0].mxu0
      %v556 = vpop.f32.mrb[0].mxu0
      %v557 = vadd.f32 %v232, %v556
      %v558 = vpop.f32.mrb[0].mxu0
      %559 = vmatprep.mubr.bf16.mxu0 0
      %560 = vmatmul.mubr.bf16.gmra.mrb[0].mxu0 %v401
      %v561 = vpop.f32.mrb[0].mxu0
      %v562 = vadd.f32 %v232, %v561
      %v563 = vpop.f32.mrb[0].mxu0
      %v564 = vpop.f32.mrb[0].mxu0
      %v565 = vadd.f32 %v232, %v564
      %v566 = vpop.f32.mrb[0].mxu0
      %567 = vmatprep.mubr.bf16.mxu0 0
      %568 = vmatmul.mubr.bf16.gmra.mrb[0].mxu0 %v404
      %v569 = vpop.f32.mrb[0].mxu0
      %v570 = vadd.f32 %v232, %v569
      %v571 = vpop.f32.mrb[0].mxu0
      %v572 = vpop.f32.mrb[0].mxu0
      %v573 = vadd.f32 %v232, %v572
      %v574 = vpop.f32.mrb[0].mxu0
      %575 = vmatprep.mubr.bf16.mxu0 0
      %576 = vmatmul.mubr.bf16.gmra.mrb[0].mxu0 %v407
      %v577 = vpop.f32.mrb[0].mxu0
      %v578 = vadd.f32 %v232, %v577
      %v579 = vpop.f32.mrb[0].mxu0
      %v580 = vpop.f32.mrb[0].mxu0
      %v581 = vadd.f32 %v232, %v580
      %v582 = vpop.f32.mrb[0].mxu0
      %583 = vmatprep.mubr.bf16.mxu0 0
      %584 = vmatmul.mubr.bf16.gmra.mrb[0].mxu0 %v410
      %v585 = vpop.f32.mrb[0].mxu0
      %v586 = vadd.f32 %v232, %v585
      %v587 = vpop.f32.mrb[0].mxu0
      %v588 = vpop.f32.mrb[0].mxu0
      %v589 = vadd.f32 %v232, %v588
      %v590 = vpop.f32.mrb[0].mxu0
      %591 = vmatprep.mubr.bf16.mxu0 0
      %592 = vmatmul.mubr.bf16.gmra.mrb[0].mxu0 %v413
      %v593 = vpop.f32.mrb[0].mxu0
      %v594 = vadd.f32 %v232, %v593
      %v595 = vpop.f32.mrb[0].mxu0
      %v596 = vpop.f32.mrb[0].mxu0
      %v597 = vadd.f32 %v232, %v596
      %v598 = vpop.f32.mrb[0].mxu0
      %599 = vmatprep.mubr.bf16.mxu0 0
      %600 = vmatmul.mubr.bf16.gmra.mrb[0].mxu0 %v416
      %v601 = vpop.f32.mrb[0].mxu0
      %v602 = vadd.f32 %v232, %v601
      %v603 = vpop.f32.mrb[0].mxu0
      %v604 = vpop.f32.mrb[0].mxu0
      %v605 = vadd.f32 %v232, %v604
      %v606 = vpop.f32.mrb[0].mxu0
      %607 = vmatprep.mubr.bf16.mxu0 0
      %608 = vmatmul.mubr.bf16.gmra.mrb[0].mxu0 %v419
      %v609 = vpop.f32.mrb[0].mxu0
      %v610 = vadd.f32 %v232, %v609
      %v611 = vpop.f32.mrb[0].mxu0
      %v612 = vpop.f32.mrb[0].mxu0
      %v613 = vadd.f32 %v232, %v612
      %v614 = vpop.f32.mrb[0].mxu0
      %615 = vmatprep.mubr.bf16.mxu0 0
      %616 = vmatmul.mubr.bf16.gmra.mrb[0].mxu0 %v422
      %v617 = vpop.f32.mrb[0].mxu0
      %v618 = vadd.f32 %v232, %v617
      %v619 = vpop.f32.mrb[0].mxu0
      %v620 = vpop.f32.mrb[0].mxu0
      %v621 = vadd.f32 %v232, %v620
      %v622 = vpop.f32.mrb[0].mxu0
      %623 = vmatprep.mubr.bf16.mxu0 0
      %624 = vmatmul.mubr.bf16.gmra.mrb[0].mxu0 %v425
      %v625 = vpop.f32.mrb[0].mxu0
      %v626 = vadd.f32 %v232, %v625
      %v627 = vpop.f32.mrb[0].mxu0
      %v628 = vpop.f32.mrb[0].mxu0
      %v629 = vadd.f32 %v232, %v628
      %v630 = vpop.f32.mrb[0].mxu0
      %631 = vmatprep.mubr.bf16.mxu0 0
      %632 = vmatmul.mubr.bf16.gmra.mrb[0].mxu0 %v428
      %v633 = vpop.f32.mrb[0].mxu0
      %v634 = vadd.f32 %v232, %v633
      %v635 = vpop.f32.mrb[0].mxu0
      %v636 = vpop.f32.mrb[0].mxu0
      %v637 = vadd.f32 %v232, %v636
      %v638 = vpop.f32.mrb[0].mxu0
      %639 = vmatprep.mubr.bf16.mxu0 0
      %640 = vmatmul.mubr.bf16.gmra.mrb[0].mxu0 %v431
      %v641 = vpop.f32.mrb[0].mxu0
      %v642 = vadd.f32 %v232, %v641
      %v643 = vpop.f32.mrb[0].mxu0
      %v644 = vpop.f32.mrb[0].mxu0
      %v645 = vadd.f32 %v232, %v644
      %v646 = vpop.f32.mrb[0].mxu0
      %647 = vmatprep.mubr.bf16.mxu0 0
      %648 = vmatmul.mubr.bf16.gmra.mrb[0].mxu0 %v434
      %v649 = vpop.f32.mrb[0].mxu0
      %v650 = vadd.f32 %v232, %v649
      %v651 = vpop.f32.mrb[0].mxu0
      %v652 = vpop.f32.mrb[0].mxu0
      %v653 = vadd.f32 %v232, %v652
      %v654 = vpop.f32.mrb[0].mxu0
      %655 = vmatprep.mubr.bf16.mxu0 0
      %656 = vmatmul.mubr.bf16.gmra.mrb[0].mxu0 %v437
      %v657 = vpop.f32.mrb[0].mxu0
      %v658 = vadd.f32 %v232, %v657
      %v659 = vpop.f32.mrb[0].mxu0
      %v660 = vpop.f32.mrb[0].mxu0
      %v661 = vadd.f32 %v232, %v660
      %v662 = vpop.f32.mrb[0].mxu0
      %663 = vdwg.mxu0
      %v664 = vmax.f32 %v474, 0.0
      %v665 = vmax.f32 %v477, 0.0
      %v666 = vmax.f32 %v482, 0.0
      %v667 = vmax.f32 %v485, 0.0
      %v668 = vmax.f32 %v490, 0.0
      %v669 = vmax.f32 %v493, 0.0
      %v670 = vmax.f32 %v498, 0.0
      %v671 = vmax.f32 %v501, 0.0
      %v672 = vmax.f32 %v506, 0.0
      %v673 = vmax.f32 %v509, 0.0
      %v674 = vmax.f32 %v514, 0.0
      %v675 = vmax.f32 %v517, 0.0
      %v676 = vmax.f32 %v522, 0.0
      %v677 = vmax.f32 %v525, 0.0
      %v678 = vmax.f32 %v530, 0.0
      %v679 = vmax.f32 %v533, 0.0
      %v680 = vmax.f32 %v538, 0.0
      %v681 = vmax.f32 %v541, 0.0
      %v682 = vmax.f32 %v546, 0.0
      %v683 = vmax.f32 %v549, 0.0
      %v684 = vmax.f32 %v554, 0.0
      %v685 = vmax.f32 %v557, 0.0
      %v686 = vmax.f32 %v562, 0.0
      %v687 = vmax.f32 %v565, 0.0
      %v688 = vmax.f32 %v570, 0.0
      %v689 = vmax.f32 %v573, 0.0
      %v690 = vmax.f32 %v578, 0.0
      %v691 = vmax.f32 %v581, 0.0
      %v692 = vmax.f32 %v586, 0.0
      %v693 = vmax.f32 %v589, 0.0
      %v694 = vmax.f32 %v594, 0.0
      %v695 = vmax.f32 %v597, 0.0
      %v696 = vmax.f32 %v602, 0.0
      %v697 = vmax.f32 %v605, 0.0
      %v698 = vmax.f32 %v610, 0.0
      %v699 = vmax.f32 %v613, 0.0
      %v700 = vmax.f32 %v618, 0.0
      %v701 = vmax.f32 %v621, 0.0
      %v702 = vmax.f32 %v626, 0.0
      %v703 = vmax.f32 %v629, 0.0
      %v704 = vmax.f32 %v634, 0.0
      %v705 = vmax.f32 %v637, 0.0
      %v706 = vmax.f32 %v642, 0.0
      %v707 = vmax.f32 %v645, 0.0
      %v708 = vmax.f32 %v650, 0.0
      %v709 = vmax.f32 %v653, 0.0
      %v710 = vmax.f32 %v658, 0.0
      %v711 = vmax.f32 %v661, 0.0
      %v712 = vpack.c.bf16 %v665, %v664
      %v713 = vpack.c.bf16 %v667, %v666
      %v714 = vpack.c.bf16 %v669, %v668
      %v715 = vpack.c.bf16 %v671, %v670
      %v716 = vpack.c.bf16 %v673, %v672
      %v717 = vpack.c.bf16 %v675, %v674
      %v718 = vpack.c.bf16 %v677, %v676
      %v719 = vpack.c.bf16 %v679, %v678
      %v720 = vpack.c.bf16 %v681, %v680
      %v721 = vpack.c.bf16 %v683, %v682
      %v722 = vpack.c.bf16 %v685, %v684
      %v723 = vpack.c.bf16 %v687, %v686
      %v724 = vpack.c.bf16 %v689, %v688
      %v725 = vpack.c.bf16 %v691, %v690
      %v726 = vpack.c.bf16 %v693, %v692
      %v727 = vpack.c.bf16 %v695, %v694
      %v728 = vpack.c.bf16 %v697, %v696
      %v729 = vpack.c.bf16 %v699, %v698
      %v730 = vpack.c.bf16 %v701, %v700
      %v731 = vpack.c.bf16 %v703, %v702
      %v732 = vpack.c.bf16 %v705, %v704
      %v733 = vpack.c.bf16 %v707, %v706
      %v734 = vpack.c.bf16 %v709, %v708
      %v735 = vpack.c.bf16 %v711, %v710
      %v760 = vunpack.c.l.b16 %v712
      %v761 = vunpack.c.h.b16 %v712
      %v762 = vunpack.c.l.b16 %v713
      %v763 = vunpack.c.h.b16 %v713
      %v764 = vunpack.c.l.b16 %v714
      %v765 = vunpack.c.h.b16 %v714
      %v766 = vunpack.c.l.b16 %v715
      %v767 = vunpack.c.h.b16 %v715
      %v768 = vunpack.c.l.b16 %v716
      %v769 = vunpack.c.h.b16 %v716
      %v770 = vunpack.c.l.b16 %v717
      %v771 = vunpack.c.h.b16 %v717
      %v772 = vunpack.c.l.b16 %v718
      %v773 = vunpack.c.h.b16 %v718
      %v774 = vunpack.c.l.b16 %v719
      %v775 = vunpack.c.h.b16 %v719
      %v776 = vunpack.c.l.b16 %v720
      %v777 = vunpack.c.h.b16 %v720
      %v778 = vunpack.c.l.b16 %v721
      %v779 = vunpack.c.h.b16 %v721
      %v780 = vunpack.c.l.b16 %v722
      %v781 = vunpack.c.h.b16 %v722
      %v782 = vunpack.c.l.b16 %v723
      %v783 = vunpack.c.h.b16 %v723
      %v784 = vunpack.c.l.b16 %v724
      %v785 = vunpack.c.h.b16 %v724
      %v786 = vunpack.c.l.b16 %v725
      %v787 = vunpack.c.h.b16 %v725
      %v788 = vunpack.c.l.b16 %v726
      %v789 = vunpack.c.h.b16 %v726
      %v790 = vunpack.c.l.b16 %v727
      %v791 = vunpack.c.h.b16 %v727
      %v792 = vunpack.c.l.b16 %v728
      %v793 = vunpack.c.h.b16 %v728
      %v794 = vunpack.c.l.b16 %v729
      %v795 = vunpack.c.h.b16 %v729
      %v796 = vunpack.c.l.b16 %v730
      %v797 = vunpack.c.h.b16 %v730
      %v798 = vunpack.c.l.b16 %v731
      %v799 = vunpack.c.h.b16 %v731
      %v800 = vunpack.c.l.b16 %v732
      %v801 = vunpack.c.h.b16 %v732
      %v802 = vunpack.c.l.b16 %v733
      %v803 = vunpack.c.h.b16 %v733
      %v804 = vunpack.c.l.b16 %v734
      %v805 = vunpack.c.h.b16 %v734
      %v806 = vunpack.c.l.b16 %v735
      %v807 = vunpack.c.h.b16 %v735
      %v808 = vpack.c.b16 %v760, %v760
      %v809 = vpack.c.b16 %v761, %v761
      %v810 = vpack.c.b16 %v762, %v762
      %v811 = vpack.c.b16 %v763, %v763
      %v812 = vpack.c.b16 %v764, %v764
      %v813 = vpack.c.b16 %v765, %v765
      %v814 = vpack.c.b16 %v766, %v766
      %v815 = vpack.c.b16 %v767, %v767
      %v816 = vpack.c.b16 %v768, %v768
      %v817 = vpack.c.b16 %v769, %v769
      %v818 = vpack.c.b16 %v770, %v770
      %v819 = vpack.c.b16 %v771, %v771
      %v820 = vpack.c.b16 %v772, %v772
      %v821 = vpack.c.b16 %v773, %v773
      %v822 = vpack.c.b16 %v774, %v774
      %v823 = vpack.c.b16 %v775, %v775
      %v824 = vpack.c.b16 %v776, %v776
      %v825 = vpack.c.b16 %v777, %v777
      %v826 = vpack.c.b16 %v778, %v778
      %v827 = vpack.c.b16 %v779, %v779
      %v828 = vpack.c.b16 %v780, %v780
      %v829 = vpack.c.b16 %v781, %v781
      %v830 = vpack.c.b16 %v782, %v782
      %v831 = vpack.c.b16 %v783, %v783
      %v832 = vpack.c.b16 %v784, %v784
      %v833 = vpack.c.b16 %v785, %v785
      %v834 = vpack.c.b16 %v786, %v786
      %v835 = vpack.c.b16 %v787, %v787
      %v836 = vpack.c.b16 %v788, %v788
      %v837 = vpack.c.b16 %v789, %v789
      %v838 = vpack.c.b16 %v790, %v790
      %v839 = vpack.c.b16 %v791, %v791
      %v840 = vpack.c.b16 %v792, %v792
      %v841 = vpack.c.b16 %v793, %v793
      %v842 = vpack.c.b16 %v794, %v794
      %v843 = vpack.c.b16 %v795, %v795
      %v844 = vpack.c.b16 %v796, %v796
      %v845 = vpack.c.b16 %v797, %v797
      %v846 = vpack.c.b16 %v798, %v798
      %v847 = vpack.c.b16 %v799, %v799
      %v848 = vpack.c.b16 %v800, %v800
      %v849 = vpack.c.b16 %v801, %v801
      %v850 = vpack.c.b16 %v802, %v802
      %v851 = vpack.c.b16 %v803, %v803
      %v852 = vpack.c.b16 %v804, %v804
      %v853 = vpack.c.b16 %v805, %v805
      %v854 = vpack.c.b16 %v806, %v806
      %v855 = vpack.c.b16 %v807, %v807
      %vm904 = vcmask 257024
      %905 = vst.msk [vmem:[%s172] sm:$0xf] %vm904, %v808
      %906 = vst.msk [vmem:[%s172 + $0x4] sm:$0xf] %vm904, %v809
      %907 = vst.msk [vmem:[%s172 + $0x8] sm:$0xf] %vm904, %v810
      %908 = vst.msk [vmem:[%s172 + $0xc] sm:$0xf] %vm904, %v811
      %909 = vst.msk [vmem:[%s172 + $0x10] sm:$0xf] %vm904, %v812
      %910 = vst.msk [vmem:[%s172 + $0x14] sm:$0xf] %vm904, %v813
      %911 = vst.msk [vmem:[%s172 + $0x18] sm:$0xf] %vm904, %v814
      %912 = vst.msk [vmem:[%s172 + $0x1c] sm:$0xf] %vm904, %v815
      %913 = vst.msk [vmem:[%s172 + $0x20] sm:$0xf] %vm904, %v816
      %914 = vst.msk [vmem:[%s172 + $0x24] sm:$0xf] %vm904, %v817
      %915 = vst.msk [vmem:[%s172 + $0x28] sm:$0xf] %vm904, %v818
      %916 = vst.msk [vmem:[%s172 + $0x2c] sm:$0xf] %vm904, %v819
      %917 = vst.msk [vmem:[%s172 + $0x30] sm:$0xf] %vm904, %v820
      %918 = vst.msk [vmem:[%s172 + $0x34] sm:$0xf] %vm904, %v821
      %919 = vst.msk [vmem:[%s172 + $0x38] sm:$0xf] %vm904, %v822
      %920 = vst.msk [vmem:[%s172 + $0x3c] sm:$0xf] %vm904, %v823
      %921 = vst.msk [vmem:[%s172 + $0x40] sm:$0xf] %vm904, %v824
      %922 = vst.msk [vmem:[%s172 + $0x44] sm:$0xf] %vm904, %v825
      %923 = vst.msk [vmem:[%s172 + $0x48] sm:$0xf] %vm904, %v826
      %924 = vst.msk [vmem:[%s172 + $0x4c] sm:$0xf] %vm904, %v827
      %925 = vst.msk [vmem:[%s172 + $0x50] sm:$0xf] %vm904, %v828
      %926 = vst.msk [vmem:[%s172 + $0x54] sm:$0xf] %vm904, %v829
      %927 = vst.msk [vmem:[%s172 + $0x58] sm:$0xf] %vm904, %v830
      %928 = vst.msk [vmem:[%s172 + $0x5c] sm:$0xf] %vm904, %v831
      %929 = vst.msk [vmem:[%s172 + $0x60] sm:$0xf] %vm904, %v832
      %930 = vst.msk [vmem:[%s172 + $0x64] sm:$0xf] %vm904, %v833
      %931 = vst.msk [vmem:[%s172 + $0x68] sm:$0xf] %vm904, %v834
      %932 = vst.msk [vmem:[%s172 + $0x6c] sm:$0xf] %vm904, %v835
      %933 = vst.msk [vmem:[%s172 + $0x70] sm:$0xf] %vm904, %v836
      %934 = vst.msk [vmem:[%s172 + $0x74] sm:$0xf] %vm904, %v837
      %935 = vst.msk [vmem:[%s172 + $0x78] sm:$0xf] %vm904, %v838
      %936 = vst.msk [vmem:[%s172 + $0x7c] sm:$0xf] %vm904, %v839
      %937 = vst.msk [vmem:[%s172 + $0x80] sm:$0xf] %vm904, %v840
      %938 = vst.msk [vmem:[%s172 + $0x84] sm:$0xf] %vm904, %v841
      %939 = vst.msk [vmem:[%s172 + $0x88] sm:$0xf] %vm904, %v842
      %940 = vst.msk [vmem:[%s172 + $0x8c] sm:$0xf] %vm904, %v843
      %941 = vst.msk [vmem:[%s172 + $0x90] sm:$0xf] %vm904, %v844
      %942 = vst.msk [vmem:[%s172 + $0x94] sm:$0xf] %vm904, %v845
      %943 = vst.msk [vmem:[%s172 + $0x98] sm:$0xf] %vm904, %v846
      %944 = vst.msk [vmem:[%s172 + $0x9c] sm:$0xf] %vm904, %v847
      %945 = vst.msk [vmem:[%s172 + $0xa0] sm:$0xf] %vm904, %v848
      %946 = vst.msk [vmem:[%s172 + $0xa4] sm:$0xf] %vm904, %v849
      %947 = vst.msk [vmem:[%s172 + $0xa8] sm:$0xf] %vm904, %v850
      %948 = vst.msk [vmem:[%s172 + $0xac] sm:$0xf] %vm904, %v851
      %949 = vst.msk [vmem:[%s172 + $0xb0] sm:$0xf] %vm904, %v852
      %950 = vst.msk [vmem:[%s172 + $0xb4] sm:$0xf] %vm904, %v853
      %951 = vst.msk [vmem:[%s172 + $0xb8] sm:$0xf] %vm904, %v854
      %952 = vst.msk [vmem:[%s172 + $0xbc] sm:$0xf] %vm904, %v855
      %s953 = smul.u32 48, %s14
      %p954 = scmp.lt.s32.totalorder %s953, 143
      %s955 = scalar_select %p954, %s953, 143
      %s956 = smul.addr %s955, 4
      %s957 = scalar_lea.vmem %s3, %s956
      // Predicated region
      $region33: #{dann_forward.5} parent=31 // pred_check
        %p958 = pneg %p100
      $region34: #{dann_forward.5} parent=31 // pred_check_branch
        %960 = sbr.rel (%p958) target = $region36
      $region35: #{dann_forward.5} parent=31 // pred_region
        %s961 = smul.u32 48, %s14
      $region36: #{dann_forward.5} parent=31 // pred_fallthru
        _
    $region32: #{dann_forward.5} parent=5 // pred_fallthru
      _
    %p962 = scmp.le.s32.totalorder 2, %s9
    // Predicated region
    $region37: #{dann_forward.5} parent=5 // pred_check
      %p963 = pneg %p962
    $region38: #{dann_forward.5} parent=5 // pred_check_branch
      %965 = sbr.rel (%p963) target = $region40
    $region39: #{dann_forward.5} parent=5 // pred_region
      %s966 = ssub.s32 %s9, 2
      // Predicated region
      $region41: #{dann_forward.5} parent=39 // pred_check
        %p967 = pneg %p106
      $region42: #{dann_forward.5} parent=39 // pred_check_branch
        %969 = sbr.rel (%p967) target = $region44
      $region43: #{dann_forward.5} parent=39 // pred_region
        %s970 = smul.u32 48, %s15
        %p971 = scmp.lt.s32.totalorder %s970, 143
        %s972 = scalar_select %p971, %s970, 143
        %s973 = smul.addr %s972, 4
        %s974 = scalar_lea.vmem %s3, %s973
      $region44: #{dann_forward.5} parent=39 // pred_fallthru
        _
    $region40: #{dann_forward.5} parent=5 // pred_fallthru
      _
  $region6: #{dann_forward.5} parent=0 // loop_footer
    %s13 = sadd.s32 1, %s9
  $region7: #{dann_forward.5} parent=0 // loop_footer_branch
    %8 = sbr.rel target = $region3
  $region8: #{dann_forward.5} parent=0 // loop_exit
    _

// kernel: dann_forward.7
$region0: #{dann_forward.7}
  #allocation0 [shape = 'u32[]', space=smem, size = 0x4, offset = 0x4, fixed_abs, tag = 'smem constant byte address 0x4 - core index']
  #allocation1 [shape = 'u32[144,128]{1,0:T(1,128)}', space=vmem, size = 0x12000, scoped, tag = 'internal scratch']
  %s0 = inlined_call_operand.vmem [shape: bf16[200,288], index: 0, kind: input, shape index: {}]
  %s1 = inlined_call_operand.vmem [shape: bf16[288,64], index: 1, kind: input, shape index: {}]
  %s2 = inlined_call_operand.vmem [shape: f32[1,64], index: 2, kind: input, shape index: {}]
  %s3 = inlined_call_operand.vmem [shape: bf16[200,64], index: 3, kind: output, shape index: {}]
  %s4 = sld [smem:[#allocation0]]
  $region22: #{dann_forward.7} parent=0
    _
  %s6 = ssub.s32 1, %s4
  %s7 = scalar_select 0, %s6, %s4
  // Predicated region
  $region2: #{dann_forward.7} parent=0 // pred_check
    _
  $region3: #{dann_forward.7} parent=0 // pred_check_branch
    %9 = sbr.rel (0) target = $region5
  $region4: #{dann_forward.7} parent=0 // pred_region
    _
  $region5: #{dann_forward.7} parent=0 // pred_fallthru
    _
  // Predicated region
  $region6: #{dann_forward.7} parent=0 // pred_check
    _
  $region7: #{dann_forward.7} parent=0 // pred_check_branch
    %11 = sbr.rel (0) target = $region9
  $region8: #{dann_forward.7} parent=0 // pred_region
    _
  $region9: #{dann_forward.7} parent=0 // pred_fallthru
    _
  // Predicated region
  $region10: #{dann_forward.7} parent=0 // pred_check
    _
  $region11: #{dann_forward.7} parent=0 // pred_check_branch
    %13 = sbr.rel (0) target = $region13
  $region12: #{dann_forward.7} parent=0 // pred_region
    _
  $region13: #{dann_forward.7} parent=0 // pred_fallthru
    _
  %v15 = vld [vmem:[%s0] sm:$0xff]
  %v16 = vld [vmem:[%s0 + $0x8] sm:$0xf]
  %v17 = vld [vmem:[%s0 + $0xc] sm:$0xff]
  %v18 = vld [vmem:[%s0 + $0x14] sm:$0xf]
  %v19 = vld [vmem:[%s0 + $0x18] sm:$0xff]
  %v20 = vld [vmem:[%s0 + $0x20] sm:$0xf]
  %v21 = vld [vmem:[%s0 + $0x24] sm:$0xff]
  %v22 = vld [vmem:[%s0 + $0x2c] sm:$0xf]
  %v23 = vld [vmem:[%s0 + $0x30] sm:$0xff]
  %v24 = vld [vmem:[%s0 + $0x38] sm:$0xf]
  %v25 = vld [vmem:[%s0 + $0x3c] sm:$0xff]
  %v26 = vld [vmem:[%s0 + $0x44] sm:$0xf]
  %v27 = vld [vmem:[%s0 + $0x48] sm:$0xff]
  %v28 = vld [vmem:[%s0 + $0x50] sm:$0xf]
  %v29 = vld [vmem:[%s0 + $0x54] sm:$0xff]
  %v30 = vld [vmem:[%s0 + $0x5c] sm:$0xf]
  %v31 = vld [vmem:[%s0 + $0x60] sm:$0xff]
  %v32 = vld [vmem:[%s0 + $0x68] sm:$0xf]
  %v33 = vld [vmem:[%s0 + $0x6c] sm:$0xff]
  %v34 = vld [vmem:[%s0 + $0x74] sm:$0xf]
  %v35 = vld [vmem:[%s0 + $0x78] sm:$0xff]
  %v36 = vld [vmem:[%s0 + $0x80] sm:$0xf]
  %v37 = vld [vmem:[%s0 + $0x84] sm:$0xff]
  %v38 = vld [vmem:[%s0 + $0x8c] sm:$0xf]
  %v39 = vld [vmem:[%s0 + $0x90] sm:$0xff]
  %v40 = vld [vmem:[%s0 + $0x98] sm:$0xf]
  %v41 = vld [vmem:[%s0 + $0x9c] sm:$0xff]
  %v42 = vld [vmem:[%s0 + $0xa4] sm:$0xf]
  %v43 = vld [vmem:[%s0 + $0xa8] sm:$0xff]
  %v44 = vld [vmem:[%s0 + $0xb0] sm:$0xf]
  %v45 = vld [vmem:[%s0 + $0xb4] sm:$0xff]
  %v46 = vld [vmem:[%s0 + $0xbc] sm:$0xf]
  %v47 = vld [vmem:[%s0 + $0xc0] sm:$0xff]
  %v48 = vld [vmem:[%s0 + $0xc8] sm:$0xf]
  %v49 = vld [vmem:[%s0 + $0xcc] sm:$0xff]
  %v50 = vld [vmem:[%s0 + $0xd4] sm:$0xf]
  %v51 = vld [vmem:[%s0 + $0xd8] sm:$0xff]
  %v52 = vld [vmem:[%s0 + $0xe0] sm:$0xf]
  %v53 = vld [vmem:[%s0 + $0xe4] sm:$0xff]
  %v54 = vld [vmem:[%s0 + $0xec] sm:$0xf]
  %v55 = vld [vmem:[%s0 + $0xf0] sm:$0xff]
  %v56 = vld [vmem:[%s0 + $0xf8] sm:$0xf]
  %v57 = vld [vmem:[%s0 + $0xfc] sm:$0xff]
  %v58 = vld [vmem:[%s0 + $0x104] sm:$0xf]
  %v59 = vld [vmem:[%s0 + $0x108] sm:$0xff]
  %v60 = vld [vmem:[%s0 + $0x110] sm:$0xf]
  %v61 = vld [vmem:[%s0 + $0x114] sm:$0xff]
  %v62 = vld [vmem:[%s0 + $0x11c] sm:$0xf]
  %v63 = vld [vmem:[%s0 + $0x120] sm:$0xff]
  %v64 = vld [vmem:[%s0 + $0x128] sm:$0xf]
  %v65 = vld [vmem:[%s1] sm:$0xf]
  %v66 = vld [vmem:[%s1 + $0x4] sm:$0xf]
  %v67 = vld [vmem:[%s1 + $0x8] sm:$0xf]
  %v68 = vld [vmem:[%s1 + $0xc] sm:$0xf]
  %v69 = vld [vmem:[%s1 + $0x10] sm:$0xf]
  %v70 = vld [vmem:[%s1 + $0x14] sm:$0xf]
  %v71 = vld [vmem:[%s1 + $0x18] sm:$0xf]
  %v72 = vld [vmem:[%s1 + $0x1c] sm:$0xf]
  %v73 = vld [vmem:[%s1 + $0x20] sm:$0xf]
  %v74 = vld [vmem:[%s1 + $0x24] sm:$0xf]
  %v75 = vld [vmem:[%s1 + $0x28] sm:$0xf]
  %v76 = vld [vmem:[%s1 + $0x2c] sm:$0xf]
  %v77 = vld [vmem:[%s1 + $0x30] sm:$0xf]
  %v78 = vld [vmem:[%s1 + $0x34] sm:$0xf]
  %v79 = vld [vmem:[%s1 + $0x38] sm:$0xf]
  %v80 = vld [vmem:[%s1 + $0x3c] sm:$0xf]
  %v81 = vld [vmem:[%s1 + $0x40] sm:$0xf]
  %v82 = vld [vmem:[%s1 + $0x44] sm:$0xf]
  %v83 = vld [vmem:[%s1 + $0x48] sm:$0xf]
  %v84 = vld [vmem:[%s1 + $0x4c] sm:$0xf]
  %v85 = vld [vmem:[%s1 + $0x50] sm:$0xf]
  %v86 = vld [vmem:[%s1 + $0x54] sm:$0xf]
  %v87 = vld [vmem:[%s1 + $0x58] sm:$0xf]
  %v88 = vld [vmem:[%s1 + $0x5c] sm:$0xf]
  %v89 = vld [vmem:[%s1 + $0x60] sm:$0xf]
  %v90 = vld [vmem:[%s1 + $0x64] sm:$0xf]
  %v91 = vld [vmem:[%s1 + $0x68] sm:$0xf]
  %v92 = vld [vmem:[%s1 + $0x6c] sm:$0xf]
  %v93 = vld [vmem:[%s1 + $0x70] sm:$0xf]
  %v94 = vld [vmem:[%s1 + $0x74] sm:$0xf]
  %v95 = vld [vmem:[%s1 + $0x78] sm:$0xf]
  %v96 = vld [vmem:[%s1 + $0x7c] sm:$0xf]
  %v97 = vld [vmem:[%s1 + $0x80] sm:$0xf]
  %v98 = vld [vmem:[%s1 + $0x84] sm:$0xf]
  %v99 = vld [vmem:[%s1 + $0x88] sm:$0xf]
  %v100 = vld [vmem:[%s1 + $0x8c] sm:$0xf]
  %v101 = vld [vmem:[%s2] sm:$0x1]
  %v103 = vlaneseq
  %v104 = vshrl.u32 %v103, 7
  %v105 = vsub.s32 0, %v104
  %v106 = vrot.slane %v101, %v105
  %v158 = vunpack.c.l.b16 %v15
  %v159 = vunpack.c.h.b16 %v15
  %v160 = vunpack.c.l.b16 %v16
  %v161 = vunpack.c.l.b16 %v17
  %v162 = vunpack.c.h.b16 %v17
  %v163 = vunpack.c.l.b16 %v18
  %v164 = vunpack.c.l.b16 %v19
  %v165 = vunpack.c.h.b16 %v19
  %v166 = vunpack.c.l.b16 %v20
  %v167 = vunpack.c.l.b16 %v21
  %v168 = vunpack.c.h.b16 %v21
  %v169 = vunpack.c.l.b16 %v22
  %v170 = vunpack.c.l.b16 %v23
  %v171 = vunpack.c.h.b16 %v23
  %v172 = vunpack.c.l.b16 %v24
  %v173 = vunpack.c.l.b16 %v25
  %v174 = vunpack.c.h.b16 %v25
  %v175 = vunpack.c.l.b16 %v26
  %v176 = vunpack.c.l.b16 %v27
  %v177 = vunpack.c.h.b16 %v27
  %v178 = vunpack.c.l.b16 %v28
  %v179 = vunpack.c.l.b16 %v29
  %v180 = vunpack.c.h.b16 %v29
  %v181 = vunpack.c.l.b16 %v30
  %v182 = vunpack.c.l.b16 %v31
  %v183 = vunpack.c.h.b16 %v31
  %v184 = vunpack.c.l.b16 %v32
  %v185 = vunpack.c.l.b16 %v33
  %v186 = vunpack.c.h.b16 %v33
  %v187 = vunpack.c.l.b16 %v34
  %v188 = vunpack.c.l.b16 %v35
  %v189 = vunpack.c.h.b16 %v35
  %v190 = vunpack.c.l.b16 %v36
  %v191 = vunpack.c.l.b16 %v37
  %v192 = vunpack.c.h.b16 %v37
  %v193 = vunpack.c.l.b16 %v38
  %v194 = vunpack.c.l.b16 %v39
  %v195 = vunpack.c.h.b16 %v39
  %v196 = vunpack.c.l.b16 %v40
  %v197 = vunpack.c.l.b16 %v41
  %v198 = vunpack.c.h.b16 %v41
  %v199 = vunpack.c.l.b16 %v42
  %v200 = vunpack.c.l.b16 %v43
  %v201 = vunpack.c.h.b16 %v43
  %v202 = vunpack.c.l.b16 %v44
  %v203 = vunpack.c.l.b16 %v45
  %v204 = vunpack.c.h.b16 %v45
  %v205 = vunpack.c.l.b16 %v46
  %v206 = vunpack.c.l.b16 %v47
  %v207 = vunpack.c.h.b16 %v47
  %v208 = vunpack.c.l.b16 %v48
  %v209 = vunpack.c.l.b16 %v49
  %v210 = vunpack.c.h.b16 %v49
  %v211 = vunpack.c.l.b16 %v50
  %v212 = vunpack.c.l.b16 %v51
  %v213 = vunpack.c.h.b16 %v51
  %v214 = vunpack.c.l.b16 %v52
  %v215 = vunpack.c.l.b16 %v53
  %v216 = vunpack.c.h.b16 %v53
  %v217 = vunpack.c.l.b16 %v54
  %v218 = vunpack.c.l.b16 %v55
  %v219 = vunpack.c.h.b16 %v55
  %v220 = vunpack.c.l.b16 %v56
  %v221 = vunpack.c.l.b16 %v57
  %v222 = vunpack.c.h.b16 %v57
  %v223 = vunpack.c.l.b16 %v58
  %v224 = vunpack.c.l.b16 %v59
  %v225 = vunpack.c.h.b16 %v59
  %v226 = vunpack.c.l.b16 %v60
  %v227 = vunpack.c.l.b16 %v61
  %v228 = vunpack.c.h.b16 %v61
  %v229 = vunpack.c.l.b16 %v62
  %v230 = vunpack.c.l.b16 %v63
  %v231 = vunpack.c.h.b16 %v63
  %v232 = vunpack.c.l.b16 %v64
  %v233 = vpack.c.b16 %v161, %v158
  %v234 = vpack.c.b16 %v162, %v159
  %v235 = vpack.c.b16 %v163, %v160
  %v236 = vpack.c.b16 %v167, %v164
  %v237 = vpack.c.b16 %v168, %v165
  %v238 = vpack.c.b16 %v169, %v166
  %v239 = vpack.c.b16 %v173, %v170
  %v240 = vpack.c.b16 %v174, %v171
  %v241 = vpack.c.b16 %v175, %v172
  %v242 = vpack.c.b16 %v179, %v176
  %v243 = vpack.c.b16 %v180, %v177
  %v244 = vpack.c.b16 %v181, %v178
  %v245 = vpack.c.b16 %v185, %v182
  %v246 = vpack.c.b16 %v186, %v183
  %v247 = vpack.c.b16 %v187, %v184
  %v248 = vpack.c.b16 %v191, %v188
  %v249 = vpack.c.b16 %v192, %v189
  %v250 = vpack.c.b16 %v193, %v190
  %v251 = vpack.c.b16 %v197, %v194
  %v252 = vpack.c.b16 %v198, %v195
  %v253 = vpack.c.b16 %v199, %v196
  %v254 = vpack.c.b16 %v203, %v200
  %v255 = vpack.c.b16 %v204, %v201
  %v256 = vpack.c.b16 %v205, %v202
  %v257 = vpack.c.b16 %v209, %v206
  %v258 = vpack.c.b16 %v210, %v207
  %v259 = vpack.c.b16 %v211, %v208
  %v260 = vpack.c.b16 %v215, %v212
  %v261 = vpack.c.b16 %v216, %v213
  %v262 = vpack.c.b16 %v217, %v214
  %v263 = vpack.c.b16 %v221, %v218
  %v264 = vpack.c.b16 %v222, %v219
  %v265 = vpack.c.b16 %v223, %v220
  %v266 = vpack.c.b16 %v227, %v224
  %v267 = vpack.c.b16 %v228, %v225
  %v268 = vpack.c.b16 %v229, %v226
  %v269 = vpack.c.b16 %v230, %v230
  %v270 = vpack.c.b16 %v231, %v231
  %v271 = vpack.c.b16 %v232, %v232
  %v334 = vunpack.c.l.b16 %v65
  %v335 = vunpack.c.l.b16 %v66
  %v336 = vunpack.c.l.b16 %v67
  %v337 = vunpack.c.l.b16 %v68
  %v338 = vunpack.c.l.b16 %v69
  %v339 = vunpack.c.l.b16 %v70
  %v340 = vunpack.c.l.b16 %v71
  %v341 = vunpack.c.l.b16 %v72
  %v342 = vunpack.c.l.b16 %v73
  %v343 = vunpack.c.l.b16 %v74
  %v344 = vunpack.c.l.b16 %v75
  %v345 = vunpack.c.l.b16 %v76
  %v346 = vunpack.c.l.b16 %v77
  %v347 = vunpack.c.l.b16 %v78
  %v348 = vunpack.c.l.b16 %v79
  %v349 = vunpack.c.l.b16 %v80
  %v350 = vunpack.c.l.b16 %v81
  %v351 = vunpack.c.l.b16 %v82
  %v352 = vunpack.c.l.b16 %v83
  %v353 = vunpack.c.l.b16 %v84
  %v354 = vunpack.c.l.b16 %v85
  %v355 = vunpack.c.l.b16 %v86
  %v356 = vunpack.c.l.b16 %v87
  %v357 = vunpack.c.l.b16 %v88
  %v358 = vunpack.c.l.b16 %v89
  %v359 = vunpack.c.l.b16 %v90
  %v360 = vunpack.c.l.b16 %v91
  %v361 = vunpack.c.l.b16 %v92
  %v362 = vunpack.c.l.b16 %v93
  %v363 = vunpack.c.l.b16 %v94
  %v364 = vunpack.c.l.b16 %v95
  %v365 = vunpack.c.l.b16 %v96
  %v366 = vunpack.c.l.b16 %v97
  %v367 = vunpack.c.l.b16 %v98
  %v368 = vunpack.c.l.b16 %v99
  %v369 = vunpack.c.l.b16 %v100
  %v370 = vpack.c.b16 %v335, %v334
  %v371 = vpack.c.b16 %v337, %v336
  %v372 = vpack.c.b16 %v339, %v338
  %v373 = vpack.c.b16 %v341, %v340
  %v374 = vpack.c.b16 %v343, %v342
  %v375 = vpack.c.b16 %v345, %v344
  %v376 = vpack.c.b16 %v347, %v346
  %v377 = vpack.c.b16 %v349, %v348
  %v378 = vpack.c.b16 %v351, %v350
  %v379 = vpack.c.b16 %v353, %v352
  %v380 = vpack.c.b16 %v355, %v354
  %v381 = vpack.c.b16 %v357, %v356
  %v382 = vpack.c.b16 %v359, %v358
  %v383 = vpack.c.b16 %v361, %v360
  %v384 = vpack.c.b16 %v363, %v362
  %v385 = vpack.c.b16 %v365, %v364
  %v386 = vpack.c.b16 %v367, %v366
  %v387 = vpack.c.b16 %v369, %v368
  %vm406 = vcmask 261120
  %v408 = vsel %vm406, %v235, 0
  %v411 = vsel %vm406, %v238, 0
  %v414 = vsel %vm406, %v241, 0
  %v417 = vsel %vm406, %v244, 0
  %v420 = vsel %vm406, %v247, 0
  %v423 = vsel %vm406, %v250, 0
  %v426 = vsel %vm406, %v253, 0
  %v429 = vsel %vm406, %v256, 0
  %v432 = vsel %vm406, %v259, 0
  %v435 = vsel %vm406, %v262, 0
  %v438 = vsel %vm406, %v265, 0
  %v441 = vsel %vm406, %v268, 0
  %v444 = vsel %vm406, %v271, 0
  %446 = vmatprep.subr.bf16.mxu0 0
  %447 = vmatpush1.bf16.msra.mxu0 %v370
  %448 = vmatprep.subr.bf16.mxu0 0
  %449 = vmatpush1.bf16.msra.mxu0 %v371
  %450 = vmatprep.subr.bf16.mxu0 0
  %451 = vmatpush1.bf16.msra.mxu0 %v372
  %452 = vmatprep.subr.bf16.mxu0 0
  %453 = vmatpush1.bf16.msra.mxu0 %v373
  %454 = vmatprep.subr.bf16.mxu0 0
  %455 = vmatpush1.bf16.msra.mxu0 %v374
  %456 = vmatprep.subr.bf16.mxu0 0
  %457 = vmatpush1.bf16.msra.mxu0 %v375
  %458 = vmatprep.subr.bf16.mxu0 0
  %459 = vmatpush1.bf16.msra.mxu0 %v376
  %460 = vmatprep.subr.bf16.mxu0 0
  %461 = vmatpush1.bf16.msra.mxu0 %v377
  %462 = vmatprep.subr.bf16.mxu0 0
  %463 = vmatpush1.bf16.msra.mxu0 %v378
  %464 = vmatprep.subr.bf16.mxu0 0
  %465 = vmatpush1.bf16.msra.mxu0 %v379
  %466 = vmatprep.subr.bf16.mxu0 0
  %467 = vmatpush1.bf16.msra.mxu0 %v380
  %468 = vmatprep.subr.bf16.mxu0 0
  %469 = vmatpush1.bf16.msra.mxu0 %v381
  %470 = vmatprep.subr.bf16.mxu0 0
  %471 = vmatpush1.bf16.msra.mxu0 %v382
  %472 = vmatprep.subr.bf16.mxu0 0
  %473 = vmatpush1.bf16.msra.mxu0 %v383
  %474 = vmatprep.subr.bf16.mxu0 0
  %475 = vmatpush1.bf16.msra.mxu0 %v384
  %476 = vmatprep.subr.bf16.mxu0 0
  %477 = vmatpush1.bf16.msra.mxu0 %v385
  %478 = vmatprep.mubr.bf16.mxu0 %v234
  %479 = vmatmul.mubr.bf16.gmra.mrb[0].mxu0 %v233
  %v480 = vpop.f32.mrb[0].mxu0
  %v481 = vadd.f32 %v106, %v480
  %v482 = vpop.f32.mrb[0].mxu0
  %v483 = vpop.f32.mrb[0].mxu0
  %v484 = vadd.f32 %v106, %v483
  %v485 = vpop.f32.mrb[0].mxu0
  %486 = vmatprep.mubr.bf16.mxu0 %v237
  %487 = vmatmul.mubr.bf16.gmra.mrb[0].mxu0 %v236
  %v488 = vpop.f32.mrb[0].mxu0
  %v489 = vadd.f32 %v106, %v488
  %v490 = vpop.f32.mrb[0].mxu0
  %v491 = vpop.f32.mrb[0].mxu0
  %v492 = vadd.f32 %v106, %v491
  %v493 = vpop.f32.mrb[0].mxu0
  %494 = vmatprep.mubr.bf16.mxu0 %v240
  %495 = vmatmul.mubr.bf16.gmra.mrb[0].mxu0 %v239
  %v496 = vpop.f32.mrb[0].mxu0
  %v497 = vadd.f32 %v106, %v496
  %v498 = vpop.f32.mrb[0].mxu0
  %v499 = vpop.f32.mrb[0].mxu0
  %v500 = vadd.f32 %v106, %v499
  %v501 = vpop.f32.mrb[0].mxu0
  %502 = vmatprep.mubr.bf16.mxu0 %v243
  %503 = vmatmul.mubr.bf16.gmra.mrb[0].mxu0 %v242
  %v504 = vpop.f32.mrb[0].mxu0
  %v505 = vadd.f32 %v106, %v504
  %v506 = vpop.f32.mrb[0].mxu0
  %v507 = vpop.f32.mrb[0].mxu0
  %v508 = vadd.f32 %v106, %v507
  %v509 = vpop.f32.mrb[0].mxu0
  %510 = vmatprep.mubr.bf16.mxu0 %v246
  %511 = vmatmul.mubr.bf16.gmra.mrb[0].mxu0 %v245
  %v512 = vpop.f32.mrb[0].mxu0
  %v513 = vadd.f32 %v106, %v512
  %v514 = vpop.f32.mrb[0].mxu0
  %v515 = vpop.f32.mrb[0].mxu0
  %v516 = vadd.f32 %v106, %v515
  %v517 = vpop.f32.mrb[0].mxu0
  %518 = vmatprep.mubr.bf16.mxu0 %v249
  %519 = vmatmul.mubr.bf16.gmra.mrb[0].mxu0 %v248
  %v520 = vpop.f32.mrb[0].mxu0
  %v521 = vadd.f32 %v106, %v520
  %v522 = vpop.f32.mrb[0].mxu0
  %v523 = vpop.f32.mrb[0].mxu0
  %v524 = vadd.f32 %v106, %v523
  %v525 = vpop.f32.mrb[0].mxu0
  %526 = vmatprep.mubr.bf16.mxu0 %v252
  %527 = vmatmul.mubr.bf16.gmra.mrb[0].mxu0 %v251
  %v528 = vpop.f32.mrb[0].mxu0
  %v529 = vadd.f32 %v106, %v528
  %v530 = vpop.f32.mrb[0].mxu0
  %v531 = vpop.f32.mrb[0].mxu0
  %v532 = vadd.f32 %v106, %v531
  %v533 = vpop.f32.mrb[0].mxu0
  %534 = vmatprep.mubr.bf16.mxu0 %v255
  %535 = vmatmul.mubr.bf16.gmra.mrb[0].mxu0 %v254
  %v536 = vpop.f32.mrb[0].mxu0
  %v537 = vadd.f32 %v106, %v536
  %v538 = vpop.f32.mrb[0].mxu0
  %v539 = vpop.f32.mrb[0].mxu0
  %v540 = vadd.f32 %v106, %v539
  %v541 = vpop.f32.mrb[0].mxu0
  %542 = vmatprep.mubr.bf16.mxu0 %v258
  %543 = vmatmul.mubr.bf16.gmra.mrb[0].mxu0 %v257
  %v544 = vpop.f32.mrb[0].mxu0
  %v545 = vadd.f32 %v106, %v544
  %v546 = vpop.f32.mrb[0].mxu0
  %v547 = vpop.f32.mrb[0].mxu0
  %v548 = vadd.f32 %v106, %v547
  %v549 = vpop.f32.mrb[0].mxu0
  %550 = vmatprep.mubr.bf16.mxu0 %v261
  %551 = vmatmul.mubr.bf16.gmra.mrb[0].mxu0 %v260
  %v552 = vpop.f32.mrb[0].mxu0
  %v553 = vadd.f32 %v106, %v552
  %v554 = vpop.f32.mrb[0].mxu0
  %v555 = vpop.f32.mrb[0].mxu0
  %v556 = vadd.f32 %v106, %v555
  %v557 = vpop.f32.mrb[0].mxu0
  %558 = vmatprep.mubr.bf16.mxu0 %v264
  %559 = vmatmul.mubr.bf16.gmra.mrb[0].mxu0 %v263
  %v560 = vpop.f32.mrb[0].mxu0
  %v561 = vadd.f32 %v106, %v560
  %v562 = vpop.f32.mrb[0].mxu0
  %v563 = vpop.f32.mrb[0].mxu0
  %v564 = vadd.f32 %v106, %v563
  %v565 = vpop.f32.mrb[0].mxu0
  %566 = vmatprep.mubr.bf16.mxu0 %v267
  %567 = vmatmul.mubr.bf16.gmra.mrb[0].mxu0 %v266
  %v568 = vpop.f32.mrb[0].mxu0
  %v569 = vadd.f32 %v106, %v568
  %v570 = vpop.f32.mrb[0].mxu0
  %v571 = vpop.f32.mrb[0].mxu0
  %v572 = vadd.f32 %v106, %v571
  %v573 = vpop.f32.mrb[0].mxu0
  %574 = vmatprep.mubr.bf16.mxu0 %v270
  %575 = vmatmul.mubr.bf16.gmra.mrb[0].mxu0 %v269
  %v576 = vpop.f32.mrb[0].mxu0
  %v577 = vadd.f32 %v106, %v576
  %v578 = vpop.f32.mrb[0].mxu0
  %v579 = vpop.f32.mrb[0].mxu0
  %v580 = vpop.f32.mrb[0].mxu0
  %581 = vdwg.mxu0
  %582 = vmatprep.subr.bf16.mxu0 0
  %583 = vmatpush1.bf16.msra.mxu0 %v386
  %584 = vmatprep.subr.bf16.mxu0 0
  %585 = vmatpush1.bf16.msra.mxu0 %v387
  %586 = vmatprep.subr.bf16.mxu0 0
  %587 = vmatpush1.bf16.msra.mxu0 0
  %588 = vmatprep.subr.bf16.mxu0 0
  %589 = vmatpush1.bf16.msra.mxu0 0
  %590 = vmatprep.subr.bf16.mxu0 0
  %591 = vmatpush1.bf16.msra.mxu0 0
  %592 = vmatprep.subr.bf16.mxu0 0
  %593 = vmatpush1.bf16.msra.mxu0 0
  %594 = vmatprep.subr.bf16.mxu0 0
  %595 = vmatpush1.bf16.msra.mxu0 0
  %596 = vmatprep.subr.bf16.mxu0 0
  %597 = vmatpush1.bf16.msra.mxu0 0
  %598 = vmatprep.subr.bf16.mxu0 0
  %599 = vmatpush1.bf16.msra.mxu0 0
  %600 = vmatprep.subr.bf16.mxu0 0
  %601 = vmatpush1.bf16.msra.mxu0 0
  %602 = vmatprep.subr.bf16.mxu0 0
  %603 = vmatpush1.bf16.msra.mxu0 0
  %604 = vmatprep.subr.bf16.mxu0 0
  %605 = vmatpush1.bf16.msra.mxu0 0
  %606 = vmatprep.subr.bf16.mxu0 0
  %607 = vmatpush1.bf16.msra.mxu0 0
  %608 = vmatprep.subr.bf16.mxu0 0
  %609 = vmatpush1.bf16.msra.mxu0 0
  %610 = vmatprep.subr.bf16.mxu0 0
  %611 = vmatpush1.bf16.msra.mxu0 0
  %612 = vmatprep.subr.bf16.mxu0 0
  %613 = vmatpush1.bf16.msra.mxu0 0
  %614 = vmatprep.mubr.bf16.mxu0 0
  %615 = vmatmul.mubr.bf16.gmra.mrb[0].mxu0 %v408
  %v616 = vpop.f32.mrb[0].mxu0
  %v617 = vadd.f32 %v481, %v616
  %v618 = vpop.f32.mrb[0].mxu0
  %v619 = vpop.f32.mrb[0].mxu0
  %v620 = vadd.f32 %v484, %v619
  %v621 = vpop.f32.mrb[0].mxu0
  %622 = vmatprep.mubr.bf16.mxu0 0
  %623 = vmatmul.mubr.bf16.gmra.mrb[0].mxu0 %v411
  %v624 = vpop.f32.mrb[0].mxu0
  %v625 = vadd.f32 %v489, %v624
  %v626 = vpop.f32.mrb[0].mxu0
  %v627 = vpop.f32.mrb[0].mxu0
  %v628 = vadd.f32 %v492, %v627
  %v629 = vpop.f32.mrb[0].mxu0
  %630 = vmatprep.mubr.bf16.mxu0 0
  %631 = vmatmul.mubr.bf16.gmra.mrb[0].mxu0 %v414
  %v632 = vpop.f32.mrb[0].mxu0
  %v633 = vadd.f32 %v497, %v632
  %v634 = vpop.f32.mrb[0].mxu0
  %v635 = vpop.f32.mrb[0].mxu0
  %v636 = vadd.f32 %v500, %v635
  %v637 = vpop.f32.mrb[0].mxu0
  %638 = vmatprep.mubr.bf16.mxu0 0
  %639 = vmatmul.mubr.bf16.gmra.mrb[0].mxu0 %v417
  %v640 = vpop.f32.mrb[0].mxu0
  %v641 = vadd.f32 %v505, %v640
  %v642 = vpop.f32.mrb[0].mxu0
  %v643 = vpop.f32.mrb[0].mxu0
  %v644 = vadd.f32 %v508, %v643
  %v645 = vpop.f32.mrb[0].mxu0
  %646 = vmatprep.mubr.bf16.mxu0 0
  %647 = vmatmul.mubr.bf16.gmra.mrb[0].mxu0 %v420
  %v648 = vpop.f32.mrb[0].mxu0
  %v649 = vadd.f32 %v513, %v648
  %v650 = vpop.f32.mrb[0].mxu0
  %v651 = vpop.f32.mrb[0].mxu0
  %v652 = vadd.f32 %v516, %v651
  %v653 = vpop.f32.mrb[0].mxu0
  %654 = vmatprep.mubr.bf16.mxu0 0
  %655 = vmatmul.mubr.bf16.gmra.mrb[0].mxu0 %v423
  %v656 = vpop.f32.mrb[0].mxu0
  %v657 = vadd.f32 %v521, %v656
  %v658 = vpop.f32.mrb[0].mxu0
  %v659 = vpop.f32.mrb[0].mxu0
  %v660 = vadd.f32 %v524, %v659
  %v661 = vpop.f32.mrb[0].mxu0
  %662 = vmatprep.mubr.bf16.mxu0 0
  %663 = vmatmul.mubr.bf16.gmra.mrb[0].mxu0 %v426
  %v664 = vpop.f32.mrb[0].mxu0
  %v665 = vadd.f32 %v529, %v664
  %v666 = vpop.f32.mrb[0].mxu0
  %v667 = vpop.f32.mrb[0].mxu0
  %v668 = vadd.f32 %v532, %v667
  %v669 = vpop.f32.mrb[0].mxu0
  %670 = vmatprep.mubr.bf16.mxu0 0
  %671 = vmatmul.mubr.bf16.gmra.mrb[0].mxu0 %v429
  %v672 = vpop.f32.mrb[0].mxu0
  %v673 = vadd.f32 %v537, %v672
  %v674 = vpop.f32.mrb[0].mxu0
  %v675 = vpop.f32.mrb[0].mxu0
  %v676 = vadd.f32 %v540, %v675
  %v677 = vpop.f32.mrb[0].mxu0
  %678 = vmatprep.mubr.bf16.mxu0 0
  %679 = vmatmul.mubr.bf16.gmra.mrb[0].mxu0 %v432
  %v680 = vpop.f32.mrb[0].mxu0
  %v681 = vadd.f32 %v545, %v680
  %v682 = vpop.f32.mrb[0].mxu0
  %v683 = vpop.f32.mrb[0].mxu0
  %v684 = vadd.f32 %v548, %v683
  %v685 = vpop.f32.mrb[0].mxu0
  %686 = vmatprep.mubr.bf16.mxu0 0
  %687 = vmatmul.mubr.bf16.gmra.mrb[0].mxu0 %v435
  %v688 = vpop.f32.mrb[0].mxu0
  %v689 = vadd.f32 %v553, %v688
  %v690 = vpop.f32.mrb[0].mxu0
  %v691 = vpop.f32.mrb[0].mxu0
  %v692 = vadd.f32 %v556, %v691
  %v693 = vpop.f32.mrb[0].mxu0
  %694 = vmatprep.mubr.bf16.mxu0 0
  %695 = vmatmul.mubr.bf16.gmra.mrb[0].mxu0 %v438
  %v696 = vpop.f32.mrb[0].mxu0
  %v697 = vadd.f32 %v561, %v696
  %v698 = vpop.f32.mrb[0].mxu0
  %v699 = vpop.f32.mrb[0].mxu0
  %v700 = vadd.f32 %v564, %v699
  %v701 = vpop.f32.mrb[0].mxu0
  %702 = vmatprep.mubr.bf16.mxu0 0
  %703 = vmatmul.mubr.bf16.gmra.mrb[0].mxu0 %v441
  %v704 = vpop.f32.mrb[0].mxu0
  %v705 = vadd.f32 %v569, %v704
  %v706 = vpop.f32.mrb[0].mxu0
  %v707 = vpop.f32.mrb[0].mxu0
  %v708 = vadd.f32 %v572, %v707
  %v709 = vpop.f32.mrb[0].mxu0
  %710 = vmatprep.mubr.bf16.mxu0 0
  %711 = vmatmul.mubr.bf16.gmra.mrb[0].mxu0 %v444
  %v712 = vpop.f32.mrb[0].mxu0
  %v713 = vadd.f32 %v577, %v712
  %v714 = vpop.f32.mrb[0].mxu0
  %v715 = vpop.f32.mrb[0].mxu0
  %v716 = vpop.f32.mrb[0].mxu0
  %717 = vdwg.mxu0
  %v718 = vmax.f32 %v617, 0.0
  %v719 = vmax.f32 %v620, 0.0
  %v720 = vmax.f32 %v625, 0.0
  %v721 = vmax.f32 %v628, 0.0
  %v722 = vmax.f32 %v633, 0.0
  %v723 = vmax.f32 %v636, 0.0
  %v724 = vmax.f32 %v641, 0.0
  %v725 = vmax.f32 %v644, 0.0
  %v726 = vmax.f32 %v649, 0.0
  %v727 = vmax.f32 %v652, 0.0
  %v728 = vmax.f32 %v657, 0.0
  %v729 = vmax.f32 %v660, 0.0
  %v730 = vmax.f32 %v665, 0.0
  %v731 = vmax.f32 %v668, 0.0
  %v732 = vmax.f32 %v673, 0.0
  %v733 = vmax.f32 %v676, 0.0
  %v734 = vmax.f32 %v681, 0.0
  %v735 = vmax.f32 %v684, 0.0
  %v736 = vmax.f32 %v689, 0.0
  %v737 = vmax.f32 %v692, 0.0
  %v738 = vmax.f32 %v697, 0.0
  %v739 = vmax.f32 %v700, 0.0
  %v740 = vmax.f32 %v705, 0.0
  %v741 = vmax.f32 %v708, 0.0
  %v742 = vmax.f32 %v713, 0.0
  %v743 = vpack.c.bf16 %v719, %v718
  %v744 = vpack.c.bf16 %v721, %v720
  %v745 = vpack.c.bf16 %v723, %v722
  %v746 = vpack.c.bf16 %v725, %v724
  %v747 = vpack.c.bf16 %v727, %v726
  %v748 = vpack.c.bf16 %v729, %v728
  %v749 = vpack.c.bf16 %v731, %v730
  %v750 = vpack.c.bf16 %v733, %v732
  %v751 = vpack.c.bf16 %v735, %v734
  %v752 = vpack.c.bf16 %v737, %v736
  %v753 = vpack.c.bf16 %v739, %v738
  %v754 = vpack.c.bf16 %v741, %v740
  %v755 = vpack.c.bf16 %v742, %v742
  %v769 = vunpack.c.l.b16 %v743
  %v770 = vunpack.c.h.b16 %v743
  %v771 = vunpack.c.l.b16 %v744
  %v772 = vunpack.c.h.b16 %v744
  %v773 = vunpack.c.l.b16 %v745
  %v774 = vunpack.c.h.b16 %v745
  %v775 = vunpack.c.l.b16 %v746
  %v776 = vunpack.c.h.b16 %v746
  %v777 = vunpack.c.l.b16 %v747
  %v778 = vunpack.c.h.b16 %v747
  %v779 = vunpack.c.l.b16 %v748
  %v780 = vunpack.c.h.b16 %v748
  %v781 = vunpack.c.l.b16 %v749
  %v782 = vunpack.c.h.b16 %v749
  %v783 = vunpack.c.l.b16 %v750
  %v784 = vunpack.c.h.b16 %v750
  %v785 = vunpack.c.l.b16 %v751
  %v786 = vunpack.c.h.b16 %v751
  %v787 = vunpack.c.l.b16 %v752
  %v788 = vunpack.c.h.b16 %v752
  %v789 = vunpack.c.l.b16 %v753
  %v790 = vunpack.c.h.b16 %v753
  %v791 = vunpack.c.l.b16 %v754
  %v792 = vunpack.c.h.b16 %v754
  %v793 = vunpack.c.l.b16 %v755
  %v794 = vpack.c.b16 %v769, %v769
  %v795 = vpack.c.b16 %v770, %v770
  %v796 = vpack.c.b16 %v771, %v771
  %v797 = vpack.c.b16 %v772, %v772
  %v798 = vpack.c.b16 %v773, %v773
  %v799 = vpack.c.b16 %v774, %v774
  %v800 = vpack.c.b16 %v775, %v775
  %v801 = vpack.c.b16 %v776, %v776
  %v802 = vpack.c.b16 %v777, %v777
  %v803 = vpack.c.b16 %v778, %v778
  %v804 = vpack.c.b16 %v779, %v779
  %v805 = vpack.c.b16 %v780, %v780
  %v806 = vpack.c.b16 %v781, %v781
  %v807 = vpack.c.b16 %v782, %v782
  %v808 = vpack.c.b16 %v783, %v783
  %v809 = vpack.c.b16 %v784, %v784
  %v810 = vpack.c.b16 %v785, %v785
  %v811 = vpack.c.b16 %v786, %v786
  %v812 = vpack.c.b16 %v787, %v787
  %v813 = vpack.c.b16 %v788, %v788
  %v814 = vpack.c.b16 %v789, %v789
  %v815 = vpack.c.b16 %v790, %v790
  %v816 = vpack.c.b16 %v791, %v791
  %v817 = vpack.c.b16 %v792, %v792
  %v818 = vpack.c.b16 %v793, %v793
  %vm844 = vcmask 519168
  %845 = vst.msk [vmem:[%s3] sm:$0xf] %vm844, %v794
  %846 = vst.msk [vmem:[%s3 + $0x4] sm:$0xf] %vm844, %v795
  %847 = vst.msk [vmem:[%s3 + $0x8] sm:$0xf] %vm844, %v796
  %848 = vst.msk [vmem:[%s3 + $0xc] sm:$0xf] %vm844, %v797
  %849 = vst.msk [vmem:[%s3 + $0x10] sm:$0xf] %vm844, %v798
  %850 = vst.msk [vmem:[%s3 + $0x14] sm:$0xf] %vm844, %v799
  %851 = vst.msk [vmem:[%s3 + $0x18] sm:$0xf] %vm844, %v800
  %852 = vst.msk [vmem:[%s3 + $0x1c] sm:$0xf] %vm844, %v801
  %853 = vst.msk [vmem:[%s3 + $0x20] sm:$0xf] %vm844, %v802
  %854 = vst.msk [vmem:[%s3 + $0x24] sm:$0xf] %vm844, %v803
  %855 = vst.msk [vmem:[%s3 + $0x28] sm:$0xf] %vm844, %v804
  %856 = vst.msk [vmem:[%s3 + $0x2c] sm:$0xf] %vm844, %v805
  %857 = vst.msk [vmem:[%s3 + $0x30] sm:$0xf] %vm844, %v806
  %858 = vst.msk [vmem:[%s3 + $0x34] sm:$0xf] %vm844, %v807
  %859 = vst.msk [vmem:[%s3 + $0x38] sm:$0xf] %vm844, %v808
  %860 = vst.msk [vmem:[%s3 + $0x3c] sm:$0xf] %vm844, %v809
  %861 = vst.msk [vmem:[%s3 + $0x40] sm:$0xf] %vm844, %v810
  %862 = vst.msk [vmem:[%s3 + $0x44] sm:$0xf] %vm844, %v811
  %863 = vst.msk [vmem:[%s3 + $0x48] sm:$0xf] %vm844, %v812
  %864 = vst.msk [vmem:[%s3 + $0x4c] sm:$0xf] %vm844, %v813
  %865 = vst.msk [vmem:[%s3 + $0x50] sm:$0xf] %vm844, %v814
  %866 = vst.msk [vmem:[%s3 + $0x54] sm:$0xf] %vm844, %v815
  %867 = vst.msk [vmem:[%s3 + $0x58] sm:$0xf] %vm844, %v816
  %868 = vst.msk [vmem:[%s3 + $0x5c] sm:$0xf] %vm844, %v817
  %869 = vst.msk [vmem:[%s3 + $0x60] sm:$0xf] %vm844, %v818
  // Predicated region
  $region14: #{dann_forward.7} parent=0 // pred_check
    _
  $region15: #{dann_forward.7} parent=0 // pred_check_branch
    %871 = sbr.rel (0) target = $region17
  $region16: #{dann_forward.7} parent=0 // pred_region
    _
  $region17: #{dann_forward.7} parent=0 // pred_fallthru
    _
  // Predicated region
  $region18: #{dann_forward.7} parent=0 // pred_check
    _
  $region19: #{dann_forward.7} parent=0 // pred_check_branch
    %873 = sbr.rel (0) target = $region21
  $region20: #{dann_forward.7} parent=0 // pred_region
    _
  $region21: #{dann_forward.7} parent=0 // pred_fallthru
    _

// kernel: dann_forward.8
$region0: #{dann_forward.8}
  #allocation0 [shape = 'u32[]', space=smem, size = 0x4, offset = 0x4, fixed_abs, tag = 'smem constant byte address 0x4 - core index']
  #allocation1 [shape = 'u32[144,128]{1,0:T(1,128)}', space=vmem, size = 0x12000, scoped, tag = 'internal scratch']
  %s0 = inlined_call_operand.vmem [shape: bf16[128,576], index: 0, kind: input, shape index: {}]
  %s1 = inlined_call_operand.vmem [shape: bf16[576,64], index: 1, kind: input, shape index: {}]
  %s2 = inlined_call_operand.vmem [shape: f32[1,64], index: 2, kind: input, shape index: {}]
  %s3 = inlined_call_operand.vmem [shape: bf16[128,64], index: 3, kind: output, shape index: {}]
  %s4 = sld [smem:[#allocation0]]
  $region22: #{dann_forward.8} parent=0
    _
  %s6 = ssub.s32 1, %s4
  %s7 = scalar_select 0, %s6, %s4
  // Predicated region
  $region2: #{dann_forward.8} parent=0 // pred_check
    _
  $region3: #{dann_forward.8} parent=0 // pred_check_branch
    %9 = sbr.rel (0) target = $region5
  $region4: #{dann_forward.8} parent=0 // pred_region
    _
  $region5: #{dann_forward.8} parent=0 // pred_fallthru
    _
  // Predicated region
  $region6: #{dann_forward.8} parent=0 // pred_check
    _
  $region7: #{dann_forward.8} parent=0 // pred_check_branch
    %11 = sbr.rel (0) target = $region9
  $region8: #{dann_forward.8} parent=0 // pred_region
    _
  $region9: #{dann_forward.8} parent=0 // pred_fallthru
    _
  // Predicated region
  $region10: #{dann_forward.8} parent=0 // pred_check
    _
  $region11: #{dann_forward.8} parent=0 // pred_check_branch
    %13 = sbr.rel (0) target = $region13
  $region12: #{dann_forward.8} parent=0 // pred_region
    _
  $region13: #{dann_forward.8} parent=0 // pred_fallthru
    _
  %v15 = vld [vmem:[%s0] sm:$0xff]
  %v16 = vld [vmem:[%s0 + $0x8] sm:$0xff]
  %v17 = vld [vmem:[%s0 + $0x10] sm:$0xf]
  %v18 = vld [vmem:[%s0 + $0x14] sm:$0xff]
  %v19 = vld [vmem:[%s0 + $0x1c] sm:$0xff]
  %v20 = vld [vmem:[%s0 + $0x24] sm:$0xf]
  %v21 = vld [vmem:[%s0 + $0x28] sm:$0xff]
  %v22 = vld [vmem:[%s0 + $0x30] sm:$0xff]
  %v23 = vld [vmem:[%s0 + $0x38] sm:$0xf]
  %v24 = vld [vmem:[%s0 + $0x3c] sm:$0xff]
  %v25 = vld [vmem:[%s0 + $0x44] sm:$0xff]
  %v26 = vld [vmem:[%s0 + $0x4c] sm:$0xf]
  %v27 = vld [vmem:[%s0 + $0x50] sm:$0xff]
  %v28 = vld [vmem:[%s0 + $0x58] sm:$0xff]
  %v29 = vld [vmem:[%s0 + $0x60] sm:$0xf]
  %v30 = vld [vmem:[%s0 + $0x64] sm:$0xff]
  %v31 = vld [vmem:[%s0 + $0x6c] sm:$0xff]
  %v32 = vld [vmem:[%s0 + $0x74] sm:$0xf]
  %v33 = vld [vmem:[%s0 + $0x78] sm:$0xff]
  %v34 = vld [vmem:[%s0 + $0x80] sm:$0xff]
  %v35 = vld [vmem:[%s0 + $0x88] sm:$0xf]
  %v36 = vld [vmem:[%s0 + $0x8c] sm:$0xff]
  %v37 = vld [vmem:[%s0 + $0x94] sm:$0xff]
  %v38 = vld [vmem:[%s0 + $0x9c] sm:$0xf]
  %v39 = vld [vmem:[%s0 + $0xa0] sm:$0xff]
  %v40 = vld [vmem:[%s0 + $0xa8] sm:$0xff]
  %v41 = vld [vmem:[%s0 + $0xb0] sm:$0xf]
  %v42 = vld [vmem:[%s0 + $0xb4] sm:$0xff]
  %v43 = vld [vmem:[%s0 + $0xbc] sm:$0xff]
  %v44 = vld [vmem:[%s0 + $0xc4] sm:$0xf]
  %v45 = vld [vmem:[%s0 + $0xc8] sm:$0xff]
  %v46 = vld [vmem:[%s0 + $0xd0] sm:$0xff]
  %v47 = vld [vmem:[%s0 + $0xd8] sm:$0xf]
  %v48 = vld [vmem:[%s0 + $0xdc] sm:$0xff]
  %v49 = vld [vmem:[%s0 + $0xe4] sm:$0xff]
  %v50 = vld [vmem:[%s0 + $0xec] sm:$0xf]
  %v51 = vld [vmem:[%s0 + $0xf0] sm:$0xff]
  %v52 = vld [vmem:[%s0 + $0xf8] sm:$0xff]
  %v53 = vld [vmem:[%s0 + $0x100] sm:$0xf]
  %v54 = vld [vmem:[%s0 + $0x104] sm:$0xff]
  %v55 = vld [vmem:[%s0 + $0x10c] sm:$0xff]
  %v56 = vld [vmem:[%s0 + $0x114] sm:$0xf]
  %v57 = vld [vmem:[%s0 + $0x118] sm:$0xff]
  %v58 = vld [vmem:[%s0 + $0x120] sm:$0xff]
  %v59 = vld [vmem:[%s0 + $0x128] sm:$0xf]
  %v60 = vld [vmem:[%s0 + $0x12c] sm:$0xff]
  %v61 = vld [vmem:[%s0 + $0x134] sm:$0xff]
  %v62 = vld [vmem:[%s0 + $0x13c] sm:$0xf]
  %v63 = vld [vmem:[%s1] sm:$0xf]
  %v64 = vld [vmem:[%s1 + $0x4] sm:$0xf]
  %v65 = vld [vmem:[%s1 + $0x8] sm:$0xf]
  %v66 = vld [vmem:[%s1 + $0xc] sm:$0xf]
  %v67 = vld [vmem:[%s1 + $0x10] sm:$0xf]
  %v68 = vld [vmem:[%s1 + $0x14] sm:$0xf]
  %v69 = vld [vmem:[%s1 + $0x18] sm:$0xf]
  %v70 = vld [vmem:[%s1 + $0x1c] sm:$0xf]
  %v71 = vld [vmem:[%s1 + $0x20] sm:$0xf]
  %v72 = vld [vmem:[%s1 + $0x24] sm:$0xf]
  %v73 = vld [vmem:[%s1 + $0x28] sm:$0xf]
  %v74 = vld [vmem:[%s1 + $0x2c] sm:$0xf]
  %v75 = vld [vmem:[%s1 + $0x30] sm:$0xf]
  %v76 = vld [vmem:[%s1 + $0x34] sm:$0xf]
  %v77 = vld [vmem:[%s1 + $0x38] sm:$0xf]
  %v78 = vld [vmem:[%s1 + $0x3c] sm:$0xf]
  %v79 = vld [vmem:[%s1 + $0x40] sm:$0xf]
  %v80 = vld [vmem:[%s1 + $0x44] sm:$0xf]
  %v81 = vld [vmem:[%s1 + $0x48] sm:$0xf]
  %v82 = vld [vmem:[%s1 + $0x4c] sm:$0xf]
  %v83 = vld [vmem:[%s1 + $0x50] sm:$0xf]
  %v84 = vld [vmem:[%s1 + $0x54] sm:$0xf]
  %v85 = vld [vmem:[%s1 + $0x58] sm:$0xf]
  %v86 = vld [vmem:[%s1 + $0x5c] sm:$0xf]
  %v87 = vld [vmem:[%s1 + $0x60] sm:$0xf]
  %v88 = vld [vmem:[%s1 + $0x64] sm:$0xf]
  %v89 = vld [vmem:[%s1 + $0x68] sm:$0xf]
  %v90 = vld [vmem:[%s1 + $0x6c] sm:$0xf]
  %v91 = vld [vmem:[%s1 + $0x70] sm:$0xf]
  %v92 = vld [vmem:[%s1 + $0x74] sm:$0xf]
  %v93 = vld [vmem:[%s1 + $0x78] sm:$0xf]
  %v94 = vld [vmem:[%s1 + $0x7c] sm:$0xf]
  %v95 = vld [vmem:[%s1 + $0x80] sm:$0xf]
  %v96 = vld [vmem:[%s1 + $0x84] sm:$0xf]
  %v97 = vld [vmem:[%s1 + $0x88] sm:$0xf]
  %v98 = vld [vmem:[%s1 + $0x8c] sm:$0xf]
  %v99 = vld [vmem:[%s1 + $0x90] sm:$0xf]
  %v100 = vld [vmem:[%s1 + $0x94] sm:$0xf]
  %v101 = vld [vmem:[%s1 + $0x98] sm:$0xf]
  %v102 = vld [vmem:[%s1 + $0x9c] sm:$0xf]
  %v103 = vld [vmem:[%s1 + $0xa0] sm:$0xf]
  %v104 = vld [vmem:[%s1 + $0xa4] sm:$0xf]
  %v105 = vld [vmem:[%s1 + $0xa8] sm:$0xf]
  %v106 = vld [vmem:[%s1 + $0xac] sm:$0xf]
  %v107 = vld [vmem:[%s1 + $0xb0] sm:$0xf]
  %v108 = vld [vmem:[%s1 + $0xb4] sm:$0xf]
  %v109 = vld [vmem:[%s1 + $0xb8] sm:$0xf]
  %v110 = vld [vmem:[%s1 + $0xbc] sm:$0xf]
  %v111 = vld [vmem:[%s1 + $0xc0] sm:$0xf]
  %v112 = vld [vmem:[%s1 + $0xc4] sm:$0xf]
  %v113 = vld [vmem:[%s1 + $0xc8] sm:$0xf]
  %v114 = vld [vmem:[%s1 + $0xcc] sm:$0xf]
  %v115 = vld [vmem:[%s1 + $0xd0] sm:$0xf]
  %v116 = vld [vmem:[%s1 + $0xd4] sm:$0xf]
  %v117 = vld [vmem:[%s1 + $0xd8] sm:$0xf]
  %v118 = vld [vmem:[%s1 + $0xdc] sm:$0xf]
  %v119 = vld [vmem:[%s1 + $0xe0] sm:$0xf]
  %v120 = vld [vmem:[%s1 + $0xe4] sm:$0xf]
  %v121 = vld [vmem:[%s1 + $0xe8] sm:$0xf]
  %v122 = vld [vmem:[%s1 + $0xec] sm:$0xf]
  %v123 = vld [vmem:[%s1 + $0xf0] sm:$0xf]
  %v124 = vld [vmem:[%s1 + $0xf4] sm:$0xf]
  %v125 = vld [vmem:[%s1 + $0xf8] sm:$0xf]
  %v126 = vld [vmem:[%s1 + $0xfc] sm:$0xf]
  %v127 = vld [vmem:[%s1 + $0x100] sm:$0xf]
  %v128 = vld [vmem:[%s1 + $0x104] sm:$0xf]
  %v129 = vld [vmem:[%s1 + $0x108] sm:$0xf]
  %v130 = vld [vmem:[%s1 + $0x10c] sm:$0xf]
  %v131 = vld [vmem:[%s1 + $0x110] sm:$0xf]
  %v132 = vld [vmem:[%s1 + $0x114] sm:$0xf]
  %v133 = vld [vmem:[%s1 + $0x118] sm:$0xf]
  %v134 = vld [vmem:[%s1 + $0x11c] sm:$0xf]
  %v135 = vld [vmem:[%s2] sm:$0x1]
  %v137 = vlaneseq
  %v138 = vshrl.u32 %v137, 7
  %v139 = vsub.s32 0, %v138
  %v140 = vrot.slane %v135, %v139
  %v190 = vunpack.c.l.b16 %v15
  %v191 = vunpack.c.h.b16 %v15
  %v192 = vunpack.c.l.b16 %v16
  %v193 = vunpack.c.h.b16 %v16
  %v194 = vunpack.c.l.b16 %v17
  %v195 = vunpack.c.l.b16 %v18
  %v196 = vunpack.c.h.b16 %v18
  %v197 = vunpack.c.l.b16 %v19
  %v198 = vunpack.c.h.b16 %v19
  %v199 = vunpack.c.l.b16 %v20
  %v200 = vunpack.c.l.b16 %v21
  %v201 = vunpack.c.h.b16 %v21
  %v202 = vunpack.c.l.b16 %v22
  %v203 = vunpack.c.h.b16 %v22
  %v204 = vunpack.c.l.b16 %v23
  %v205 = vunpack.c.l.b16 %v24
  %v206 = vunpack.c.h.b16 %v24
  %v207 = vunpack.c.l.b16 %v25
  %v208 = vunpack.c.h.b16 %v25
  %v209 = vunpack.c.l.b16 %v26
  %v210 = vunpack.c.l.b16 %v27
  %v211 = vunpack.c.h.b16 %v27
  %v212 = vunpack.c.l.b16 %v28
  %v213 = vunpack.c.h.b16 %v28
  %v214 = vunpack.c.l.b16 %v29
  %v215 = vunpack.c.l.b16 %v30
  %v216 = vunpack.c.h.b16 %v30
  %v217 = vunpack.c.l.b16 %v31
  %v218 = vunpack.c.h.b16 %v31
  %v219 = vunpack.c.l.b16 %v32
  %v220 = vunpack.c.l.b16 %v33
  %v221 = vunpack.c.h.b16 %v33
  %v222 = vunpack.c.l.b16 %v34
  %v223 = vunpack.c.h.b16 %v34
  %v224 = vunpack.c.l.b16 %v35
  %v225 = vunpack.c.l.b16 %v36
  %v226 = vunpack.c.h.b16 %v36
  %v227 = vunpack.c.l.b16 %v37
  %v228 = vunpack.c.h.b16 %v37
  %v229 = vunpack.c.l.b16 %v38
  %v230 = vunpack.c.l.b16 %v39
  %v231 = vunpack.c.h.b16 %v39
  %v232 = vunpack.c.l.b16 %v40
  %v233 = vunpack.c.h.b16 %v40
  %v234 = vunpack.c.l.b16 %v41
  %v235 = vunpack.c.l.b16 %v42
  %v236 = vunpack.c.h.b16 %v42
  %v237 = vunpack.c.l.b16 %v43
  %v238 = vunpack.c.h.b16 %v43
  %v239 = vunpack.c.l.b16 %v44
  %v240 = vunpack.c.l.b16 %v45
  %v241 = vunpack.c.h.b16 %v45
  %v242 = vunpack.c.l.b16 %v46
  %v243 = vunpack.c.h.b16 %v46
  %v244 = vunpack.c.l.b16 %v47
  %v245 = vunpack.c.l.b16 %v48
  %v246 = vunpack.c.h.b16 %v48
  %v247 = vunpack.c.l.b16 %v49
  %v248 = vunpack.c.h.b16 %v49
  %v249 = vunpack.c.l.b16 %v50
  %v250 = vunpack.c.l.b16 %v51
  %v251 = vunpack.c.h.b16 %v51
  %v252 = vunpack.c.l.b16 %v52
  %v253 = vunpack.c.h.b16 %v52
  %v254 = vunpack.c.l.b16 %v53
  %v255 = vunpack.c.l.b16 %v54
  %v256 = vunpack.c.h.b16 %v54
  %v257 = vunpack.c.l.b16 %v55
  %v258 = vunpack.c.h.b16 %v55
  %v259 = vunpack.c.l.b16 %v56
  %v260 = vunpack.c.l.b16 %v57
  %v261 = vunpack.c.h.b16 %v57
  %v262 = vunpack.c.l.b16 %v58
  %v263 = vunpack.c.h.b16 %v58
  %v264 = vunpack.c.l.b16 %v59
  %v265 = vunpack.c.l.b16 %v60
  %v266 = vunpack.c.h.b16 %v60
  %v267 = vunpack.c.l.b16 %v61
  %v268 = vunpack.c.h.b16 %v61
  %v269 = vunpack.c.l.b16 %v62
  %v270 = vpack.c.b16 %v195, %v190
  %v271 = vpack.c.b16 %v196, %v191
  %v272 = vpack.c.b16 %v197, %v192
  %v273 = vpack.c.b16 %v198, %v193
  %v274 = vpack.c.b16 %v199, %v194
  %v275 = vpack.c.b16 %v205, %v200
  %v276 = vpack.c.b16 %v206, %v201
  %v277 = vpack.c.b16 %v207, %v202
  %v278 = vpack.c.b16 %v208, %v203
  %v279 = vpack.c.b16 %v209, %v204
  %v280 = vpack.c.b16 %v215, %v210
  %v281 = vpack.c.b16 %v216, %v211
  %v282 = vpack.c.b16 %v217, %v212
  %v283 = vpack.c.b16 %v218, %v213
  %v284 = vpack.c.b16 %v219, %v214
  %v285 = vpack.c.b16 %v225, %v220
  %v286 = vpack.c.b16 %v226, %v221
  %v287 = vpack.c.b16 %v227, %v222
  %v288 = vpack.c.b16 %v228, %v223
  %v289 = vpack.c.b16 %v229, %v224
  %v290 = vpack.c.b16 %v235, %v230
  %v291 = vpack.c.b16 %v236, %v231
  %v292 = vpack.c.b16 %v237, %v232
  %v293 = vpack.c.b16 %v238, %v233
  %v294 = vpack.c.b16 %v239, %v234
  %v295 = vpack.c.b16 %v245, %v240
  %v296 = vpack.c.b16 %v246, %v241
  %v297 = vpack.c.b16 %v247, %v242
  %v298 = vpack.c.b16 %v248, %v243
  %v299 = vpack.c.b16 %v249, %v244
  %v300 = vpack.c.b16 %v255, %v250
  %v301 = vpack.c.b16 %v256, %v251
  %v302 = vpack.c.b16 %v257, %v252
  %v303 = vpack.c.b16 %v258, %v253
  %v304 = vpack.c.b16 %v259, %v254
  %v305 = vpack.c.b16 %v265, %v260
  %v306 = vpack.c.b16 %v266, %v261
  %v307 = vpack.c.b16 %v267, %v262
  %v308 = vpack.c.b16 %v268, %v263
  %v309 = vpack.c.b16 %v269, %v264
  %v414 = vunpack.c.l.b16 %v63
  %v415 = vunpack.c.l.b16 %v64
  %v416 = vunpack.c.l.b16 %v65
  %v417 = vunpack.c.l.b16 %v66
  %v418 = vunpack.c.l.b16 %v67
  %v419 = vunpack.c.l.b16 %v68
  %v420 = vunpack.c.l.b16 %v69
  %v421 = vunpack.c.l.b16 %v70
  %v422 = vunpack.c.l.b16 %v71
  %v423 = vunpack.c.l.b16 %v72
  %v424 = vunpack.c.l.b16 %v73
  %v425 = vunpack.c.l.b16 %v74
  %v426 = vunpack.c.l.b16 %v75
  %v427 = vunpack.c.l.b16 %v76
  %v428 = vunpack.c.l.b16 %v77
  %v429 = vunpack.c.l.b16 %v78
  %v430 = vunpack.c.l.b16 %v79
  %v431 = vunpack.c.l.b16 %v80
  %v432 = vunpack.c.l.b16 %v81
  %v433 = vunpack.c.l.b16 %v82
  %v434 = vunpack.c.l.b16 %v83
  %v435 = vunpack.c.l.b16 %v84
  %v436 = vunpack.c.l.b16 %v85
  %v437 = vunpack.c.l.b16 %v86
  %v438 = vunpack.c.l.b16 %v87
  %v439 = vunpack.c.l.b16 %v88
  %v440 = vunpack.c.l.b16 %v89
  %v441 = vunpack.c.l.b16 %v90
  %v442 = vunpack.c.l.b16 %v91
  %v443 = vunpack.c.l.b16 %v92
  %v444 = vunpack.c.l.b16 %v93
  %v445 = vunpack.c.l.b16 %v94
  %v446 = vunpack.c.l.b16 %v95
  %v447 = vunpack.c.l.b16 %v96
  %v448 = vunpack.c.l.b16 %v97
  %v449 = vunpack.c.l.b16 %v98
  %v450 = vunpack.c.l.b16 %v99
  %v451 = vunpack.c.l.b16 %v100
  %v452 = vunpack.c.l.b16 %v101
  %v453 = vunpack.c.l.b16 %v102
  %v454 = vunpack.c.l.b16 %v103
  %v455 = vunpack.c.l.b16 %v104
  %v456 = vunpack.c.l.b16 %v105
  %v457 = vunpack.c.l.b16 %v106
  %v458 = vunpack.c.l.b16 %v107
  %v459 = vunpack.c.l.b16 %v108
  %v460 = vunpack.c.l.b16 %v109
  %v461 = vunpack.c.l.b16 %v110
  %v462 = vunpack.c.l.b16 %v111
  %v463 = vunpack.c.l.b16 %v112
  %v464 = vunpack.c.l.b16 %v113
  %v465 = vunpack.c.l.b16 %v114
  %v466 = vunpack.c.l.b16 %v115
  %v467 = vunpack.c.l.b16 %v116
  %v468 = vunpack.c.l.b16 %v117
  %v469 = vunpack.c.l.b16 %v118
  %v470 = vunpack.c.l.b16 %v119
  %v471 = vunpack.c.l.b16 %v120
  %v472 = vunpack.c.l.b16 %v121
  %v473 = vunpack.c.l.b16 %v122
  %v474 = vunpack.c.l.b16 %v123
  %v475 = vunpack.c.l.b16 %v124
  %v476 = vunpack.c.l.b16 %v125
  %v477 = vunpack.c.l.b16 %v126
  %v478 = vunpack.c.l.b16 %v127
  %v479 = vunpack.c.l.b16 %v128
  %v480 = vunpack.c.l.b16 %v129
  %v481 = vunpack.c.l.b16 %v130
  %v482 = vunpack.c.l.b16 %v131
  %v483 = vunpack.c.l.b16 %v132
  %v484 = vunpack.c.l.b16 %v133
  %v485 = vunpack.c.l.b16 %v134
  %v486 = vpack.c.b16 %v415, %v414
  %v487 = vpack.c.b16 %v417, %v416
  %v488 = vpack.c.b16 %v419, %v418
  %v489 = vpack.c.b16 %v421, %v420
  %v490 = vpack.c.b16 %v423, %v422
  %v491 = vpack.c.b16 %v425, %v424
  %v492 = vpack.c.b16 %v427, %v426
  %v493 = vpack.c.b16 %v429, %v428
  %v494 = vpack.c.b16 %v431, %v430
  %v495 = vpack.c.b16 %v433, %v432
  %v496 = vpack.c.b16 %v435, %v434
  %v497 = vpack.c.b16 %v437, %v436
  %v498 = vpack.c.b16 %v439, %v438
  %v499 = vpack.c.b16 %v441, %v440
  %v500 = vpack.c.b16 %v443, %v442
  %v501 = vpack.c.b16 %v445, %v444
  %v502 = vpack.c.b16 %v447, %v446
  %v503 = vpack.c.b16 %v449, %v448
  %v504 = vpack.c.b16 %v451, %v450
  %v505 = vpack.c.b16 %v453, %v452
  %v506 = vpack.c.b16 %v455, %v454
  %v507 = vpack.c.b16 %v457, %v456
  %v508 = vpack.c.b16 %v459, %v458
  %v509 = vpack.c.b16 %v461, %v460
  %v510 = vpack.c.b16 %v463, %v462
  %v511 = vpack.c.b16 %v465, %v464
  %v512 = vpack.c.b16 %v467, %v466
  %v513 = vpack.c.b16 %v469, %v468
  %v514 = vpack.c.b16 %v471, %v470
  %v515 = vpack.c.b16 %v473, %v472
  %v516 = vpack.c.b16 %v475, %v474
  %v517 = vpack.c.b16 %v477, %v476
  %v518 = vpack.c.b16 %v479, %v478
  %v519 = vpack.c.b16 %v481, %v480
  %v520 = vpack.c.b16 %v483, %v482
  %v521 = vpack.c.b16 %v485, %v484
  %vm558 = vcmask 523264
  %v560 = vsel %vm558, %v274, 0
  %v563 = vsel %vm558, %v279, 0
  %v566 = vsel %vm558, %v284, 0
  %v569 = vsel %vm558, %v289, 0
  %v572 = vsel %vm558, %v294, 0
  %v575 = vsel %vm558, %v299, 0
  %v578 = vsel %vm558, %v304, 0
  %v581 = vsel %vm558, %v309, 0
  %583 = vmatprep.subr.bf16.mxu0 0
  %584 = vmatpush1.bf16.msra.mxu0 %v486
  %585 = vmatprep.subr.bf16.mxu0 0
  %586 = vmatpush1.bf16.msra.mxu0 %v487
  %587 = vmatprep.subr.bf16.mxu0 0
  %588 = vmatpush1.bf16.msra.mxu0 %v488
  %589 = vmatprep.subr.bf16.mxu0 0
  %590 = vmatpush1.bf16.msra.mxu0 %v489
  %591 = vmatprep.subr.bf16.mxu0 0
  %592 = vmatpush1.bf16.msra.mxu0 %v490
  %593 = vmatprep.subr.bf16.mxu0 0
  %594 = vmatpush1.bf16.msra.mxu0 %v491
  %595 = vmatprep.subr.bf16.mxu0 0
  %596 = vmatpush1.bf16.msra.mxu0 %v492
  %597 = vmatprep.subr.bf16.mxu0 0
  %598 = vmatpush1.bf16.msra.mxu0 %v493
  %599 = vmatprep.subr.bf16.mxu0 0
  %600 = vmatpush1.bf16.msra.mxu0 %v494
  %601 = vmatprep.subr.bf16.mxu0 0
  %602 = vmatpush1.bf16.msra.mxu0 %v495
  %603 = vmatprep.subr.bf16.mxu0 0
  %604 = vmatpush1.bf16.msra.mxu0 %v496
  %605 = vmatprep.subr.bf16.mxu0 0
  %606 = vmatpush1.bf16.msra.mxu0 %v497
  %607 = vmatprep.subr.bf16.mxu0 0
  %608 = vmatpush1.bf16.msra.mxu0 %v498
  %609 = vmatprep.subr.bf16.mxu0 0
  %610 = vmatpush1.bf16.msra.mxu0 %v499
  %611 = vmatprep.subr.bf16.mxu0 0
  %612 = vmatpush1.bf16.msra.mxu0 %v500
  %613 = vmatprep.subr.bf16.mxu0 0
  %614 = vmatpush1.bf16.msra.mxu0 %v501
  %615 = vmatprep.mubr.bf16.mxu0 %v271
  %616 = vmatmul.mubr.bf16.gmra.mrb[0].mxu0 %v270
  %v617 = vpop.f32.mrb[0].mxu0
  %v618 = vadd.f32 %v140, %v617
  %v619 = vpop.f32.mrb[0].mxu0
  %v620 = vpop.f32.mrb[0].mxu0
  %v621 = vadd.f32 %v140, %v620
  %v622 = vpop.f32.mrb[0].mxu0
  %623 = vmatprep.mubr.bf16.mxu0 %v276
  %624 = vmatmul.mubr.bf16.gmra.mrb[0].mxu0 %v275
  %v625 = vpop.f32.mrb[0].mxu0
  %v626 = vadd.f32 %v140, %v625
  %v627 = vpop.f32.mrb[0].mxu0
  %v628 = vpop.f32.mrb[0].mxu0
  %v629 = vadd.f32 %v140, %v628
  %v630 = vpop.f32.mrb[0].mxu0
  %631 = vmatprep.mubr.bf16.mxu0 %v281
  %632 = vmatmul.mubr.bf16.gmra.mrb[0].mxu0 %v280
  %v633 = vpop.f32.mrb[0].mxu0
  %v634 = vadd.f32 %v140, %v633
  %v635 = vpop.f32.mrb[0].mxu0
  %v636 = vpop.f32.mrb[0].mxu0
  %v637 = vadd.f32 %v140, %v636
  %v638 = vpop.f32.mrb[0].mxu0
  %639 = vmatprep.mubr.bf16.mxu0 %v286
  %640 = vmatmul.mubr.bf16.gmra.mrb[0].mxu0 %v285
  %v641 = vpop.f32.mrb[0].mxu0
  %v642 = vadd.f32 %v140, %v641
  %v643 = vpop.f32.mrb[0].mxu0
  %v644 = vpop.f32.mrb[0].mxu0
  %v645 = vadd.f32 %v140, %v644
  %v646 = vpop.f32.mrb[0].mxu0
  %647 = vmatprep.mubr.bf16.mxu0 %v291
  %648 = vmatmul.mubr.bf16.gmra.mrb[0].mxu0 %v290
  %v649 = vpop.f32.mrb[0].mxu0
  %v650 = vadd.f32 %v140, %v649
  %v651 = vpop.f32.mrb[0].mxu0
  %v652 = vpop.f32.mrb[0].mxu0
  %v653 = vadd.f32 %v140, %v652
  %v654 = vpop.f32.mrb[0].mxu0
  %655 = vmatprep.mubr.bf16.mxu0 %v296
  %656 = vmatmul.mubr.bf16.gmra.mrb[0].mxu0 %v295
  %v657 = vpop.f32.mrb[0].mxu0
  %v658 = vadd.f32 %v140, %v657
  %v659 = vpop.f32.mrb[0].mxu0
  %v660 = vpop.f32.mrb[0].mxu0
  %v661 = vadd.f32 %v140, %v660
  %v662 = vpop.f32.mrb[0].mxu0
  %663 = vmatprep.mubr.bf16.mxu0 %v301
  %664 = vmatmul.mubr.bf16.gmra.mrb[0].mxu0 %v300
  %v665 = vpop.f32.mrb[0].mxu0
  %v666 = vadd.f32 %v140, %v665
  %v667 = vpop.f32.mrb[0].mxu0
  %v668 = vpop.f32.mrb[0].mxu0
  %v669 = vadd.f32 %v140, %v668
  %v670 = vpop.f32.mrb[0].mxu0
  %671 = vmatprep.mubr.bf16.mxu0 %v306
  %672 = vmatmul.mubr.bf16.gmra.mrb[0].mxu0 %v305
  %v673 = vpop.f32.mrb[0].mxu0
  %v674 = vadd.f32 %v140, %v673
  %v675 = vpop.f32.mrb[0].mxu0
  %v676 = vpop.f32.mrb[0].mxu0
  %v677 = vadd.f32 %v140, %v676
  %v678 = vpop.f32.mrb[0].mxu0
  %679 = vdwg.mxu0
  %680 = vmatprep.subr.bf16.mxu0 0
  %681 = vmatpush1.bf16.msra.mxu0 %v502
  %682 = vmatprep.subr.bf16.mxu0 0
  %683 = vmatpush1.bf16.msra.mxu0 %v503
  %684 = vmatprep.subr.bf16.mxu0 0
  %685 = vmatpush1.bf16.msra.mxu0 %v504
  %686 = vmatprep.subr.bf16.mxu0 0
  %687 = vmatpush1.bf16.msra.mxu0 %v505
  %688 = vmatprep.subr.bf16.mxu0 0
  %689 = vmatpush1.bf16.msra.mxu0 %v506
  %690 = vmatprep.subr.bf16.mxu0 0
  %691 = vmatpush1.bf16.msra.mxu0 %v507
  %692 = vmatprep.subr.bf16.mxu0 0
  %693 = vmatpush1.bf16.msra.mxu0 %v508
  %694 = vmatprep.subr.bf16.mxu0 0
  %695 = vmatpush1.bf16.msra.mxu0 %v509
  %696 = vmatprep.subr.bf16.mxu0 0
  %697 = vmatpush1.bf16.msra.mxu0 %v510
  %698 = vmatprep.subr.bf16.mxu0 0
  %699 = vmatpush1.bf16.msra.mxu0 %v511
  %700 = vmatprep.subr.bf16.mxu0 0
  %701 = vmatpush1.bf16.msra.mxu0 %v512
  %702 = vmatprep.subr.bf16.mxu0 0
  %703 = vmatpush1.bf16.msra.mxu0 %v513
  %704 = vmatprep.subr.bf16.mxu0 0
  %705 = vmatpush1.bf16.msra.mxu0 %v514
  %706 = vmatprep.subr.bf16.mxu0 0
  %707 = vmatpush1.bf16.msra.mxu0 %v515
  %708 = vmatprep.subr.bf16.mxu0 0
  %709 = vmatpush1.bf16.msra.mxu0 %v516
  %710 = vmatprep.subr.bf16.mxu0 0
  %711 = vmatpush1.bf16.msra.mxu0 %v517
  %712 = vmatprep.mubr.bf16.mxu0 %v273
  %713 = vmatmul.mubr.bf16.gmra.mrb[0].mxu0 %v272
  %v714 = vpop.f32.mrb[0].mxu0
  %v715 = vadd.f32 %v618, %v714
  %v716 = vpop.f32.mrb[0].mxu0
  %v717 = vpop.f32.mrb[0].mxu0
  %v718 = vadd.f32 %v621, %v717
  %v719 = vpop.f32.mrb[0].mxu0
  %720 = vmatprep.mubr.bf16.mxu0 %v278
  %721 = vmatmul.mubr.bf16.gmra.mrb[0].mxu0 %v277
  %v722 = vpop.f32.mrb[0].mxu0
  %v723 = vadd.f32 %v626, %v722
  %v724 = vpop.f32.mrb[0].mxu0
  %v725 = vpop.f32.mrb[0].mxu0
  %v726 = vadd.f32 %v629, %v725
  %v727 = vpop.f32.mrb[0].mxu0
  %728 = vmatprep.mubr.bf16.mxu0 %v283
  %729 = vmatmul.mubr.bf16.gmra.mrb[0].mxu0 %v282
  %v730 = vpop.f32.mrb[0].mxu0
  %v731 = vadd.f32 %v634, %v730
  %v732 = vpop.f32.mrb[0].mxu0
  %v733 = vpop.f32.mrb[0].mxu0
  %v734 = vadd.f32 %v637, %v733
  %v735 = vpop.f32.mrb[0].mxu0
  %736 = vmatprep.mubr.bf16.mxu0 %v288
  %737 = vmatmul.mubr.bf16.gmra.mrb[0].mxu0 %v287
  %v738 = vpop.f32.mrb[0].mxu0
  %v739 = vadd.f32 %v642, %v738
  %v740 = vpop.f32.mrb[0].mxu0
  %v741 = vpop.f32.mrb[0].mxu0
  %v742 = vadd.f32 %v645, %v741
  %v743 = vpop.f32.mrb[0].mxu0
  %744 = vmatprep.mubr.bf16.mxu0 %v293
  %745 = vmatmul.mubr.bf16.gmra.mrb[0].mxu0 %v292
  %v746 = vpop.f32.mrb[0].mxu0
  %v747 = vadd.f32 %v650, %v746
  %v748 = vpop.f32.mrb[0].mxu0
  %v749 = vpop.f32.mrb[0].mxu0
  %v750 = vadd.f32 %v653, %v749
  %v751 = vpop.f32.mrb[0].mxu0
  %752 = vmatprep.mubr.bf16.mxu0 %v298
  %753 = vmatmul.mubr.bf16.gmra.mrb[0].mxu0 %v297
  %v754 = vpop.f32.mrb[0].mxu0
  %v755 = vadd.f32 %v658, %v754
  %v756 = vpop.f32.mrb[0].mxu0
  %v757 = vpop.f32.mrb[0].mxu0
  %v758 = vadd.f32 %v661, %v757
  %v759 = vpop.f32.mrb[0].mxu0
  %760 = vmatprep.mubr.bf16.mxu0 %v303
  %761 = vmatmul.mubr.bf16.gmra.mrb[0].mxu0 %v302
  %v762 = vpop.f32.mrb[0].mxu0
  %v763 = vadd.f32 %v666, %v762
  %v764 = vpop.f32.mrb[0].mxu0
  %v765 = vpop.f32.mrb[0].mxu0
  %v766 = vadd.f32 %v669, %v765
  %v767 = vpop.f32.mrb[0].mxu0
  %768 = vmatprep.mubr.bf16.mxu0 %v308
  %769 = vmatmul.mubr.bf16.gmra.mrb[0].mxu0 %v307
  %v770 = vpop.f32.mrb[0].mxu0
  %v771 = vadd.f32 %v674, %v770
  %v772 = vpop.f32.mrb[0].mxu0
  %v773 = vpop.f32.mrb[0].mxu0
  %v774 = vadd.f32 %v677, %v773
  %v775 = vpop.f32.mrb[0].mxu0
  %776 = vdwg.mxu0
  %777 = vmatprep.subr.bf16.mxu0 0
  %778 = vmatpush1.bf16.msra.mxu0 %v518
  %779 = vmatprep.subr.bf16.mxu0 0
  %780 = vmatpush1.bf16.msra.mxu0 %v519
  %781 = vmatprep.subr.bf16.mxu0 0
  %782 = vmatpush1.bf16.msra.mxu0 %v520
  %783 = vmatprep.subr.bf16.mxu0 0
  %784 = vmatpush1.bf16.msra.mxu0 %v521
  %785 = vmatprep.subr.bf16.mxu0 0
  %786 = vmatpush1.bf16.msra.mxu0 0
  %787 = vmatprep.subr.bf16.mxu0 0
  %788 = vmatpush1.bf16.msra.mxu0 0
  %789 = vmatprep.subr.bf16.mxu0 0
  %790 = vmatpush1.bf16.msra.mxu0 0
  %791 = vmatprep.subr.bf16.mxu0 0
  %792 = vmatpush1.bf16.msra.mxu0 0
  %793 = vmatprep.subr.bf16.mxu0 0
  %794 = vmatpush1.bf16.msra.mxu0 0
  %795 = vmatprep.subr.bf16.mxu0 0
  %796 = vmatpush1.bf16.msra.mxu0 0
  %797 = vmatprep.subr.bf16.mxu0 0
  %798 = vmatpush1.bf16.msra.mxu0 0
  %799 = vmatprep.subr.bf16.mxu0 0
  %800 = vmatpush1.bf16.msra.mxu0 0
  %801 = vmatprep.subr.bf16.mxu0 0
  %802 = vmatpush1.bf16.msra.mxu0 0
  %803 = vmatprep.subr.bf16.mxu0 0
  %804 = vmatpush1.bf16.msra.mxu0 0
  %805 = vmatprep.subr.bf16.mxu0 0
  %806 = vmatpush1.bf16.msra.mxu0 0
  %807 = vmatprep.subr.bf16.mxu0 0
  %808 = vmatpush1.bf16.msra.mxu0 0
  %809 = vmatprep.mubr.bf16.mxu0 0
  %810 = vmatmul.mubr.bf16.gmra.mrb[0].mxu0 %v560
  %v811 = vpop.f32.mrb[0].mxu0
  %v812 = vadd.f32 %v715, %v811
  %v813 = vpop.f32.mrb[0].mxu0
  %v814 = vpop.f32.mrb[0].mxu0
  %v815 = vadd.f32 %v718, %v814
  %v816 = vpop.f32.mrb[0].mxu0
  %817 = vmatprep.mubr.bf16.mxu0 0
  %818 = vmatmul.mubr.bf16.gmra.mrb[0].mxu0 %v563
  %v819 = vpop.f32.mrb[0].mxu0
  %v820 = vadd.f32 %v723, %v819
  %v821 = vpop.f32.mrb[0].mxu0
  %v822 = vpop.f32.mrb[0].mxu0
  %v823 = vadd.f32 %v726, %v822
  %v824 = vpop.f32.mrb[0].mxu0
  %825 = vmatprep.mubr.bf16.mxu0 0
  %826 = vmatmul.mubr.bf16.gmra.mrb[0].mxu0 %v566
  %v827 = vpop.f32.mrb[0].mxu0
  %v828 = vadd.f32 %v731, %v827
  %v829 = vpop.f32.mrb[0].mxu0
  %v830 = vpop.f32.mrb[0].mxu0
  %v831 = vadd.f32 %v734, %v830
  %v832 = vpop.f32.mrb[0].mxu0
  %833 = vmatprep.mubr.bf16.mxu0 0
  %834 = vmatmul.mubr.bf16.gmra.mrb[0].mxu0 %v569
  %v835 = vpop.f32.mrb[0].mxu0
  %v836 = vadd.f32 %v739, %v835
  %v837 = vpop.f32.mrb[0].mxu0
  %v838 = vpop.f32.mrb[0].mxu0
  %v839 = vadd.f32 %v742, %v838
  %v840 = vpop.f32.mrb[0].mxu0
  %841 = vmatprep.mubr.bf16.mxu0 0
  %842 = vmatmul.mubr.bf16.gmra.mrb[0].mxu0 %v572
  %v843 = vpop.f32.mrb[0].mxu0
  %v844 = vadd.f32 %v747, %v843
  %v845 = vpop.f32.mrb[0].mxu0
  %v846 = vpop.f32.mrb[0].mxu0
  %v847 = vadd.f32 %v750, %v846
  %v848 = vpop.f32.mrb[0].mxu0
  %849 = vmatprep.mubr.bf16.mxu0 0
  %850 = vmatmul.mubr.bf16.gmra.mrb[0].mxu0 %v575
  %v851 = vpop.f32.mrb[0].mxu0
  %v852 = vadd.f32 %v755, %v851
  %v853 = vpop.f32.mrb[0].mxu0
  %v854 = vpop.f32.mrb[0].mxu0
  %v855 = vadd.f32 %v758, %v854
  %v856 = vpop.f32.mrb[0].mxu0
  %857 = vmatprep.mubr.bf16.mxu0 0
  %858 = vmatmul.mubr.bf16.gmra.mrb[0].mxu0 %v578
  %v859 = vpop.f32.mrb[0].mxu0
  %v860 = vadd.f32 %v763, %v859
  %v861 = vpop.f32.mrb[0].mxu0
  %v862 = vpop.f32.mrb[0].mxu0
  %v863 = vadd.f32 %v766, %v862
  %v864 = vpop.f32.mrb[0].mxu0
  %865 = vmatprep.mubr.bf16.mxu0 0
  %866 = vmatmul.mubr.bf16.gmra.mrb[0].mxu0 %v581
  %v867 = vpop.f32.mrb[0].mxu0
  %v868 = vadd.f32 %v771, %v867
  %v869 = vpop.f32.mrb[0].mxu0
  %v870 = vpop.f32.mrb[0].mxu0
  %v871 = vadd.f32 %v774, %v870
  %v872 = vpop.f32.mrb[0].mxu0
  %873 = vdwg.mxu0
  %v874 = vmax.f32 %v812, 0.0
  %v875 = vmax.f32 %v815, 0.0
  %v876 = vmax.f32 %v820, 0.0
  %v877 = vmax.f32 %v823, 0.0
  %v878 = vmax.f32 %v828, 0.0
  %v879 = vmax.f32 %v831, 0.0
  %v880 = vmax.f32 %v836, 0.0
  %v881 = vmax.f32 %v839, 0.0
  %v882 = vmax.f32 %v844, 0.0
  %v883 = vmax.f32 %v847, 0.0
  %v884 = vmax.f32 %v852, 0.0
  %v885 = vmax.f32 %v855, 0.0
  %v886 = vmax.f32 %v860, 0.0
  %v887 = vmax.f32 %v863, 0.0
  %v888 = vmax.f32 %v868, 0.0
  %v889 = vmax.f32 %v871, 0.0
  %v890 = vpack.c.bf16 %v875, %v874
  %v891 = vpack.c.bf16 %v877, %v876
  %v892 = vpack.c.bf16 %v879, %v878
  %v893 = vpack.c.bf16 %v881, %v880
  %v894 = vpack.c.bf16 %v883, %v882
  %v895 = vpack.c.bf16 %v885, %v884
  %v896 = vpack.c.bf16 %v887, %v886
  %v897 = vpack.c.bf16 %v889, %v888
  %v906 = vunpack.c.l.b16 %v890
  %v907 = vunpack.c.h.b16 %v890
  %v908 = vunpack.c.l.b16 %v891
  %v909 = vunpack.c.h.b16 %v891
  %v910 = vunpack.c.l.b16 %v892
  %v911 = vunpack.c.h.b16 %v892
  %v912 = vunpack.c.l.b16 %v893
  %v913 = vunpack.c.h.b16 %v893
  %v914 = vunpack.c.l.b16 %v894
  %v915 = vunpack.c.h.b16 %v894
  %v916 = vunpack.c.l.b16 %v895
  %v917 = vunpack.c.h.b16 %v895
  %v918 = vunpack.c.l.b16 %v896
  %v919 = vunpack.c.h.b16 %v896
  %v920 = vunpack.c.l.b16 %v897
  %v921 = vunpack.c.h.b16 %v897
  %v922 = vpack.c.b16 %v906, %v906
  %v923 = vpack.c.b16 %v907, %v907
  %v924 = vpack.c.b16 %v908, %v908
  %v925 = vpack.c.b16 %v909, %v909
  %v926 = vpack.c.b16 %v910, %v910
  %v927 = vpack.c.b16 %v911, %v911
  %v928 = vpack.c.b16 %v912, %v912
  %v929 = vpack.c.b16 %v913, %v913
  %v930 = vpack.c.b16 %v914, %v914
  %v931 = vpack.c.b16 %v915, %v915
  %v932 = vpack.c.b16 %v916, %v916
  %v933 = vpack.c.b16 %v917, %v917
  %v934 = vpack.c.b16 %v918, %v918
  %v935 = vpack.c.b16 %v919, %v919
  %v936 = vpack.c.b16 %v920, %v920
  %v937 = vpack.c.b16 %v921, %v921
  %vm954 = vcmask 519168
  %955 = vst.msk [vmem:[%s3] sm:$0xf] %vm954, %v922
  %956 = vst.msk [vmem:[%s3 + $0x4] sm:$0xf] %vm954, %v923
  %957 = vst.msk [vmem:[%s3 + $0x8] sm:$0xf] %vm954, %v924
  %958 = vst.msk [vmem:[%s3 + $0xc] sm:$0xf] %vm954, %v925
  %959 = vst.msk [vmem:[%s3 + $0x10] sm:$0xf] %vm954, %v926
  %960 = vst.msk [vmem:[%s3 + $0x14] sm:$0xf] %vm954, %v927
  %961 = vst.msk [vmem:[%s3 + $0x18] sm:$0xf] %vm954, %v928
  %962 = vst.msk [vmem:[%s3 + $0x1c] sm:$0xf] %vm954, %v929
  %963 = vst.msk [vmem:[%s3 + $0x20] sm:$0xf] %vm954, %v930
  %964 = vst.msk [vmem:[%s3 + $0x24] sm:$0xf] %vm954, %v931
  %965 = vst.msk [vmem:[%s3 + $0x28] sm:$0xf] %vm954, %v932
  %966 = vst.msk [vmem:[%s3 + $0x2c] sm:$0xf] %vm954, %v933
  %967 = vst.msk [vmem:[%s3 + $0x30] sm:$0xf] %vm954, %v934
  %968 = vst.msk [vmem:[%s3 + $0x34] sm:$0xf] %vm954, %v935
  %969 = vst.msk [vmem:[%s3 + $0x38] sm:$0xf] %vm954, %v936
  %970 = vst.msk [vmem:[%s3 + $0x3c] sm:$0xf] %vm954, %v937
  // Predicated region
  $region14: #{dann_forward.8} parent=0 // pred_check
    _
  $region15: #{dann_forward.8} parent=0 // pred_check_branch
    %972 = sbr.rel (0) target = $region17
  $region16: #{dann_forward.8} parent=0 // pred_region
    _
  $region17: #{dann_forward.8} parent=0 // pred_fallthru
    _
  // Predicated region
  $region18: #{dann_forward.8} parent=0 // pred_check
    _
  $region19: #{dann_forward.8} parent=0 // pred_check_branch
    %974 = sbr.rel (0) target = $region21
  $region20: #{dann_forward.8} parent=0 // pred_region
    _
  $region21: #{dann_forward.8} parent=0 // pred_fallthru
    _

// kernel: dann_forward.9
$region0: #{dann_forward.9}
  #allocation0 [shape = 'u32[]', space=smem, size = 0x4, offset = 0x4, fixed_abs, tag = 'smem constant byte address 0x4 - core index']
  #allocation1 [shape = 'u32[144,128]{1,0:T(1,128)}', space=vmem, size = 0x12000, scoped, tag = 'internal scratch']
  %s0 = inlined_call_operand.vmem [shape: bf16[2,1024], index: 0, kind: input, shape index: {}]
  %s1 = inlined_call_operand.vmem [shape: bf16[2,1024], index: 1, kind: input, shape index: {}]
  %s2 = inlined_call_operand.vmem [shape: bf16[2,1024], index: 2, kind: input, shape index: {}]
  %s3 = inlined_call_operand.vmem [shape: bf16[2,1024], index: 3, kind: input, shape index: {}]
  %s4 = inlined_call_operand.vmem [shape: bf16[1024,256], index: 4, kind: input, shape index: {}]
  %s5 = inlined_call_operand.vmem [shape: f32[1,256], index: 5, kind: input, shape index: {}]
  %s6 = inlined_call_operand.vmem [shape: bf16[128,128], index: 6, kind: input, shape index: {}]
  %s7 = inlined_call_operand.vmem [shape: f32[1,128], index: 7, kind: input, shape index: {}]
  %s8 = inlined_call_operand.vmem [shape: bf16[128,128], index: 8, kind: input, shape index: {}]
  %s9 = inlined_call_operand.vmem [shape: f32[1,128], index: 9, kind: input, shape index: {}]
  %s10 = inlined_call_operand.vmem [shape: bf16[128,128], index: 10, kind: input, shape index: {}]
  %s11 = inlined_call_operand.vmem [shape: f32[1,128], index: 11, kind: input, shape index: {}]
  %s12 = inlined_call_operand.hbm [shape: f32[2,128], index: 12, kind: output, shape index: {0}]
  %s13 = inlined_call_operand.hbm [shape: f32[2,128], index: 13, kind: output, shape index: {1}]
  %14 = xla_tuple %s12, %s13
  %s15 = sld [smem:[#allocation0]]
  $region66: #{dann_forward.9} parent=0
    _
  %s17 = ssub.s32 1, %s15
  %s18 = scalar_select 0, %s17, %s15
  $region1: #{dann_forward.9} parent=0
    #allocation2 [shape = 'u8[1024]{0}', space=vmem, size = 0x400, scoped, tag = 'output window, operand 0, single buffered']
    #allocation3 [shape = 's32[1]{0}', space=sflag, size = 0x4, scoped, tag = 'scoped memory for dann_forward.9']
    #allocation4 [shape = 'u8[1024]{0}', space=vmem, size = 0x400, scoped, tag = 'output window, operand 1, single buffered']
    #allocation5 [shape = 's32[1]{0}', space=sflag, size = 0x4, scoped, tag = 'scoped memory for dann_forward.9']
    %19 = vsyncpa [#allocation3], 0
    %20 = vsyncpa [#allocation5], 0
    // Predicated region
    $region2: #{dann_forward.9} parent=1 // pred_check
      _
    $region3: #{dann_forward.9} parent=1 // pred_check_branch
      %22 = sbr.rel (0) target = $region5
    $region4: #{dann_forward.9} parent=1 // pred_region
      _
    $region5: #{dann_forward.9} parent=1 // pred_fallthru
      _
    // Predicated region
    $region6: #{dann_forward.9} parent=1 // pred_check
      _
    $region7: #{dann_forward.9} parent=1 // pred_check_branch
      %24 = sbr.rel (0) target = $region9
    $region8: #{dann_forward.9} parent=1 // pred_region
      _
    $region9: #{dann_forward.9} parent=1 // pred_fallthru
      _
    // Predicated region
    $region10: #{dann_forward.9} parent=1 // pred_check
      _
    $region11: #{dann_forward.9} parent=1 // pred_check_branch
      %26 = sbr.rel (0) target = $region13
    $region12: #{dann_forward.9} parent=1 // pred_region
      _
    $region13: #{dann_forward.9} parent=1 // pred_fallthru
      _
    // Predicated region
    $region14: #{dann_forward.9} parent=1 // pred_check
      _
    $region15: #{dann_forward.9} parent=1 // pred_check_branch
      %28 = sbr.rel (0) target = $region17
    $region16: #{dann_forward.9} parent=1 // pred_region
      _
    $region17: #{dann_forward.9} parent=1 // pred_fallthru
      _
    // Predicated region
    $region18: #{dann_forward.9} parent=1 // pred_check
      _
    $region19: #{dann_forward.9} parent=1 // pred_check_branch
      %30 = sbr.rel (0) target = $region21
    $region20: #{dann_forward.9} parent=1 // pred_region
      _
    $region21: #{dann_forward.9} parent=1 // pred_fallthru
      _
    // Predicated region
    $region22: #{dann_forward.9} parent=1 // pred_check
      _
    $region23: #{dann_forward.9} parent=1 // pred_check_branch
      %32 = sbr.rel (0) target = $region25
    $region24: #{dann_forward.9} parent=1 // pred_region
      _
    $region25: #{dann_forward.9} parent=1 // pred_fallthru
      _
    // Predicated region
    $region26: #{dann_forward.9} parent=1 // pred_check
      _
    $region27: #{dann_forward.9} parent=1 // pred_check_branch
      %34 = sbr.rel (0) target = $region29
    $region28: #{dann_forward.9} parent=1 // pred_region
      _
    $region29: #{dann_forward.9} parent=1 // pred_fallthru
      _
    // Predicated region
    $region30: #{dann_forward.9} parent=1 // pred_check
      _
    $region31: #{dann_forward.9} parent=1 // pred_check_branch
      %36 = sbr.rel (0) target = $region33
    $region32: #{dann_forward.9} parent=1 // pred_region
      _
    $region33: #{dann_forward.9} parent=1 // pred_fallthru
      _
    // Predicated region
    $region34: #{dann_forward.9} parent=1 // pred_check
      _
    $region35: #{dann_forward.9} parent=1 // pred_check_branch
      %38 = sbr.rel (0) target = $region37
    $region36: #{dann_forward.9} parent=1 // pred_region
      _
    $region37: #{dann_forward.9} parent=1 // pred_fallthru
      _
    // Predicated region
    $region38: #{dann_forward.9} parent=1 // pred_check
      _
    $region39: #{dann_forward.9} parent=1 // pred_check_branch
      %40 = sbr.rel (0) target = $region41
    $region40: #{dann_forward.9} parent=1 // pred_region
      _
    $region41: #{dann_forward.9} parent=1 // pred_fallthru
      _
    // Predicated region
    $region42: #{dann_forward.9} parent=1 // pred_check
      _
    $region43: #{dann_forward.9} parent=1 // pred_check_branch
      %42 = sbr.rel (0) target = $region45
    $region44: #{dann_forward.9} parent=1 // pred_region
      _
    $region45: #{dann_forward.9} parent=1 // pred_fallthru
      _
    // Predicated region
    $region46: #{dann_forward.9} parent=1 // pred_check
      _
    $region47: #{dann_forward.9} parent=1 // pred_check_branch
      %44 = sbr.rel (0) target = $region49
    $region48: #{dann_forward.9} parent=1 // pred_region
      _
    $region49: #{dann_forward.9} parent=1 // pred_fallthru
      _
    %v46 = vld [vmem:[%s0] sm:$0xff]
    %v47 = vld [vmem:[%s1] sm:$0xff]
    %v48 = vmax.bf16 %v46, %v47
    %v49 = vld [vmem:[%s2] sm:$0xff]
    %v50 = vld [vmem:[%s3] sm:$0xff]
    %v51 = vmax.bf16 %v49, %v50
    %v52 = vmax.bf16 %v48, %v51
    %v53 = vld [vmem:[%s4] sm:$0xff]
    %v54 = vld [vmem:[%s4 + $0x8] sm:$0xff]
    %v55 = vld [vmem:[%s4 + $0x10] sm:$0xff]
    %v56 = vld [vmem:[%s4 + $0x18] sm:$0xff]
    %v57 = vld [vmem:[%s4 + $0x20] sm:$0xff]
    %v58 = vld [vmem:[%s4 + $0x28] sm:$0xff]
    %v59 = vld [vmem:[%s4 + $0x30] sm:$0xff]
    %v60 = vld [vmem:[%s4 + $0x38] sm:$0xff]
    %v61 = vld [vmem:[%s4 + $0x40] sm:$0xff]
    %v62 = vld [vmem:[%s4 + $0x48] sm:$0xff]
    %v63 = vld [vmem:[%s4 + $0x50] sm:$0xff]
    %v64 = vld [vmem:[%s4 + $0x58] sm:$0xff]
    %v65 = vld [vmem:[%s4 + $0x60] sm:$0xff]
    %v66 = vld [vmem:[%s4 + $0x68] sm:$0xff]
    %v67 = vld [vmem:[%s4 + $0x70] sm:$0xff]
    %v68 = vld [vmem:[%s4 + $0x78] sm:$0xff]
    %v69 = vld [vmem:[%s4 + $0x80] sm:$0xff]
    %v70 = vld [vmem:[%s4 + $0x88] sm:$0xff]
    %v71 = vld [vmem:[%s4 + $0x90] sm:$0xff]
    %v72 = vld [vmem:[%s4 + $0x98] sm:$0xff]
    %v73 = vld [vmem:[%s4 + $0xa0] sm:$0xff]
    %v74 = vld [vmem:[%s4 + $0xa8] sm:$0xff]
    %v75 = vld [vmem:[%s4 + $0xb0] sm:$0xff]
    %v76 = vld [vmem:[%s4 + $0xb8] sm:$0xff]
    %v77 = vld [vmem:[%s4 + $0xc0] sm:$0xff]
    %v78 = vld [vmem:[%s4 + $0xc8] sm:$0xff]
    %v79 = vld [vmem:[%s4 + $0xd0] sm:$0xff]
    %v80 = vld [vmem:[%s4 + $0xd8] sm:$0xff]
    %v81 = vld [vmem:[%s4 + $0xe0] sm:$0xff]
    %v82 = vld [vmem:[%s4 + $0xe8] sm:$0xff]
    %v83 = vld [vmem:[%s4 + $0xf0] sm:$0xff]
    %v84 = vld [vmem:[%s4 + $0xf8] sm:$0xff]
    %v85 = vld [vmem:[%s4 + $0x100] sm:$0xff]
    %v86 = vld [vmem:[%s4 + $0x108] sm:$0xff]
    %v87 = vld [vmem:[%s4 + $0x110] sm:$0xff]
    %v88 = vld [vmem:[%s4 + $0x118] sm:$0xff]
    %v89 = vld [vmem:[%s4 + $0x120] sm:$0xff]
    %v90 = vld [vmem:[%s4 + $0x128] sm:$0xff]
    %v91 = vld [vmem:[%s4 + $0x130] sm:$0xff]
    %v92 = vld [vmem:[%s4 + $0x138] sm:$0xff]
    %v93 = vld [vmem:[%s4 + $0x140] sm:$0xff]
    %v94 = vld [vmem:[%s4 + $0x148] sm:$0xff]
    %v95 = vld [vmem:[%s4 + $0x150] sm:$0xff]
    %v96 = vld [vmem:[%s4 + $0x158] sm:$0xff]
    %v97 = vld [vmem:[%s4 + $0x160] sm:$0xff]
    %v98 = vld [vmem:[%s4 + $0x168] sm:$0xff]
    %v99 = vld [vmem:[%s4 + $0x170] sm:$0xff]
    %v100 = vld [vmem:[%s4 + $0x178] sm:$0xff]
    %v101 = vld [vmem:[%s4 + $0x180] sm:$0xff]
    %v102 = vld [vmem:[%s4 + $0x188] sm:$0xff]
    %v103 = vld [vmem:[%s4 + $0x190] sm:$0xff]
    %v104 = vld [vmem:[%s4 + $0x198] sm:$0xff]
    %v105 = vld [vmem:[%s4 + $0x1a0] sm:$0xff]
    %v106 = vld [vmem:[%s4 + $0x1a8] sm:$0xff]
    %v107 = vld [vmem:[%s4 + $0x1b0] sm:$0xff]
    %v108 = vld [vmem:[%s4 + $0x1b8] sm:$0xff]
    %v109 = vld [vmem:[%s4 + $0x1c0] sm:$0xff]
    %v110 = vld [vmem:[%s4 + $0x1c8] sm:$0xff]
    %v111 = vld [vmem:[%s4 + $0x1d0] sm:$0xff]
    %v112 = vld [vmem:[%s4 + $0x1d8] sm:$0xff]
    %v113 = vld [vmem:[%s4 + $0x1e0] sm:$0xff]
    %v114 = vld [vmem:[%s4 + $0x1e8] sm:$0xff]
    %v115 = vld [vmem:[%s4 + $0x1f0] sm:$0xff]
    %v116 = vld [vmem:[%s4 + $0x1f8] sm:$0xff]
    %v117 = vld [vmem:[%s4 + $0x200] sm:$0xff]
    %v118 = vld [vmem:[%s4 + $0x208] sm:$0xff]
    %v119 = vld [vmem:[%s4 + $0x210] sm:$0xff]
    %v120 = vld [vmem:[%s4 + $0x218] sm:$0xff]
    %v121 = vld [vmem:[%s4 + $0x220] sm:$0xff]
    %v122 = vld [vmem:[%s4 + $0x228] sm:$0xff]
    %v123 = vld [vmem:[%s4 + $0x230] sm:$0xff]
    %v124 = vld [vmem:[%s4 + $0x238] sm:$0xff]
    %v125 = vld [vmem:[%s4 + $0x240] sm:$0xff]
    %v126 = vld [vmem:[%s4 + $0x248] sm:$0xff]
    %v127 = vld [vmem:[%s4 + $0x250] sm:$0xff]
    %v128 = vld [vmem:[%s4 + $0x258] sm:$0xff]
    %v129 = vld [vmem:[%s4 + $0x260] sm:$0xff]
    %v130 = vld [vmem:[%s4 + $0x268] sm:$0xff]
    %v131 = vld [vmem:[%s4 + $0x270] sm:$0xff]
    %v132 = vld [vmem:[%s4 + $0x278] sm:$0xff]
    %v133 = vld [vmem:[%s4 + $0x280] sm:$0xff]
    %v134 = vld [vmem:[%s4 + $0x288] sm:$0xff]
    %v135 = vld [vmem:[%s4 + $0x290] sm:$0xff]
    %v136 = vld [vmem:[%s4 + $0x298] sm:$0xff]
    %v137 = vld [vmem:[%s4 + $0x2a0] sm:$0xff]
    %v138 = vld [vmem:[%s4 + $0x2a8] sm:$0xff]
    %v139 = vld [vmem:[%s4 + $0x2b0] sm:$0xff]
    %v140 = vld [vmem:[%s4 + $0x2b8] sm:$0xff]
    %v141 = vld [vmem:[%s4 + $0x2c0] sm:$0xff]
    %v142 = vld [vmem:[%s4 + $0x2c8] sm:$0xff]
    %v143 = vld [vmem:[%s4 + $0x2d0] sm:$0xff]
    %v144 = vld [vmem:[%s4 + $0x2d8] sm:$0xff]
    %v145 = vld [vmem:[%s4 + $0x2e0] sm:$0xff]
    %v146 = vld [vmem:[%s4 + $0x2e8] sm:$0xff]
    %v147 = vld [vmem:[%s4 + $0x2f0] sm:$0xff]
    %v148 = vld [vmem:[%s4 + $0x2f8] sm:$0xff]
    %v149 = vld [vmem:[%s4 + $0x300] sm:$0xff]
    %v150 = vld [vmem:[%s4 + $0x308] sm:$0xff]
    %v151 = vld [vmem:[%s4 + $0x310] sm:$0xff]
    %v152 = vld [vmem:[%s4 + $0x318] sm:$0xff]
    %v153 = vld [vmem:[%s4 + $0x320] sm:$0xff]
    %v154 = vld [vmem:[%s4 + $0x328] sm:$0xff]
    %v155 = vld [vmem:[%s4 + $0x330] sm:$0xff]
    %v156 = vld [vmem:[%s4 + $0x338] sm:$0xff]
    %v157 = vld [vmem:[%s4 + $0x340] sm:$0xff]
    %v158 = vld [vmem:[%s4 + $0x348] sm:$0xff]
    %v159 = vld [vmem:[%s4 + $0x350] sm:$0xff]
    %v160 = vld [vmem:[%s4 + $0x358] sm:$0xff]
    %v161 = vld [vmem:[%s4 + $0x360] sm:$0xff]
    %v162 = vld [vmem:[%s4 + $0x368] sm:$0xff]
    %v163 = vld [vmem:[%s4 + $0x370] sm:$0xff]
    %v164 = vld [vmem:[%s4 + $0x378] sm:$0xff]
    %v165 = vld [vmem:[%s4 + $0x380] sm:$0xff]
    %v166 = vld [vmem:[%s4 + $0x388] sm:$0xff]
    %v167 = vld [vmem:[%s4 + $0x390] sm:$0xff]
    %v168 = vld [vmem:[%s4 + $0x398] sm:$0xff]
    %v169 = vld [vmem:[%s4 + $0x3a0] sm:$0xff]
    %v170 = vld [vmem:[%s4 + $0x3a8] sm:$0xff]
    %v171 = vld [vmem:[%s4 + $0x3b0] sm:$0xff]
    %v172 = vld [vmem:[%s4 + $0x3b8] sm:$0xff]
    %v173 = vld [vmem:[%s4 + $0x3c0] sm:$0xff]
    %v174 = vld [vmem:[%s4 + $0x3c8] sm:$0xff]
    %v175 = vld [vmem:[%s4 + $0x3d0] sm:$0xff]
    %v176 = vld [vmem:[%s4 + $0x3d8] sm:$0xff]
    %v177 = vld [vmem:[%s4 + $0x3e0] sm:$0xff]
    %v178 = vld [vmem:[%s4 + $0x3e8] sm:$0xff]
    %v179 = vld [vmem:[%s4 + $0x3f0] sm:$0xff]
    %v180 = vld [vmem:[%s4 + $0x3f8] sm:$0xff]
    %v181 = vld [vmem:[%s5] sm:$0x3]
    %v183 = vlaneseq
    %v184 = vshrl.u32 %v183, 7
    %v185 = vsub.s32 0, %v184
    %v186 = vrot.slane %v181, %v185
    %v187 = vlaneseq
    %v188 = vshrl.u32 %v187, 7
    %v189 = vsub.s32 1, %v188
    %v190 = vrot.slane %v181, %v189
    %v194 = vcombine.high %v52, %v52
    %v196 = vunpack.c.l.s4 1966171168
    %v197 = vunpack.c.0.s8 %v196
    %v198 = vlaneseq
    %v199 = vshrl.u32 %v198, 7
    %v200 = vsub.s32 %v197, %v199
    %v201 = vrot.slane %v52, %v200
    %v203 = vunpack.c.l.s4 1966171168
    %v204 = vunpack.c.0.s8 %v203
    %v205 = vlaneseq
    %v206 = vshrl.u32 %v205, 7
    %v207 = vsub.s32 %v204, %v206
    %v208 = vrot.slane %v194, %v207
    %v209 = vcombine.high %v201, %v201
    %v210 = vcombine.high %v208, %v208
    %v212 = vunpack.c.l.s4 1966171168
    %v213 = vunpack.c.0.s8 %v212
    %v214 = vlaneseq
    %v215 = vshrl.u32 %v214, 7
    %v216 = vsub.s32 %v213, %v215
    %v217 = vrot.slane %v201, %v216
    %v219 = vunpack.c.l.s4 1966171168
    %v220 = vunpack.c.0.s8 %v219
    %v221 = vlaneseq
    %v222 = vshrl.u32 %v221, 7
    %v223 = vsub.s32 %v220, %v222
    %v224 = vrot.slane %v208, %v223
    %v226 = vunpack.c.l.s4 1966171168
    %v227 = vunpack.c.0.s8 %v226
    %v228 = vlaneseq
    %v229 = vshrl.u32 %v228, 7
    %v230 = vsub.s32 %v227, %v229
    %v231 = vrot.slane %v209, %v230
    %v233 = vunpack.c.l.s4 1966171168
    %v234 = vunpack.c.0.s8 %v233
    %v235 = vlaneseq
    %v236 = vshrl.u32 %v235, 7
    %v237 = vsub.s32 %v234, %v236
    %v238 = vrot.slane %v210, %v237
    %v239 = vcombine.high %v217, %v217
    %v240 = vcombine.high %v224, %v224
    %v241 = vcombine.high %v231, %v231
    %v242 = vcombine.high %v238, %v238
    %v379 = vunpack.c.l.b16 %v53
    %v380 = vunpack.c.h.b16 %v53
    %v381 = vunpack.c.l.b16 %v54
    %v382 = vunpack.c.h.b16 %v54
    %v383 = vunpack.c.l.b16 %v55
    %v384 = vunpack.c.h.b16 %v55
    %v385 = vunpack.c.l.b16 %v56
    %v386 = vunpack.c.h.b16 %v56
    %v387 = vunpack.c.l.b16 %v57
    %v388 = vunpack.c.h.b16 %v57
    %v389 = vunpack.c.l.b16 %v58
    %v390 = vunpack.c.h.b16 %v58
    %v391 = vunpack.c.l.b16 %v59
    %v392 = vunpack.c.h.b16 %v59
    %v393 = vunpack.c.l.b16 %v60
    %v394 = vunpack.c.h.b16 %v60
    %v395 = vunpack.c.l.b16 %v61
    %v396 = vunpack.c.h.b16 %v61
    %v397 = vunpack.c.l.b16 %v62
    %v398 = vunpack.c.h.b16 %v62
    %v399 = vunpack.c.l.b16 %v63
    %v400 = vunpack.c.h.b16 %v63
    %v401 = vunpack.c.l.b16 %v64
    %v402 = vunpack.c.h.b16 %v64
    %v403 = vunpack.c.l.b16 %v65
    %v404 = vunpack.c.h.b16 %v65
    %v405 = vunpack.c.l.b16 %v66
    %v406 = vunpack.c.h.b16 %v66
    %v407 = vunpack.c.l.b16 %v67
    %v408 = vunpack.c.h.b16 %v67
    %v409 = vunpack.c.l.b16 %v68
    %v410 = vunpack.c.h.b16 %v68
    %v411 = vunpack.c.l.b16 %v69
    %v412 = vunpack.c.h.b16 %v69
    %v413 = vunpack.c.l.b16 %v70
    %v414 = vunpack.c.h.b16 %v70
    %v415 = vunpack.c.l.b16 %v71
    %v416 = vunpack.c.h.b16 %v71
    %v417 = vunpack.c.l.b16 %v72
    %v418 = vunpack.c.h.b16 %v72
    %v419 = vunpack.c.l.b16 %v73
    %v420 = vunpack.c.h.b16 %v73
    %v421 = vunpack.c.l.b16 %v74
    %v422 = vunpack.c.h.b16 %v74
    %v423 = vunpack.c.l.b16 %v75
    %v424 = vunpack.c.h.b16 %v75
    %v425 = vunpack.c.l.b16 %v76
    %v426 = vunpack.c.h.b16 %v76
    %v427 = vunpack.c.l.b16 %v77
    %v428 = vunpack.c.h.b16 %v77
    %v429 = vunpack.c.l.b16 %v78
    %v430 = vunpack.c.h.b16 %v78
    %v431 = vunpack.c.l.b16 %v79
    %v432 = vunpack.c.h.b16 %v79
    %v433 = vunpack.c.l.b16 %v80
    %v434 = vunpack.c.h.b16 %v80
    %v435 = vunpack.c.l.b16 %v81
    %v436 = vunpack.c.h.b16 %v81
    %v437 = vunpack.c.l.b16 %v82
    %v438 = vunpack.c.h.b16 %v82
    %v439 = vunpack.c.l.b16 %v83
    %v440 = vunpack.c.h.b16 %v83
    %v441 = vunpack.c.l.b16 %v84
    %v442 = vunpack.c.h.b16 %v84
    %v443 = vunpack.c.l.b16 %v85
    %v444 = vunpack.c.h.b16 %v85
    %v445 = vunpack.c.l.b16 %v86
    %v446 = vunpack.c.h.b16 %v86
    %v447 = vunpack.c.l.b16 %v87
    %v448 = vunpack.c.h.b16 %v87
    %v449 = vunpack.c.l.b16 %v88
    %v450 = vunpack.c.h.b16 %v88
    %v451 = vunpack.c.l.b16 %v89
    %v452 = vunpack.c.h.b16 %v89
    %v453 = vunpack.c.l.b16 %v90
    %v454 = vunpack.c.h.b16 %v90
    %v455 = vunpack.c.l.b16 %v91
    %v456 = vunpack.c.h.b16 %v91
    %v457 = vunpack.c.l.b16 %v92
    %v458 = vunpack.c.h.b16 %v92
    %v459 = vunpack.c.l.b16 %v93
    %v460 = vunpack.c.h.b16 %v93
    %v461 = vunpack.c.l.b16 %v94
    %v462 = vunpack.c.h.b16 %v94
    %v463 = vunpack.c.l.b16 %v95
    %v464 = vunpack.c.h.b16 %v95
    %v465 = vunpack.c.l.b16 %v96
    %v466 = vunpack.c.h.b16 %v96
    %v467 = vunpack.c.l.b16 %v97
    %v468 = vunpack.c.h.b16 %v97
    %v469 = vunpack.c.l.b16 %v98
    %v470 = vunpack.c.h.b16 %v98
    %v471 = vunpack.c.l.b16 %v99
    %v472 = vunpack.c.h.b16 %v99
    %v473 = vunpack.c.l.b16 %v100
    %v474 = vunpack.c.h.b16 %v100
    %v475 = vunpack.c.l.b16 %v101
    %v476 = vunpack.c.h.b16 %v101
    %v477 = vunpack.c.l.b16 %v102
    %v478 = vunpack.c.h.b16 %v102
    %v479 = vunpack.c.l.b16 %v103
    %v480 = vunpack.c.h.b16 %v103
    %v481 = vunpack.c.l.b16 %v104
    %v482 = vunpack.c.h.b16 %v104
    %v483 = vunpack.c.l.b16 %v105
    %v484 = vunpack.c.h.b16 %v105
    %v485 = vunpack.c.l.b16 %v106
    %v486 = vunpack.c.h.b16 %v106
    %v487 = vunpack.c.l.b16 %v107
    %v488 = vunpack.c.h.b16 %v107
    %v489 = vunpack.c.l.b16 %v108
    %v490 = vunpack.c.h.b16 %v108
    %v491 = vunpack.c.l.b16 %v109
    %v492 = vunpack.c.h.b16 %v109
    %v493 = vunpack.c.l.b16 %v110
    %v494 = vunpack.c.h.b16 %v110
    %v495 = vunpack.c.l.b16 %v111
    %v496 = vunpack.c.h.b16 %v111
    %v497 = vunpack.c.l.b16 %v112
    %v498 = vunpack.c.h.b16 %v112
    %v499 = vunpack.c.l.b16 %v113
    %v500 = vunpack.c.h.b16 %v113
    %v501 = vunpack.c.l.b16 %v114
    %v502 = vunpack.c.h.b16 %v114
    %v503 = vunpack.c.l.b16 %v115
    %v504 = vunpack.c.h.b16 %v115
    %v505 = vunpack.c.l.b16 %v116
    %v506 = vunpack.c.h.b16 %v116
    %v507 = vunpack.c.l.b16 %v117
    %v508 = vunpack.c.h.b16 %v117
    %v509 = vunpack.c.l.b16 %v118
    %v510 = vunpack.c.h.b16 %v118
    %v511 = vunpack.c.l.b16 %v119
    %v512 = vunpack.c.h.b16 %v119
    %v513 = vunpack.c.l.b16 %v120
    %v514 = vunpack.c.h.b16 %v120
    %v515 = vunpack.c.l.b16 %v121
    %v516 = vunpack.c.h.b16 %v121
    %v517 = vunpack.c.l.b16 %v122
    %v518 = vunpack.c.h.b16 %v122
    %v519 = vunpack.c.l.b16 %v123
    %v520 = vunpack.c.h.b16 %v123
    %v521 = vunpack.c.l.b16 %v124
    %v522 = vunpack.c.h.b16 %v124
    %v523 = vunpack.c.l.b16 %v125
    %v524 = vunpack.c.h.b16 %v125
    %v525 = vunpack.c.l.b16 %v126
    %v526 = vunpack.c.h.b16 %v126
    %v527 = vunpack.c.l.b16 %v127
    %v528 = vunpack.c.h.b16 %v127
    %v529 = vunpack.c.l.b16 %v128
    %v530 = vunpack.c.h.b16 %v128
    %v531 = vunpack.c.l.b16 %v129
    %v532 = vunpack.c.h.b16 %v129
    %v533 = vunpack.c.l.b16 %v130
    %v534 = vunpack.c.h.b16 %v130
    %v535 = vunpack.c.l.b16 %v131
    %v536 = vunpack.c.h.b16 %v131
    %v537 = vunpack.c.l.b16 %v132
    %v538 = vunpack.c.h.b16 %v132
    %v539 = vunpack.c.l.b16 %v133
    %v540 = vunpack.c.h.b16 %v133
    %v541 = vunpack.c.l.b16 %v134
    %v542 = vunpack.c.h.b16 %v134
    %v543 = vunpack.c.l.b16 %v135
    %v544 = vunpack.c.h.b16 %v135
    %v545 = vunpack.c.l.b16 %v136
    %v546 = vunpack.c.h.b16 %v136
    %v547 = vunpack.c.l.b16 %v137
    %v548 = vunpack.c.h.b16 %v137
    %v549 = vunpack.c.l.b16 %v138
    %v550 = vunpack.c.h.b16 %v138
    %v551 = vunpack.c.l.b16 %v139
    %v552 = vunpack.c.h.b16 %v139
    %v553 = vunpack.c.l.b16 %v140
    %v554 = vunpack.c.h.b16 %v140
    %v555 = vunpack.c.l.b16 %v141
    %v556 = vunpack.c.h.b16 %v141
    %v557 = vunpack.c.l.b16 %v142
    %v558 = vunpack.c.h.b16 %v142
    %v559 = vunpack.c.l.b16 %v143
    %v560 = vunpack.c.h.b16 %v143
    %v561 = vunpack.c.l.b16 %v144
    %v562 = vunpack.c.h.b16 %v144
    %v563 = vunpack.c.l.b16 %v145
    %v564 = vunpack.c.h.b16 %v145
    %v565 = vunpack.c.l.b16 %v146
    %v566 = vunpack.c.h.b16 %v146
    %v567 = vunpack.c.l.b16 %v147
    %v568 = vunpack.c.h.b16 %v147
    %v569 = vunpack.c.l.b16 %v148
    %v570 = vunpack.c.h.b16 %v148
    %v571 = vunpack.c.l.b16 %v149
    %v572 = vunpack.c.h.b16 %v149
    %v573 = vunpack.c.l.b16 %v150
    %v574 = vunpack.c.h.b16 %v150
    %v575 = vunpack.c.l.b16 %v151
    %v576 = vunpack.c.h.b16 %v151
    %v577 = vunpack.c.l.b16 %v152
    %v578 = vunpack.c.h.b16 %v152
    %v579 = vunpack.c.l.b16 %v153
    %v580 = vunpack.c.h.b16 %v153
    %v581 = vunpack.c.l.b16 %v154
    %v582 = vunpack.c.h.b16 %v154
    %v583 = vunpack.c.l.b16 %v155
    %v584 = vunpack.c.h.b16 %v155
    %v585 = vunpack.c.l.b16 %v156
    %v586 = vunpack.c.h.b16 %v156
    %v587 = vunpack.c.l.b16 %v157
    %v588 = vunpack.c.h.b16 %v157
    %v589 = vunpack.c.l.b16 %v158
    %v590 = vunpack.c.h.b16 %v158
    %v591 = vunpack.c.l.b16 %v159
    %v592 = vunpack.c.h.b16 %v159
    %v593 = vunpack.c.l.b16 %v160
    %v594 = vunpack.c.h.b16 %v160
    %v595 = vunpack.c.l.b16 %v161
    %v596 = vunpack.c.h.b16 %v161
    %v597 = vunpack.c.l.b16 %v162
    %v598 = vunpack.c.h.b16 %v162
    %v599 = vunpack.c.l.b16 %v163
    %v600 = vunpack.c.h.b16 %v163
    %v601 = vunpack.c.l.b16 %v164
    %v602 = vunpack.c.h.b16 %v164
    %v603 = vunpack.c.l.b16 %v165
    %v604 = vunpack.c.h.b16 %v165
    %v605 = vunpack.c.l.b16 %v166
    %v606 = vunpack.c.h.b16 %v166
    %v607 = vunpack.c.l.b16 %v167
    %v608 = vunpack.c.h.b16 %v167
    %v609 = vunpack.c.l.b16 %v168
    %v610 = vunpack.c.h.b16 %v168
    %v611 = vunpack.c.l.b16 %v169
    %v612 = vunpack.c.h.b16 %v169
    %v613 = vunpack.c.l.b16 %v170
    %v614 = vunpack.c.h.b16 %v170
    %v615 = vunpack.c.l.b16 %v171
    %v616 = vunpack.c.h.b16 %v171
    %v617 = vunpack.c.l.b16 %v172
    %v618 = vunpack.c.h.b16 %v172
    %v619 = vunpack.c.l.b16 %v173
    %v620 = vunpack.c.h.b16 %v173
    %v621 = vunpack.c.l.b16 %v174
    %v622 = vunpack.c.h.b16 %v174
    %v623 = vunpack.c.l.b16 %v175
    %v624 = vunpack.c.h.b16 %v175
    %v625 = vunpack.c.l.b16 %v176
    %v626 = vunpack.c.h.b16 %v176
    %v627 = vunpack.c.l.b16 %v177
    %v628 = vunpack.c.h.b16 %v177
    %v629 = vunpack.c.l.b16 %v178
    %v630 = vunpack.c.h.b16 %v178
    %v631 = vunpack.c.l.b16 %v179
    %v632 = vunpack.c.h.b16 %v179
    %v633 = vunpack.c.l.b16 %v180
    %v634 = vunpack.c.h.b16 %v180
    %v635 = vpack.c.b16 %v381, %v379
    %v636 = vpack.c.b16 %v382, %v380
    %v637 = vpack.c.b16 %v385, %v383
    %v638 = vpack.c.b16 %v386, %v384
    %v639 = vpack.c.b16 %v389, %v387
    %v640 = vpack.c.b16 %v390, %v388
    %v641 = vpack.c.b16 %v393, %v391
    %v642 = vpack.c.b16 %v394, %v392
    %v643 = vpack.c.b16 %v397, %v395
    %v644 = vpack.c.b16 %v398, %v396
    %v645 = vpack.c.b16 %v401, %v399
    %v646 = vpack.c.b16 %v402, %v400
    %v647 = vpack.c.b16 %v405, %v403
    %v648 = vpack.c.b16 %v406, %v404
    %v649 = vpack.c.b16 %v409, %v407
    %v650 = vpack.c.b16 %v410, %v408
    %v651 = vpack.c.b16 %v413, %v411
    %v652 = vpack.c.b16 %v414, %v412
    %v653 = vpack.c.b16 %v417, %v415
    %v654 = vpack.c.b16 %v418, %v416
    %v655 = vpack.c.b16 %v421, %v419
    %v656 = vpack.c.b16 %v422, %v420
    %v657 = vpack.c.b16 %v425, %v423
    %v658 = vpack.c.b16 %v426, %v424
    %v659 = vpack.c.b16 %v429, %v427
    %v660 = vpack.c.b16 %v430, %v428
    %v661 = vpack.c.b16 %v433, %v431
    %v662 = vpack.c.b16 %v434, %v432
    %v663 = vpack.c.b16 %v437, %v435
    %v664 = vpack.c.b16 %v438, %v436
    %v665 = vpack.c.b16 %v441, %v439
    %v666 = vpack.c.b16 %v442, %v440
    %v667 = vpack.c.b16 %v445, %v443
    %v668 = vpack.c.b16 %v446, %v444
    %v669 = vpack.c.b16 %v449, %v447
    %v670 = vpack.c.b16 %v450, %v448
    %v671 = vpack.c.b16 %v453, %v451
    %v672 = vpack.c.b16 %v454, %v452
    %v673 = vpack.c.b16 %v457, %v455
    %v674 = vpack.c.b16 %v458, %v456
    %v675 = vpack.c.b16 %v461, %v459
    %v676 = vpack.c.b16 %v462, %v460
    %v677 = vpack.c.b16 %v465, %v463
    %v678 = vpack.c.b16 %v466, %v464
    %v679 = vpack.c.b16 %v469, %v467
    %v680 = vpack.c.b16 %v470, %v468
    %v681 = vpack.c.b16 %v473, %v471
    %v682 = vpack.c.b16 %v474, %v472
    %v683 = vpack.c.b16 %v477, %v475
    %v684 = vpack.c.b16 %v478, %v476
    %v685 = vpack.c.b16 %v481, %v479
    %v686 = vpack.c.b16 %v482, %v480
    %v687 = vpack.c.b16 %v485, %v483
    %v688 = vpack.c.b16 %v486, %v484
    %v689 = vpack.c.b16 %v489, %v487
    %v690 = vpack.c.b16 %v490, %v488
    %v691 = vpack.c.b16 %v493, %v491
    %v692 = vpack.c.b16 %v494, %v492
    %v693 = vpack.c.b16 %v497, %v495
    %v694 = vpack.c.b16 %v498, %v496
    %v695 = vpack.c.b16 %v501, %v499
    %v696 = vpack.c.b16 %v502, %v500
    %v697 = vpack.c.b16 %v505, %v503
    %v698 = vpack.c.b16 %v506, %v504
    %v699 = vpack.c.b16 %v509, %v507
    %v700 = vpack.c.b16 %v510, %v508
    %v701 = vpack.c.b16 %v513, %v511
    %v702 = vpack.c.b16 %v514, %v512
    %v703 = vpack.c.b16 %v517, %v515
    %v704 = vpack.c.b16 %v518, %v516
    %v705 = vpack.c.b16 %v521, %v519
    %v706 = vpack.c.b16 %v522, %v520
    %v707 = vpack.c.b16 %v525, %v523
    %v708 = vpack.c.b16 %v526, %v524
    %v709 = vpack.c.b16 %v529, %v527
    %v710 = vpack.c.b16 %v530, %v528
    %v711 = vpack.c.b16 %v533, %v531
    %v712 = vpack.c.b16 %v534, %v532
    %v713 = vpack.c.b16 %v537, %v535
    %v714 = vpack.c.b16 %v538, %v536
    %v715 = vpack.c.b16 %v541, %v539
    %v716 = vpack.c.b16 %v542, %v540
    %v717 = vpack.c.b16 %v545, %v543
    %v718 = vpack.c.b16 %v546, %v544
    %v719 = vpack.c.b16 %v549, %v547
    %v720 = vpack.c.b16 %v550, %v548
    %v721 = vpack.c.b16 %v553, %v551
    %v722 = vpack.c.b16 %v554, %v552
    %v723 = vpack.c.b16 %v557, %v555
    %v724 = vpack.c.b16 %v558, %v556
    %v725 = vpack.c.b16 %v561, %v559
    %v726 = vpack.c.b16 %v562, %v560
    %v727 = vpack.c.b16 %v565, %v563
    %v728 = vpack.c.b16 %v566, %v564
    %v729 = vpack.c.b16 %v569, %v567
    %v730 = vpack.c.b16 %v570, %v568
    %v731 = vpack.c.b16 %v573, %v571
    %v732 = vpack.c.b16 %v574, %v572
    %v733 = vpack.c.b16 %v577, %v575
    %v734 = vpack.c.b16 %v578, %v576
    %v735 = vpack.c.b16 %v581, %v579
    %v736 = vpack.c.b16 %v582, %v580
    %v737 = vpack.c.b16 %v585, %v583
    %v738 = vpack.c.b16 %v586, %v584
    %v739 = vpack.c.b16 %v589, %v587
    %v740 = vpack.c.b16 %v590, %v588
    %v741 = vpack.c.b16 %v593, %v591
    %v742 = vpack.c.b16 %v594, %v592
    %v743 = vpack.c.b16 %v597, %v595
    %v744 = vpack.c.b16 %v598, %v596
    %v745 = vpack.c.b16 %v601, %v599
    %v746 = vpack.c.b16 %v602, %v600
    %v747 = vpack.c.b16 %v605, %v603
    %v748 = vpack.c.b16 %v606, %v604
    %v749 = vpack.c.b16 %v609, %v607
    %v750 = vpack.c.b16 %v610, %v608
    %v751 = vpack.c.b16 %v613, %v611
    %v752 = vpack.c.b16 %v614, %v612
    %v753 = vpack.c.b16 %v617, %v615
    %v754 = vpack.c.b16 %v618, %v616
    %v755 = vpack.c.b16 %v621, %v619
    %v756 = vpack.c.b16 %v622, %v620
    %v757 = vpack.c.b16 %v625, %v623
    %v758 = vpack.c.b16 %v626, %v624
    %v759 = vpack.c.b16 %v629, %v627
    %v760 = vpack.c.b16 %v630, %v628
    %v761 = vpack.c.b16 %v633, %v631
    %v762 = vpack.c.b16 %v634, %v632
    %891 = vmatprep.subr.bf16.mxu0 %v636
    %892 = vmatpush1.bf16.msra.mxu0 %v635
    %893 = vmatprep.subr.bf16.mxu0 %v638
    %894 = vmatpush1.bf16.msra.mxu0 %v637
    %895 = vmatprep.subr.bf16.mxu0 %v640
    %896 = vmatpush1.bf16.msra.mxu0 %v639
    %897 = vmatprep.subr.bf16.mxu0 %v642
    %898 = vmatpush1.bf16.msra.mxu0 %v641
    %899 = vmatprep.subr.bf16.mxu0 %v644
    %900 = vmatpush1.bf16.msra.mxu0 %v643
    %901 = vmatprep.subr.bf16.mxu0 %v646
    %902 = vmatpush1.bf16.msra.mxu0 %v645
    %903 = vmatprep.subr.bf16.mxu0 %v648
    %904 = vmatpush1.bf16.msra.mxu0 %v647
    %905 = vmatprep.subr.bf16.mxu0 %v650
    %906 = vmatpush1.bf16.msra.mxu0 %v649
    %907 = vmatprep.subr.bf16.mxu0 %v652
    %908 = vmatpush1.bf16.msra.mxu0 %v651
    %909 = vmatprep.subr.bf16.mxu0 %v654
    %910 = vmatpush1.bf16.msra.mxu0 %v653
    %911 = vmatprep.subr.bf16.mxu0 %v656
    %912 = vmatpush1.bf16.msra.mxu0 %v655
    %913 = vmatprep.subr.bf16.mxu0 %v658
    %914 = vmatpush1.bf16.msra.mxu0 %v657
    %915 = vmatprep.subr.bf16.mxu0 %v660
    %916 = vmatpush1.bf16.msra.mxu0 %v659
    %917 = vmatprep.subr.bf16.mxu0 %v662
    %918 = vmatpush1.bf16.msra.mxu0 %v661
    %919 = vmatprep.subr.bf16.mxu0 %v664
    %920 = vmatpush1.bf16.msra.mxu0 %v663
    %921 = vmatprep.subr.bf16.mxu0 %v666
    %922 = vmatpush1.bf16.msra.mxu0 %v665
    %923 = vmatprep.mubr.bf16.mxu0 %v231
    %924 = vmatmul.mubr.bf16.gmra.mrb[0].mxu0 %v217
    %v925 = vpop.f32.mrb[0].mxu0
    %v926 = vadd.f32 %v186, %v925
    %v927 = vpop.f32.mrb[0].mxu0
    %v928 = vadd.f32 %v190, %v927
    %v929 = vpop.f32.mrb[0].mxu0
    %v930 = vpop.f32.mrb[0].mxu0
    %931 = vdwg.mxu0
    %932 = vmatprep.subr.bf16.mxu0 %v668
    %933 = vmatpush1.bf16.msra.mxu0 %v667
    %934 = vmatprep.subr.bf16.mxu0 %v670
    %935 = vmatpush1.bf16.msra.mxu0 %v669
    %936 = vmatprep.subr.bf16.mxu0 %v672
    %937 = vmatpush1.bf16.msra.mxu0 %v671
    %938 = vmatprep.subr.bf16.mxu0 %v674
    %939 = vmatpush1.bf16.msra.mxu0 %v673
    %940 = vmatprep.subr.bf16.mxu0 %v676
    %941 = vmatpush1.bf16.msra.mxu0 %v675
    %942 = vmatprep.subr.bf16.mxu0 %v678
    %943 = vmatpush1.bf16.msra.mxu0 %v677
    %944 = vmatprep.subr.bf16.mxu0 %v680
    %945 = vmatpush1.bf16.msra.mxu0 %v679
    %946 = vmatprep.subr.bf16.mxu0 %v682
    %947 = vmatpush1.bf16.msra.mxu0 %v681
    %948 = vmatprep.subr.bf16.mxu0 %v684
    %949 = vmatpush1.bf16.msra.mxu0 %v683
    %950 = vmatprep.subr.bf16.mxu0 %v686
    %951 = vmatpush1.bf16.msra.mxu0 %v685
    %952 = vmatprep.subr.bf16.mxu0 %v688
    %953 = vmatpush1.bf16.msra.mxu0 %v687
    %954 = vmatprep.subr.bf16.mxu0 %v690
    %955 = vmatpush1.bf16.msra.mxu0 %v689
    %956 = vmatprep.subr.bf16.mxu0 %v692
    %957 = vmatpush1.bf16.msra.mxu0 %v691
    %958 = vmatprep.subr.bf16.mxu0 %v694
    %959 = vmatpush1.bf16.msra.mxu0 %v693
    %960 = vmatprep.subr.bf16.mxu0 %v696
    %961 = vmatpush1.bf16.msra.mxu0 %v695
    %962 = vmatprep.subr.bf16.mxu0 %v698
    %963 = vmatpush1.bf16.msra.mxu0 %v697
    %964 = vmatprep.mubr.bf16.mxu0 %v241
    %965 = vmatmul.mubr.bf16.gmra.mrb[0].mxu0 %v239
    %v966 = vpop.f32.mrb[0].mxu0
    %v967 = vadd.f32 %v926, %v966
    %v968 = vpop.f32.mrb[0].mxu0
    %v969 = vadd.f32 %v928, %v968
    %v970 = vpop.f32.mrb[0].mxu0
    %v971 = vpop.f32.mrb[0].mxu0
    %972 = vdwg.mxu0
    %973 = vmatprep.subr.bf16.mxu0 %v700
    %974 = vmatpush1.bf16.msra.mxu0 %v699
    %975 = vmatprep.subr.bf16.mxu0 %v702
    %976 = vmatpush1.bf16.msra.mxu0 %v701
    %977 = vmatprep.subr.bf16.mxu0 %v704
    %978 = vmatpush1.bf16.msra.mxu0 %v703
    %979 = vmatprep.subr.bf16.mxu0 %v706
    %980 = vmatpush1.bf16.msra.mxu0 %v705
    %981 = vmatprep.subr.bf16.mxu0 %v708
    %982 = vmatpush1.bf16.msra.mxu0 %v707
    %983 = vmatprep.subr.bf16.mxu0 %v710
    %984 = vmatpush1.bf16.msra.mxu0 %v709
    %985 = vmatprep.subr.bf16.mxu0 %v712
    %986 = vmatpush1.bf16.msra.mxu0 %v711
    %987 = vmatprep.subr.bf16.mxu0 %v714
    %988 = vmatpush1.bf16.msra.mxu0 %v713
    %989 = vmatprep.subr.bf16.mxu0 %v716
    %990 = vmatpush1.bf16.msra.mxu0 %v715
    %991 = vmatprep.subr.bf16.mxu0 %v718
    %992 = vmatpush1.bf16.msra.mxu0 %v717
    %993 = vmatprep.subr.bf16.mxu0 %v720
    %994 = vmatpush1.bf16.msra.mxu0 %v719
    %995 = vmatprep.subr.bf16.mxu0 %v722
    %996 = vmatpush1.bf16.msra.mxu0 %v721
    %997 = vmatprep.subr.bf16.mxu0 %v724
    %998 = vmatpush1.bf16.msra.mxu0 %v723
    %999 = vmatprep.subr.bf16.mxu0 %v726
    %1000 = vmatpush1.bf16.msra.mxu0 %v725
    %1001 = vmatprep.subr.bf16.mxu0 %v728
    %1002 = vmatpush1.bf16.msra.mxu0 %v727
    %1003 = vmatprep.subr.bf16.mxu0 %v730
    %1004 = vmatpush1.bf16.msra.mxu0 %v729
    %1005 = vmatprep.mubr.bf16.mxu0 %v238
    %1006 = vmatmul.mubr.bf16.gmra.mrb[0].mxu0 %v224
    %v1007 = vpop.f32.mrb[0].mxu0
    %v1008 = vadd.f32 %v967, %v1007
    %v1009 = vpop.f32.mrb[0].mxu0
    %v1010 = vadd.f32 %v969, %v1009
    %v1011 = vpop.f32.mrb[0].mxu0
    %v1012 = vpop.f32.mrb[0].mxu0
    %1013 = vdwg.mxu0
    %1014 = vmatprep.subr.bf16.mxu0 %v732
    %1015 = vmatpush1.bf16.msra.mxu0 %v731
    %1016 = vmatprep.subr.bf16.mxu0 %v734
    %1017 = vmatpush1.bf16.msra.mxu0 %v733
    %1018 = vmatprep.subr.bf16.mxu0 %v736
    %1019 = vmatpush1.bf16.msra.mxu0 %v735
    %1020 = vmatprep.subr.bf16.mxu0 %v738
    %1021 = vmatpush1.bf16.msra.mxu0 %v737
    %1022 = vmatprep.subr.bf16.mxu0 %v740
    %1023 = vmatpush1.bf16.msra.mxu0 %v739
    %1024 = vmatprep.subr.bf16.mxu0 %v742
    %1025 = vmatpush1.bf16.msra.mxu0 %v741
    %1026 = vmatprep.subr.bf16.mxu0 %v744
    %1027 = vmatpush1.bf16.msra.mxu0 %v743
    %1028 = vmatprep.subr.bf16.mxu0 %v746
    %1029 = vmatpush1.bf16.msra.mxu0 %v745
    %1030 = vmatprep.subr.bf16.mxu0 %v748
    %1031 = vmatpush1.bf16.msra.mxu0 %v747
    %1032 = vmatprep.subr.bf16.mxu0 %v750
    %1033 = vmatpush1.bf16.msra.mxu0 %v749
    %1034 = vmatprep.subr.bf16.mxu0 %v752
    %1035 = vmatpush1.bf16.msra.mxu0 %v751
    %1036 = vmatprep.subr.bf16.mxu0 %v754
    %1037 = vmatpush1.bf16.msra.mxu0 %v753
    %1038 = vmatprep.subr.bf16.mxu0 %v756
    %1039 = vmatpush1.bf16.msra.mxu0 %v755
    %1040 = vmatprep.subr.bf16.mxu0 %v758
    %1041 = vmatpush1.bf16.msra.mxu0 %v757
    %1042 = vmatprep.subr.bf16.mxu0 %v760
    %1043 = vmatpush1.bf16.msra.mxu0 %v759
    %1044 = vmatprep.subr.bf16.mxu0 %v762
    %1045 = vmatpush1.bf16.msra.mxu0 %v761
    %1046 = vmatprep.mubr.bf16.mxu0 %v242
    %1047 = vmatmul.mubr.bf16.gmra.mrb[0].mxu0 %v240
    %v1048 = vpop.f32.mrb[0].mxu0
    %v1049 = vadd.f32 %v1008, %v1048
    %v1050 = vpop.f32.mrb[0].mxu0
    %v1051 = vadd.f32 %v1010, %v1050
    %v1052 = vpop.f32.mrb[0].mxu0
    %v1053 = vpop.f32.mrb[0].mxu0
    %1054 = vdwg.mxu0
    %v1055 = vmax.f32 %v1049, 0.0
    %v1056 = vmax.f32 %v1051, 0.0
    %v1057 = vpack.c.bf16 %v1055, %v1055
    %v1058 = vpack.c.bf16 %v1056, %v1056
    %v1059 = vld [vmem:[%s6] sm:$0xf]
    %v1060 = vld [vmem:[%s6 + $0x4] sm:$0xf]
    %v1061 = vld [vmem:[%s6 + $0x8] sm:$0xf]
    %v1062 = vld [vmem:[%s6 + $0xc] sm:$0xf]
    %v1063 = vld [vmem:[%s6 + $0x10] sm:$0xf]
    %v1064 = vld [vmem:[%s6 + $0x14] sm:$0xf]
    %v1065 = vld [vmem:[%s6 + $0x18] sm:$0xf]
    %v1066 = vld [vmem:[%s6 + $0x1c] sm:$0xf]
    %v1067 = vld [vmem:[%s6 + $0x20] sm:$0xf]
    %v1068 = vld [vmem:[%s6 + $0x24] sm:$0xf]
    %v1069 = vld [vmem:[%s6 + $0x28] sm:$0xf]
    %v1070 = vld [vmem:[%s6 + $0x2c] sm:$0xf]
    %v1071 = vld [vmem:[%s6 + $0x30] sm:$0xf]
    %v1072 = vld [vmem:[%s6 + $0x34] sm:$0xf]
    %v1073 = vld [vmem:[%s6 + $0x38] sm:$0xf]
    %v1074 = vld [vmem:[%s6 + $0x3c] sm:$0xf]
    %v1075 = vld [vmem:[%s7] sm:$0x1]
    %v1077 = vlaneseq
    %v1078 = vshrl.u32 %v1077, 7
    %v1079 = vsub.s32 0, %v1078
    %v1080 = vrot.slane %v1075, %v1079
    %v1098 = vunpack.c.l.b16 %v1059
    %v1099 = vunpack.c.l.b16 %v1060
    %v1100 = vunpack.c.l.b16 %v1061
    %v1101 = vunpack.c.l.b16 %v1062
    %v1102 = vunpack.c.l.b16 %v1063
    %v1103 = vunpack.c.l.b16 %v1064
    %v1104 = vunpack.c.l.b16 %v1065
    %v1105 = vunpack.c.l.b16 %v1066
    %v1106 = vunpack.c.l.b16 %v1067
    %v1107 = vunpack.c.l.b16 %v1068
    %v1108 = vunpack.c.l.b16 %v1069
    %v1109 = vunpack.c.l.b16 %v1070
    %v1110 = vunpack.c.l.b16 %v1071
    %v1111 = vunpack.c.l.b16 %v1072
    %v1112 = vunpack.c.l.b16 %v1073
    %v1113 = vunpack.c.l.b16 %v1074
    %v1114 = vpack.c.b16 %v1099, %v1098
    %v1115 = vpack.c.b16 %v1101, %v1100
    %v1116 = vpack.c.b16 %v1103, %v1102
    %v1117 = vpack.c.b16 %v1105, %v1104
    %v1118 = vpack.c.b16 %v1107, %v1106
    %v1119 = vpack.c.b16 %v1109, %v1108
    %v1120 = vpack.c.b16 %v1111, %v1110
    %v1121 = vpack.c.b16 %v1113, %v1112
    %1130 = vmatprep.subr.bf16.mxu0 0
    %1131 = vmatpush1.bf16.msra.mxu0 %v1114
    %1132 = vmatprep.subr.bf16.mxu0 0
    %1133 = vmatpush1.bf16.msra.mxu0 %v1115
    %1134 = vmatprep.subr.bf16.mxu0 0
    %1135 = vmatpush1.bf16.msra.mxu0 %v1116
    %1136 = vmatprep.subr.bf16.mxu0 0
    %1137 = vmatpush1.bf16.msra.mxu0 %v1117
    %1138 = vmatprep.subr.bf16.mxu0 0
    %1139 = vmatpush1.bf16.msra.mxu0 %v1118
    %1140 = vmatprep.subr.bf16.mxu0 0
    %1141 = vmatpush1.bf16.msra.mxu0 %v1119
    %1142 = vmatprep.subr.bf16.mxu0 0
    %1143 = vmatpush1.bf16.msra.mxu0 %v1120
    %1144 = vmatprep.subr.bf16.mxu0 0
    %1145 = vmatpush1.bf16.msra.mxu0 %v1121
    %1146 = vmatprep.subr.bf16.mxu0 0
    %1147 = vmatpush1.bf16.msra.mxu0 0
    %1148 = vmatprep.subr.bf16.mxu0 0
    %1149 = vmatpush1.bf16.msra.mxu0 0
    %1150 = vmatprep.subr.bf16.mxu0 0
    %1151 = vmatpush1.bf16.msra.mxu0 0
    %1152 = vmatprep.subr.bf16.mxu0 0
    %1153 = vmatpush1.bf16.msra.mxu0 0
    %1154 = vmatprep.subr.bf16.mxu0 0
    %1155 = vmatpush1.bf16.msra.mxu0 0
    %1156 = vmatprep.subr.bf16.mxu0 0
    %1157 = vmatpush1.bf16.msra.mxu0 0
    %1158 = vmatprep.subr.bf16.mxu0 0
    %1159 = vmatpush1.bf16.msra.mxu0 0
    %1160 = vmatprep.subr.bf16.mxu0 0
    %1161 = vmatpush1.bf16.msra.mxu0 0
    %1162 = vmatprep.mubr.bf16.mxu0 0
    %1163 = vmatmul.mubr.bf16.gmra.mrb[0].mxu0 %v1057
    %v1164 = vpop.f32.mrb[0].mxu0
    %v1165 = vadd.f32 %v1080, %v1164
    %v1166 = vpop.f32.mrb[0].mxu0
    %v1167 = vpop.f32.mrb[0].mxu0
    %v1168 = vpop.f32.mrb[0].mxu0
    %1169 = vdwg.mxu0
    %v1170 = vmax.f32 %v1165, 0.0
    %v1171 = vpack.c.bf16 %v1170, %v1170
    %v1172 = vld [vmem:[%s8] sm:$0xf]
    %v1173 = vld [vmem:[%s8 + $0x4] sm:$0xf]
    %v1174 = vld [vmem:[%s8 + $0x8] sm:$0xf]
    %v1175 = vld [vmem:[%s8 + $0xc] sm:$0xf]
    %v1176 = vld [vmem:[%s8 + $0x10] sm:$0xf]
    %v1177 = vld [vmem:[%s8 + $0x14] sm:$0xf]
    %v1178 = vld [vmem:[%s8 + $0x18] sm:$0xf]
    %v1179 = vld [vmem:[%s8 + $0x1c] sm:$0xf]
    %v1180 = vld [vmem:[%s8 + $0x20] sm:$0xf]
    %v1181 = vld [vmem:[%s8 + $0x24] sm:$0xf]
    %v1182 = vld [vmem:[%s8 + $0x28] sm:$0xf]
    %v1183 = vld [vmem:[%s8 + $0x2c] sm:$0xf]
    %v1184 = vld [vmem:[%s8 + $0x30] sm:$0xf]
    %v1185 = vld [vmem:[%s8 + $0x34] sm:$0xf]
    %v1186 = vld [vmem:[%s8 + $0x38] sm:$0xf]
    %v1187 = vld [vmem:[%s8 + $0x3c] sm:$0xf]
    %v1188 = vld [vmem:[%s9] sm:$0x1]
    %v1190 = vlaneseq
    %v1191 = vshrl.u32 %v1190, 7
    %v1192 = vsub.s32 0, %v1191
    %v1193 = vrot.slane %v1188, %v1192
    %v1211 = vunpack.c.l.b16 %v1172
    %v1212 = vunpack.c.l.b16 %v1173
    %v1213 = vunpack.c.l.b16 %v1174
    %v1214 = vunpack.c.l.b16 %v1175
    %v1215 = vunpack.c.l.b16 %v1176
    %v1216 = vunpack.c.l.b16 %v1177
    %v1217 = vunpack.c.l.b16 %v1178
    %v1218 = vunpack.c.l.b16 %v1179
    %v1219 = vunpack.c.l.b16 %v1180
    %v1220 = vunpack.c.l.b16 %v1181
    %v1221 = vunpack.c.l.b16 %v1182
    %v1222 = vunpack.c.l.b16 %v1183
    %v1223 = vunpack.c.l.b16 %v1184
    %v1224 = vunpack.c.l.b16 %v1185
    %v1225 = vunpack.c.l.b16 %v1186
    %v1226 = vunpack.c.l.b16 %v1187
    %v1227 = vpack.c.b16 %v1212, %v1211
    %v1228 = vpack.c.b16 %v1214, %v1213
    %v1229 = vpack.c.b16 %v1216, %v1215
    %v1230 = vpack.c.b16 %v1218, %v1217
    %v1231 = vpack.c.b16 %v1220, %v1219
    %v1232 = vpack.c.b16 %v1222, %v1221
    %v1233 = vpack.c.b16 %v1224, %v1223
    %v1234 = vpack.c.b16 %v1226, %v1225
    %1243 = vmatprep.subr.bf16.mxu0 0
    %1244 = vmatpush1.bf16.msra.mxu0 %v1227
    %1245 = vmatprep.subr.bf16.mxu0 0
    %1246 = vmatpush1.bf16.msra.mxu0 %v1228
    %1247 = vmatprep.subr.bf16.mxu0 0
    %1248 = vmatpush1.bf16.msra.mxu0 %v1229
    %1249 = vmatprep.subr.bf16.mxu0 0
    %1250 = vmatpush1.bf16.msra.mxu0 %v1230
    %1251 = vmatprep.subr.bf16.mxu0 0
    %1252 = vmatpush1.bf16.msra.mxu0 %v1231
    %1253 = vmatprep.subr.bf16.mxu0 0
    %1254 = vmatpush1.bf16.msra.mxu0 %v1232
    %1255 = vmatprep.subr.bf16.mxu0 0
    %1256 = vmatpush1.bf16.msra.mxu0 %v1233
    %1257 = vmatprep.subr.bf16.mxu0 0
    %1258 = vmatpush1.bf16.msra.mxu0 %v1234
    %1259 = vmatprep.subr.bf16.mxu0 0
    %1260 = vmatpush1.bf16.msra.mxu0 0
    %1261 = vmatprep.subr.bf16.mxu0 0
    %1262 = vmatpush1.bf16.msra.mxu0 0
    %1263 = vmatprep.subr.bf16.mxu0 0
    %1264 = vmatpush1.bf16.msra.mxu0 0
    %1265 = vmatprep.subr.bf16.mxu0 0
    %1266 = vmatpush1.bf16.msra.mxu0 0
    %1267 = vmatprep.subr.bf16.mxu0 0
    %1268 = vmatpush1.bf16.msra.mxu0 0
    %1269 = vmatprep.subr.bf16.mxu0 0
    %1270 = vmatpush1.bf16.msra.mxu0 0
    %1271 = vmatprep.subr.bf16.mxu0 0
    %1272 = vmatpush1.bf16.msra.mxu0 0
    %1273 = vmatprep.subr.bf16.mxu0 0
    %1274 = vmatpush1.bf16.msra.mxu0 0
    %1275 = vmatprep.mubr.bf16.mxu0 0
    %1276 = vmatmul.mubr.bf16.gmra.mrb[0].mxu0 %v1171
    %v1277 = vpop.f32.mrb[0].mxu0
    %v1278 = vadd.f32 %v1193, %v1277
    %v1279 = vpop.f32.mrb[0].mxu0
    %v1280 = vpop.f32.mrb[0].mxu0
    %v1281 = vpop.f32.mrb[0].mxu0
    %1282 = vdwg.mxu0
    %v1283 = vld [vmem:[%s10] sm:$0xf]
    %v1284 = vld [vmem:[%s10 + $0x4] sm:$0xf]
    %v1285 = vld [vmem:[%s10 + $0x8] sm:$0xf]
    %v1286 = vld [vmem:[%s10 + $0xc] sm:$0xf]
    %v1287 = vld [vmem:[%s10 + $0x10] sm:$0xf]
    %v1288 = vld [vmem:[%s10 + $0x14] sm:$0xf]
    %v1289 = vld [vmem:[%s10 + $0x18] sm:$0xf]
    %v1290 = vld [vmem:[%s10 + $0x1c] sm:$0xf]
    %v1291 = vld [vmem:[%s10 + $0x20] sm:$0xf]
    %v1292 = vld [vmem:[%s10 + $0x24] sm:$0xf]
    %v1293 = vld [vmem:[%s10 + $0x28] sm:$0xf]
    %v1294 = vld [vmem:[%s10 + $0x2c] sm:$0xf]
    %v1295 = vld [vmem:[%s10 + $0x30] sm:$0xf]
    %v1296 = vld [vmem:[%s10 + $0x34] sm:$0xf]
    %v1297 = vld [vmem:[%s10 + $0x38] sm:$0xf]
    %v1298 = vld [vmem:[%s10 + $0x3c] sm:$0xf]
    %v1299 = vld [vmem:[%s11] sm:$0x1]
    %v1301 = vlaneseq
    %v1302 = vshrl.u32 %v1301, 7
    %v1303 = vsub.s32 0, %v1302
    %v1304 = vrot.slane %v1299, %v1303
    %v1322 = vunpack.c.l.b16 %v1283
    %v1323 = vunpack.c.l.b16 %v1284
    %v1324 = vunpack.c.l.b16 %v1285
    %v1325 = vunpack.c.l.b16 %v1286
    %v1326 = vunpack.c.l.b16 %v1287
    %v1327 = vunpack.c.l.b16 %v1288
    %v1328 = vunpack.c.l.b16 %v1289
    %v1329 = vunpack.c.l.b16 %v1290
    %v1330 = vunpack.c.l.b16 %v1291
    %v1331 = vunpack.c.l.b16 %v1292
    %v1332 = vunpack.c.l.b16 %v1293
    %v1333 = vunpack.c.l.b16 %v1294
    %v1334 = vunpack.c.l.b16 %v1295
    %v1335 = vunpack.c.l.b16 %v1296
    %v1336 = vunpack.c.l.b16 %v1297
    %v1337 = vunpack.c.l.b16 %v1298
    %v1338 = vpack.c.b16 %v1323, %v1322
    %v1339 = vpack.c.b16 %v1325, %v1324
    %v1340 = vpack.c.b16 %v1327, %v1326
    %v1341 = vpack.c.b16 %v1329, %v1328
    %v1342 = vpack.c.b16 %v1331, %v1330
    %v1343 = vpack.c.b16 %v1333, %v1332
    %v1344 = vpack.c.b16 %v1335, %v1334
    %v1345 = vpack.c.b16 %v1337, %v1336
    %1354 = vmatprep.subr.bf16.mxu0 0
    %1355 = vmatpush1.bf16.msra.mxu0 %v1338
    %1356 = vmatprep.subr.bf16.mxu0 0
    %1357 = vmatpush1.bf16.msra.mxu0 %v1339
    %1358 = vmatprep.subr.bf16.mxu0 0
    %1359 = vmatpush1.bf16.msra.mxu0 %v1340
    %1360 = vmatprep.subr.bf16.mxu0 0
    %1361 = vmatpush1.bf16.msra.mxu0 %v1341
    %1362 = vmatprep.subr.bf16.mxu0 0
    %1363 = vmatpush1.bf16.msra.mxu0 %v1342
    %1364 = vmatprep.subr.bf16.mxu0 0
    %1365 = vmatpush1.bf16.msra.mxu0 %v1343
    %1366 = vmatprep.subr.bf16.mxu0 0
    %1367 = vmatpush1.bf16.msra.mxu0 %v1344
    %1368 = vmatprep.subr.bf16.mxu0 0
    %1369 = vmatpush1.bf16.msra.mxu0 %v1345
    %1370 = vmatprep.subr.bf16.mxu0 0
    %1371 = vmatpush1.bf16.msra.mxu0 0
    %1372 = vmatprep.subr.bf16.mxu0 0
    %1373 = vmatpush1.bf16.msra.mxu0 0
    %1374 = vmatprep.subr.bf16.mxu0 0
    %1375 = vmatpush1.bf16.msra.mxu0 0
    %1376 = vmatprep.subr.bf16.mxu0 0
    %1377 = vmatpush1.bf16.msra.mxu0 0
    %1378 = vmatprep.subr.bf16.mxu0 0
    %1379 = vmatpush1.bf16.msra.mxu0 0
    %1380 = vmatprep.subr.bf16.mxu0 0
    %1381 = vmatpush1.bf16.msra.mxu0 0
    %1382 = vmatprep.subr.bf16.mxu0 0
    %1383 = vmatpush1.bf16.msra.mxu0 0
    %1384 = vmatprep.subr.bf16.mxu0 0
    %1385 = vmatpush1.bf16.msra.mxu0 0
    %1386 = vmatprep.mubr.bf16.mxu0 0
    %1387 = vmatmul.mubr.bf16.gmra.mrb[0].mxu0 %v1058
    %v1388 = vpop.f32.mrb[0].mxu0
    %v1389 = vadd.f32 %v1304, %v1388
    %v1390 = vpop.f32.mrb[0].mxu0
    %v1391 = vpop.f32.mrb[0].mxu0
    %v1392 = vpop.f32.mrb[0].mxu0
    %1393 = vdwg.mxu0
    %1394 = vst [vmem:[#allocation2] sm:$0x3] %v1278
    %1395 = vst [vmem:[#allocation4] sm:$0x3] %v1389
    // Predicated region
    $region50: #{dann_forward.9} parent=1 // pred_check
      _
    $region51: #{dann_forward.9} parent=1 // pred_check_branch
      %1397 = sbr.rel (0) target = $region53
    $region52: #{dann_forward.9} parent=1 // pred_region
      %s1399 = ssub.s32 32, 32
      %1400 = vsyncadd [#allocation3], %s1399
      %s1402 = sshll.u32 [#allocation2], 4
      %s1403 = int_to_ptr.vmem [resolvable:$true] %s1402
      %1405 = dma.vmem_to_hbm [thread:$0]  %s1403, 32, %s12, [#allocation3]
    $region53: #{dann_forward.9} parent=1 // pred_fallthru
      _
    // Predicated region
    $region54: #{dann_forward.9} parent=1 // pred_check
      _
    $region55: #{dann_forward.9} parent=1 // pred_check_branch
      %1407 = sbr.rel (0) target = $region57
    $region56: #{dann_forward.9} parent=1 // pred_region
      %s1409 = ssub.s32 32, 32
      %1410 = vsyncadd [#allocation5], %s1409
      %s1412 = sshll.u32 [#allocation4], 4
      %s1413 = int_to_ptr.vmem [resolvable:$true] %s1412
      %1415 = dma.vmem_to_hbm [thread:$0]  %s1413, 32, %s13, [#allocation5]
    $region57: #{dann_forward.9} parent=1 // pred_fallthru
      _
    // Predicated region
    $region58: #{dann_forward.9} parent=1 // pred_check
      _
    $region59: #{dann_forward.9} parent=1 // pred_check_branch
      %1417 = sbr.rel (0) target = $region61
    $region60: #{dann_forward.9} parent=1 // pred_region
      %1418 = dma.done [#allocation3], 32
    $region61: #{dann_forward.9} parent=1 // pred_fallthru
      _
    // Predicated region
    $region62: #{dann_forward.9} parent=1 // pred_check
      _
    $region63: #{dann_forward.9} parent=1 // pred_check_branch
      %1420 = sbr.rel (0) target = $region65
    $region64: #{dann_forward.9} parent=1 // pred_region
      %1421 = dma.done [#allocation5], 32
    $region65: #{dann_forward.9} parent=1 // pred_fallthru
      _
    %1422 = vsyncpa [#allocation3], 1
    %1423 = vsyncpa [#allocation5], 1

</llo_original>
